<compile_context>
chip_gen: v6e
topology: v6e:2x2x1
jax: 0.10.0
libtpu: 0.0.40
codegen_flags: <defaults>
</compile_context>

<pallas_src>
import functools

import jax
import jax.numpy as jnp
from jax.experimental import pallas as pl
from jax.experimental.pallas import tpu as pltpu


_VMEM_LIMIT = 32 * 1024 * 1024  # explicit, safe on v5e/v6e/v7x (usage << 2 MiB)


def _round_up(x, m):
    return (x + m - 1) // m * m


# ----------------------------- Pallas kernels -----------------------------

def _conv_act_kernel(x_ref, w_ref, b_ref, o_ref):
    """Fused conv-as-matmul + bias + LeakyReLU(0.2) (no BatchNorm).

    Channel-first: x (K, tm), w (C, K), b (C, 1)  ->  o (C, tm), lane-dense.
    """
    y = (jnp.dot(w_ref[...], x_ref[...], preferred_element_type=jnp.float32)
         + b_ref[...])
    o_ref[...] = jnp.where(y >= 0.0, y, 0.2 * y)


def conv_act(x_km, w, b, tm=2048):
    """Y = leaky_relu(W @ X + b).  X: (K, M), W: (C, K), b: (C, 1) -> (C, M).

    Tiled over M (the lane axis) with a parallel grid: 4 blocks at C1's
    M = 8192 so both TensorCores of a v7x chip get work; on v5e/v6e the few
    extra grid steps cost ~0.35 us each.
    """
    K, M = x_km.shape
    C = w.shape[0]
    tm = min(tm, _round_up(M, 128))
    Mp = _round_up(M, tm)
    if Mp != M:
        x_km = jnp.pad(x_km, ((0, 0), (0, Mp - M)))
    out = pl.pallas_call(
        _conv_act_kernel,
        out_shape=jax.ShapeDtypeStruct((C, Mp), jnp.float32),
        grid_spec=pltpu.PrefetchScalarGridSpec(
            num_scalar_prefetch=0,
            grid=(Mp // tm,),
            in_specs=[
                pl.BlockSpec((K, tm), lambda i: (0, i)),
                pl.BlockSpec((C, K), lambda i: (0, 0)),
                pl.BlockSpec((C, 1), lambda i: (0, 0)),
            ],
            out_specs=pl.BlockSpec((C, tm), lambda i: (0, i)),
        ),
        compiler_params=pltpu.CompilerParams(
            dimension_semantics=("parallel",),
            vmem_limit_bytes=_VMEM_LIMIT,
        ),
    )(x_km, w, b)
    return out[:, :M] if Mp != M else out


def _conv_bn_act_kernel(x_ref, w_ref, b_ref, g_ref, bt_ref, o_ref, *, inv_m, eps):
    """Fused conv-as-matmul + bias + BatchNorm(batch stats) + LeakyReLU(0.2).

    Channel-first: the whole (C, M) pre-activation stays VMEM/register
    resident; per-channel mean/var are cross-lane reductions (XLU), then the
    affine + LeakyReLU epilogue is applied before the single lane-dense store.
    """
    y = (jnp.dot(w_ref[...], x_ref[...], preferred_element_type=jnp.float32)
         + b_ref[...])
    mean = jnp.sum(y, axis=1, keepdims=True) * inv_m
    var = jnp.maximum(
        jnp.sum(y * y, axis=1, keepdims=True) * inv_m - mean * mean, 0.0)
    scale = g_ref[...] * jax.lax.rsqrt(var + eps)
    shift = bt_ref[...] - mean * scale
    z = y * scale + shift
    o_ref[...] = jnp.where(z >= 0.0, z, 0.2 * z)


def conv_bn_act(x_km, w, b, gamma, beta, eps=1e-5):
    """Whole BN conv block in one pallas_call (single grid step; all operands
    fit comfortably in VMEM at these shapes — largest X is 512 KiB)."""
    K, M = x_km.shape
    C = w.shape[0]
    kern = functools.partial(_conv_bn_act_kernel, inv_m=1.0 / M, eps=eps)
    return pl.pallas_call(
        kern,
        out_shape=jax.ShapeDtypeStruct((C, M), jnp.float32),
        grid_spec=pltpu.PrefetchScalarGridSpec(
            num_scalar_prefetch=0,
            grid=(1,),
            in_specs=[
                pl.BlockSpec((K, M), lambda i: (0, 0)),
                pl.BlockSpec((C, K), lambda i: (0, 0)),
                pl.BlockSpec((C, 1), lambda i: (0, 0)),
                pl.BlockSpec((C, 1), lambda i: (0, 0)),
                pl.BlockSpec((C, 1), lambda i: (0, 0)),
            ],
            out_specs=pl.BlockSpec((C, M), lambda i: (0, 0)),
        ),
        compiler_params=pltpu.CompilerParams(
            dimension_semantics=("arbitrary",),
            vmem_limit_bytes=_VMEM_LIMIT,
        ),
    )(x_km, w, b, gamma, beta)


def _conv_bn_act_fc_kernel(x_ref, w_ref, b_ref, g_ref, bt_ref, fw_ref, sel_ref,
                           fb_ref, o_ref, *, inv_m, eps):
    """C6 block + NCHW-order flatten + FC1, fully fused (channel-first).

    fw_ref holds the FC1 weight rearranged/tiled to (C_out, M) so the fused
    activation can be consumed elementwise in its natural (C_out, M) layout
    (torch flattens NCHW: feature index c*HW + h*W + w).  sel_ref is an
    (M, N) one-hot selector so the per-sample sum is a tiny matmul — no
    in-kernel reshape/relayout is needed.  Output is (1, N).
    """
    y = (jnp.dot(w_ref[...], x_ref[...], preferred_element_type=jnp.float32)
         + b_ref[...])
    mean = jnp.sum(y, axis=1, keepdims=True) * inv_m
    var = jnp.maximum(
        jnp.sum(y * y, axis=1, keepdims=True) * inv_m - mean * mean, 0.0)
    scale = g_ref[...] * jax.lax.rsqrt(var + eps)
    shift = bt_ref[...] - mean * scale
    z = y * scale + shift
    a = jnp.where(z >= 0.0, z, 0.2 * z)                     # (C, M)
    p = a * fw_ref[...]                                     # (C, M)
    s = jnp.sum(p, axis=0, keepdims=True)                   # (1, M)
    o_ref[...] = (jnp.dot(s, sel_ref[...],
                          preferred_element_type=jnp.float32)
                  + fb_ref[...])                            # (1, N)


def conv_bn_act_fc(x_km, w, b, gamma, beta, fc_w_tiled, sel, fc_b, eps=1e-5):
    K, M = x_km.shape
    C = w.shape[0]
    n_batch = sel.shape[1]
    kern = functools.partial(_conv_bn_act_fc_kernel, inv_m=1.0 / M, eps=eps)
    return pl.pallas_call(
        kern,
        out_shape=jax.ShapeDtypeStruct((1, n_batch), jnp.float32),
        grid_spec=pltpu.PrefetchScalarGridSpec(
            num_scalar_prefetch=0,
            grid=(1,),
            in_specs=[
                pl.BlockSpec((K, M), lambda i: (0, 0)),
                pl.BlockSpec((C, K), lambda i: (0, 0)),
                pl.BlockSpec((C, 1), lambda i: (0, 0)),
                pl.BlockSpec((C, 1), lambda i: (0, 0)),
                pl.BlockSpec((C, 1), lambda i: (0, 0)),
                pl.BlockSpec((C, M), lambda i: (0, 0)),
                pl.BlockSpec((M, n_batch), lambda i: (0, 0)),
                pl.BlockSpec((1, 1), lambda i: (0, 0)),
            ],
            out_specs=pl.BlockSpec((1, n_batch), lambda i: (0, 0)),
        ),
        compiler_params=pltpu.CompilerParams(
            dimension_semantics=("arbitrary",),
            vmem_limit_bytes=_VMEM_LIMIT,
        ),
    )(x_km, w, b, gamma, beta, fc_w_tiled, sel, fc_b)


# ------------------------------- JAX glue ---------------------------------

def pp(x_cnhw, n):
    """Periodic (circular) padding of n pixels on each spatial side (CNHW)."""
    return jnp.pad(x_cnhw, ((0, 0), (0, 0), (n, n), (n, n)), mode="wrap")


def im2col_cf(x_cnhw, k, stride):
    """Channel-first im2col: (C, N, H, W) -> (K = k*k*C, M = N*OH*OW)."""
    C, N, H, W = x_cnhw.shape
    oh = (H - k) // stride + 1
    ow = (W - k) // stride + 1
    slabs = []
    for i in range(k):
        for j in range(k):
            slabs.append(
                x_cnhw[:, :, i:i + stride * (oh - 1) + 1:stride,
                       j:j + stride * (ow - 1) + 1:stride])
    cols = jnp.stack(slabs, axis=0)            # (k*k, C, N, oh, ow)
    return cols.reshape(k * k * C, N * oh * ow), oh, ow


def conv_block(x, p, k, stride, use_bn, eps=1e-5):
    """pp -> conv(k, stride, pad=0) -> [BatchNorm] -> LeakyReLU(0.2)."""
    _, N, _, _ = x.shape
    cols, oh, ow = im2col_cf(pp(x, 1), k, stride)
    if use_bn:
        y = conv_bn_act(cols, p["w"], p["b"], p["gamma"], p["beta"], eps)
    else:
        y = conv_act(cols, p["w"], p["b"])
    return y.reshape(y.shape[0], N, oh, ow)


def final_block_fc(x, p, fc, k, stride, eps=1e-5):
    """pp -> C6 conv -> BN -> LeakyReLU -> flatten(NCHW) -> FC1, one kernel."""
    _, N, _, _ = x.shape
    cols, oh, ow = im2col_cf(pp(x, 1), k, stride)
    hw = oh * ow
    fw_tiled = jnp.tile(fc["w"], (1, N))                     # (50, N*hw)
    sel = (jnp.arange(N * hw)[:, None] // hw
           == jnp.arange(N)[None, :]).astype(jnp.float32)    # (M, N)
    out = conv_bn_act_fc(cols, p["w"], p["b"], p["gamma"], p["beta"],
                         fw_tiled, sel, fc["b"], eps)        # (1, N)
    return out.T                                             # (N, 1)


def model_b_periodic_forward(image_nchw, params):
    x = jnp.transpose(image_nchw, (1, 0, 2, 3))              # NCHW -> CNHW
    x = conv_block(x, params["C1"], 4, 2, use_bn=False)      # B1 unused in torch forward
    x = conv_block(x, params["C2"], 4, 2, use_bn=True)
    x = conv_block(x, params["C3"], 4, 2, use_bn=True)
    x = conv_block(x, params["C4"], 4, 2, use_bn=True)
    x = conv_block(x, params["C5"], 4, 2, use_bn=True)
    # C6 + flatten(N, -1) in NCHW order + FC1, fused into one pallas_call.
    return final_block_fc(x, params["C6"], params["FC1"], 3, 1)  # (N, 1)


# --------------------------- parameter creation ----------------------------

def _kaiming_normal(key, shape, fan_in):
    # torch kaiming_normal_ default: gain = sqrt(2), std = gain / sqrt(fan_in)
    return (2.0 / fan_in) ** 0.5 * jax.random.normal(key, shape, dtype=jnp.float32)


def init_params(key, hidden):
    params = {}
    conv_cfg = [
        ("C1", 1, hidden, 4),
        ("C2", hidden, 2 * hidden, 4),
        ("C3", 2 * hidden, 4 * hidden, 4),
        ("C4", 4 * hidden, 8 * hidden, 4),
        ("C5", 8 * hidden, 16 * hidden, 4),
        ("C6", 16 * hidden, 50, 3),
    ]
    for name, cin, cout, k in conv_cfg:
        key, kw_, kb_ = jax.random.split(key, 3)
        fan_in = cin * k * k
        # stored as (Cout, k*k*Cin) to match the channel-first im2col layout
        w = _kaiming_normal(kw_, (cout, k * k * cin), fan_in)
        bound = 1.0 / fan_in ** 0.5
        b = jax.random.uniform(kb_, (cout, 1), minval=-bound, maxval=bound,
                               dtype=jnp.float32)
        params[name] = {
            "w": w,
            "b": b,
            "gamma": jnp.ones((cout, 1), jnp.float32),   # BN weight init = 1
            "beta": jnp.zeros((cout, 1), jnp.float32),   # BN bias init = 0
        }
    key, kw_, kb_ = jax.random.split(key, 3)
    fan_in = 50 * 4 * 4
    bound = 1.0 / fan_in ** 0.5
    # FC1 weight stored as (50, 16) = (channel, h*w), i.e. torch flatten order
    # (c, h, w) regrouped so the fused C6 kernel consumes the (C, M) activation
    # elementwise.
    params["FC1"] = {
        "w": _kaiming_normal(kw_, (50, 16), fan_in),
        "b": jax.random.uniform(kb_, (1, 1), minval=-bound, maxval=bound,
                                dtype=jnp.float32),
    }
    return params


# --------------------------------- main -------------------------------------

if __name__ == "__main__":
    hidden = 4
    key = jax.random.PRNGKey(0)
    kp, kx = jax.random.split(key)
    params = init_params(kp, hidden)

    # FC1 expects 50*4*4 features => spatial input must be 128x128 (1 channel).
    image = jax.random.normal(kx, (2, 1, 128, 128), dtype=jnp.float32)

    fwd = jax.jit(functools.partial(model_b_periodic_forward, params=params))
    out = fwd(image)
    jax.block_until_ready(out)
    assert out.shape == (2, 1) and out.dtype == jnp.float32
    print("KERNEL_OK")
</pallas_src>

<mosaic_0001>
module attributes {stable_mosaic.version = 11 : i64} {
  func.func @_conv_act_kernel(%arg0: i32, %arg1: memref<16x2048xf32, #tpu.memory_space<vmem>>, %arg2: memref<4x16xf32, #tpu.memory_space<vmem>>, %arg3: memref<4x1xf32, #tpu.memory_space<vmem>>, %arg4: memref<4x2048xf32, #tpu.memory_space<vmem>>) attributes {dimension_semantics = [#tpu.dimension_semantics<parallel>], iteration_bounds = array<i64: 4>, scalar_prefetch = 0 : i64, scratch_operands = 0 : i64, tpu.core_type = #tpu.core_type<tc>, window_params = [{transform_indices = @transform_0, window_bounds = array<i64: 16, 2048>}, {pipeline_mode = #tpu.pipeline_mode<synchronous>, transform_indices = @transform_1, window_bounds = array<i64: 4, 16>}, {pipeline_mode = #tpu.pipeline_mode<synchronous>, transform_indices = @transform_2, window_bounds = array<i64: 4, 1>}, {transform_indices = @transform_3, window_bounds = array<i64: 4, 2048>}]} {
    %c0 = arith.constant 0 : index
    %c0_0 = arith.constant 0 : index
    %0 = vector.load %arg2[%c0, %c0_0] : memref<4x16xf32, #tpu.memory_space<vmem>>, vector<4x16xf32>
    %c0_1 = arith.constant 0 : index
    %c0_2 = arith.constant 0 : index
    %1 = vector.load %arg1[%c0_1, %c0_2] : memref<16x2048xf32, #tpu.memory_space<vmem>>, vector<16x2048xf32>
    %cst = arith.constant dense<0.000000e+00> : vector<4x2048xf32>
    %2 = tpu.matmul %0, %1, %cst {dimension_numbers = #tpu.dot_dimension_numbers<[1], [0], [0], [1], [0, 0, 1, 1], [], []>} : vector<4x16xf32>, vector<16x2048xf32>, vector<4x2048xf32> -> vector<4x2048xf32>
    %c0_3 = arith.constant 0 : index
    %c0_4 = arith.constant 0 : index
    %3 = vector.load %arg3[%c0_3, %c0_4] : memref<4x1xf32, #tpu.memory_space<vmem>>, vector<4x1xf32>
    %4 = vector.broadcast %3 : vector<4x1xf32> to vector<4x2048xf32>
    %5 = arith.addf %2, %4 : vector<4x2048xf32>
    %cst_5 = arith.constant 0.000000e+00 : f32
    %6 = vector.broadcast %cst_5 : f32 to vector<4x2048xf32>
    %7 = arith.cmpf oge, %5, %6 : vector<4x2048xf32>
    %cst_6 = arith.constant 2.000000e-01 : f32
    %8 = vector.broadcast %cst_6 : f32 to vector<4x2048xf32>
    %9 = arith.mulf %8, %5 : vector<4x2048xf32>
    %10 = arith.select %7, %5, %9 : vector<4x2048xi1>, vector<4x2048xf32>
    %c0_7 = arith.constant 0 : index
    %c0_8 = arith.constant 0 : index
    %11 = vector.load %arg4[%c0_7, %c0_8] : memref<4x2048xf32, #tpu.memory_space<vmem>>, vector<4x2048xf32>
    tpu.vector_store %arg4[%c0_7, %c0_8], %10 {strides = array<i32>} : memref<4x2048xf32, #tpu.memory_space<vmem>>, vector<4x2048xf32>,
    return
  }
  func.func @transform_0(%arg0: i32) -> (i32, i32) {
    %c0_i32 = arith.constant 0 : i32
    %c0_i32_0 = arith.constant 0 : i32
    return %c0_i32, %arg0 : i32, i32
  }
  func.func @transform_1(%arg0: i32) -> (i32, i32) {
    %c0_i32 = arith.constant 0 : i32
    %c0_i32_0 = arith.constant 0 : i32
    %c0_i32_1 = arith.constant 0 : i32
    return %c0_i32, %c0_i32_0 : i32, i32
  }
  func.func @transform_2(%arg0: i32) -> (i32, i32) {
    %c0_i32 = arith.constant 0 : i32
    %c0_i32_0 = arith.constant 0 : i32
    %c0_i32_1 = arith.constant 0 : i32
    return %c0_i32, %c0_i32_0 : i32, i32
  }
  func.func @transform_3(%arg0: i32) -> (i32, i32) {
    %c0_i32 = arith.constant 0 : i32
    %c0_i32_0 = arith.constant 0 : i32
    return %c0_i32, %arg0 : i32, i32
  }
}

module attributes {stable_mosaic.version = 11 : i64} {
  func.func @_conv_bn_act_kernel(%arg0: i32, %arg1: memref<64x2048xf32, #tpu.memory_space<vmem>>, %arg2: memref<8x64xf32, #tpu.memory_space<vmem>>, %arg3: memref<8x1xf32, #tpu.memory_space<vmem>>, %arg4: memref<8x1xf32, #tpu.memory_space<vmem>>, %arg5: memref<8x1xf32, #tpu.memory_space<vmem>>, %arg6: memref<8x2048xf32, #tpu.memory_space<vmem>>) attributes {dimension_semantics = [#tpu.dimension_semantics<arbitrary>], iteration_bounds = array<i64: 1>, scalar_prefetch = 0 : i64, scratch_operands = 0 : i64, tpu.core_type = #tpu.core_type<tc>, window_params = [{pipeline_mode = #tpu.pipeline_mode<synchronous>, transform_indices = @transform_0, window_bounds = array<i64: 64, 2048>}, {pipeline_mode = #tpu.pipeline_mode<synchronous>, transform_indices = @transform_1, window_bounds = array<i64: 8, 64>}, {pipeline_mode = #tpu.pipeline_mode<synchronous>, transform_indices = @transform_2, window_bounds = array<i64: 8, 1>}, {pipeline_mode = #tpu.pipeline_mode<synchronous>, transform_indices = @transform_3, window_bounds = array<i64: 8, 1>}, {pipeline_mode = #tpu.pipeline_mode<synchronous>, transform_indices = @transform_4, window_bounds = array<i64: 8, 1>}, {pipeline_mode = #tpu.pipeline_mode<synchronous>, transform_indices = @transform_5, window_bounds = array<i64: 8, 2048>}]} {
    %c0 = arith.constant 0 : index
    %c0_0 = arith.constant 0 : index
    %0 = vector.load %arg2[%c0, %c0_0] : memref<8x64xf32, #tpu.memory_space<vmem>>, vector<8x64xf32>
    %c0_1 = arith.constant 0 : index
    %c0_2 = arith.constant 0 : index
    %1 = vector.load %arg1[%c0_1, %c0_2] : memref<64x2048xf32, #tpu.memory_space<vmem>>, vector<64x2048xf32>
    %cst = arith.constant dense<0.000000e+00> : vector<8x2048xf32>
    %2 = tpu.matmul %0, %1, %cst {dimension_numbers = #tpu.dot_dimension_numbers<[1], [0], [0], [1], [0, 0, 1, 1], [], []>} : vector<8x64xf32>, vector<64x2048xf32>, vector<8x2048xf32> -> vector<8x2048xf32>
    %c0_3 = arith.constant 0 : index
    %c0_4 = arith.constant 0 : index
    %3 = vector.load %arg3[%c0_3, %c0_4] : memref<8x1xf32, #tpu.memory_space<vmem>>, vector<8x1xf32>
    %4 = vector.broadcast %3 : vector<8x1xf32> to vector<8x2048xf32>
    %5 = arith.addf %2, %4 : vector<8x2048xf32>
    %cst_5 = arith.constant dense<0.000000e+00> : vector<8xf32>
    %6 = vector.multi_reduction <add>, %5, %cst_5 [1] : vector<8x2048xf32> to vector<8xf32>
    %7 = vector.shape_cast %6 : vector<8xf32> to vector<8x1xf32>
    %cst_6 = arith.constant 4.8828125E-4 : f32
    %8 = vector.broadcast %cst_6 : f32 to vector<8x1xf32>
    %9 = arith.mulf %7, %8 : vector<8x1xf32>
    %10 = arith.mulf %5, %5 : vector<8x2048xf32>
    %cst_7 = arith.constant dense<0.000000e+00> : vector<8xf32>
    %11 = vector.multi_reduction <add>, %10, %cst_7 [1] : vector<8x2048xf32> to vector<8xf32>
    %12 = vector.shape_cast %11 : vector<8xf32> to vector<8x1xf32>
    %cst_8 = arith.constant 4.8828125E-4 : f32
    %13 = vector.broadcast %cst_8 : f32 to vector<8x1xf32>
    %14 = arith.mulf %12, %13 : vector<8x1xf32>
    %15 = arith.mulf %9, %9 : vector<8x1xf32>
    %16 = arith.subf %14, %15 : vector<8x1xf32>
    %cst_9 = arith.constant 0.000000e+00 : f32
    %17 = vector.broadcast %cst_9 : f32 to vector<8x1xf32>
    %18 = arith.maximumf %16, %17 : vector<8x1xf32>
    %c0_10 = arith.constant 0 : index
    %c0_11 = arith.constant 0 : index
    %19 = vector.load %arg4[%c0_10, %c0_11] : memref<8x1xf32, #tpu.memory_space<vmem>>, vector<8x1xf32>
    %cst_12 = arith.constant 9.99999974E-6 : f32
    %20 = vector.broadcast %cst_12 : f32 to vector<8x1xf32>
    %21 = arith.addf %18, %20 : vector<8x1xf32>
    %22 = math.rsqrt %21 : vector<8x1xf32>
    %23 = arith.mulf %19, %22 : vector<8x1xf32>
    %c0_13 = arith.constant 0 : index
    %c0_14 = arith.constant 0 : index
    %24 = vector.load %arg5[%c0_13, %c0_14] : memref<8x1xf32, #tpu.memory_space<vmem>>, vector<8x1xf32>
    %25 = arith.mulf %9, %23 : vector<8x1xf32>
    %26 = arith.subf %24, %25 : vector<8x1xf32>
    %27 = vector.broadcast %23 : vector<8x1xf32> to vector<8x2048xf32>
    %28 = arith.mulf %5, %27 : vector<8x2048xf32>
    %29 = vector.broadcast %26 : vector<8x1xf32> to vector<8x2048xf32>
    %30 = arith.addf %28, %29 : vector<8x2048xf32>
    %cst_15 = arith.constant 0.000000e+00 : f32
    %31 = vector.broadcast %cst_15 : f32 to vector<8x2048xf32>
    %32 = arith.cmpf oge, %30, %31 : vector<8x2048xf32>
    %cst_16 = arith.constant 2.000000e-01 : f32
    %33 = vector.broadcast %cst_16 : f32 to vector<8x2048xf32>
    %34 = arith.mulf %33, %30 : vector<8x2048xf32>
    %35 = arith.select %32, %30, %34 : vector<8x2048xi1>, vector<8x2048xf32>
    %c0_17 = arith.constant 0 : index
    %c0_18 = arith.constant 0 : index
    %36 = vector.load %arg6[%c0_17, %c0_18] : memref<8x2048xf32, #tpu.memory_space<vmem>>, vector<8x2048xf32>
    tpu.vector_store %arg6[%c0_17, %c0_18], %35 {strides = array<i32>} : memref<8x2048xf32, #tpu.memory_space<vmem>>, vector<8x2048xf32>,
    return
  }
  func.func @transform_0(%arg0: i32) -> (i32, i32) {
    %c0_i32 = arith.constant 0 : i32
    %c0_i32_0 = arith.constant 0 : i32
    %c0_i32_1 = arith.constant 0 : i32
    return %c0_i32, %c0_i32_0 : i32, i32
  }
  func.func @transform_1(%arg0: i32) -> (i32, i32) {
    %c0_i32 = arith.constant 0 : i32
    %c0_i32_0 = arith.constant 0 : i32
    %c0_i32_1 = arith.constant 0 : i32
    return %c0_i32, %c0_i32_0 : i32, i32
  }
  func.func @transform_2(%arg0: i32) -> (i32, i32) {
    %c0_i32 = arith.constant 0 : i32
    %c0_i32_0 = arith.constant 0 : i32
    %c0_i32_1 = arith.constant 0 : i32
    return %c0_i32, %c0_i32_0 : i32, i32
  }
  func.func @transform_3(%arg0: i32) -> (i32, i32) {
    %c0_i32 = arith.constant 0 : i32
    %c0_i32_0 = arith.constant 0 : i32
    %c0_i32_1 = arith.constant 0 : i32
    return %c0_i32, %c0_i32_0 : i32, i32
  }
  func.func @transform_4(%arg0: i32) -> (i32, i32) {
    %c0_i32 = arith.constant 0 : i32
    %c0_i32_0 = arith.constant 0 : i32
    %c0_i32_1 = arith.constant 0 : i32
    return %c0_i32, %c0_i32_0 : i32, i32
  }
  func.func @transform_5(%arg0: i32) -> (i32, i32) {
    %c0_i32 = arith.constant 0 : i32
    %c0_i32_0 = arith.constant 0 : i32
    %c0_i32_1 = arith.constant 0 : i32
    return %c0_i32, %c0_i32_0 : i32, i32
  }
}

module attributes {stable_mosaic.version = 11 : i64} {
  func.func @_conv_bn_act_kernel(%arg0: i32, %arg1: memref<128x512xf32, #tpu.memory_space<vmem>>, %arg2: memref<16x128xf32, #tpu.memory_space<vmem>>, %arg3: memref<16x1xf32, #tpu.memory_space<vmem>>, %arg4: memref<16x1xf32, #tpu.memory_space<vmem>>, %arg5: memref<16x1xf32, #tpu.memory_space<vmem>>, %arg6: memref<16x512xf32, #tpu.memory_space<vmem>>) attributes {dimension_semantics = [#tpu.dimension_semantics<arbitrary>], iteration_bounds = array<i64: 1>, scalar_prefetch = 0 : i64, scratch_operands = 0 : i64, tpu.core_type = #tpu.core_type<tc>, window_params = [{pipeline_mode = #tpu.pipeline_mode<synchronous>, transform_indices = @transform_0, window_bounds = array<i64: 128, 512>}, {pipeline_mode = #tpu.pipeline_mode<synchronous>, transform_indices = @transform_1, window_bounds = array<i64: 16, 128>}, {pipeline_mode = #tpu.pipeline_mode<synchronous>, transform_indices = @transform_2, window_bounds = array<i64: 16, 1>}, {pipeline_mode = #tpu.pipeline_mode<synchronous>, transform_indices = @transform_3, window_bounds = array<i64: 16, 1>}, {pipeline_mode = #tpu.pipeline_mode<synchronous>, transform_indices = @transform_4, window_bounds = array<i64: 16, 1>}, {pipeline_mode = #tpu.pipeline_mode<synchronous>, transform_indices = @transform_5, window_bounds = array<i64: 16, 512>}]} {
    %c0 = arith.constant 0 : index
    %c0_0 = arith.constant 0 : index
    %0 = vector.load %arg2[%c0, %c0_0] : memref<16x128xf32, #tpu.memory_space<vmem>>, vector<16x128xf32>
    %c0_1 = arith.constant 0 : index
    %c0_2 = arith.constant 0 : index
    %1 = vector.load %arg1[%c0_1, %c0_2] : memref<128x512xf32, #tpu.memory_space<vmem>>, vector<128x512xf32>
    %cst = arith.constant dense<0.000000e+00> : vector<16x512xf32>
    %2 = tpu.matmul %0, %1, %cst {dimension_numbers = #tpu.dot_dimension_numbers<[1], [0], [0], [1], [0, 0, 1, 1], [], []>} : vector<16x128xf32>, vector<128x512xf32>, vector<16x512xf32> -> vector<16x512xf32>
    %c0_3 = arith.constant 0 : index
    %c0_4 = arith.constant 0 : index
    %3 = vector.load %arg3[%c0_3, %c0_4] : memref<16x1xf32, #tpu.memory_space<vmem>>, vector<16x1xf32>
    %4 = vector.broadcast %3 : vector<16x1xf32> to vector<16x512xf32>
    %5 = arith.addf %2, %4 : vector<16x512xf32>
    %cst_5 = arith.constant dense<0.000000e+00> : vector<16xf32>
    %6 = vector.multi_reduction <add>, %5, %cst_5 [1] : vector<16x512xf32> to vector<16xf32>
    %7 = vector.shape_cast %6 : vector<16xf32> to vector<16x1xf32>
    %cst_6 = arith.constant 0.001953125 : f32
    %8 = vector.broadcast %cst_6 : f32 to vector<16x1xf32>
    %9 = arith.mulf %7, %8 : vector<16x1xf32>
    %10 = arith.mulf %5, %5 : vector<16x512xf32>
    %cst_7 = arith.constant dense<0.000000e+00> : vector<16xf32>
    %11 = vector.multi_reduction <add>, %10, %cst_7 [1] : vector<16x512xf32> to vector<16xf32>
    %12 = vector.shape_cast %11 : vector<16xf32> to vector<16x1xf32>
    %cst_8 = arith.constant 0.001953125 : f32
    %13 = vector.broadcast %cst_8 : f32 to vector<16x1xf32>
    %14 = arith.mulf %12, %13 : vector<16x1xf32>
    %15 = arith.mulf %9, %9 : vector<16x1xf32>
    %16 = arith.subf %14, %15 : vector<16x1xf32>
    %cst_9 = arith.constant 0.000000e+00 : f32
    %17 = vector.broadcast %cst_9 : f32 to vector<16x1xf32>
    %18 = arith.maximumf %16, %17 : vector<16x1xf32>
    %c0_10 = arith.constant 0 : index
    %c0_11 = arith.constant 0 : index
    %19 = vector.load %arg4[%c0_10, %c0_11] : memref<16x1xf32, #tpu.memory_space<vmem>>, vector<16x1xf32>
    %cst_12 = arith.constant 9.99999974E-6 : f32
    %20 = vector.broadcast %cst_12 : f32 to vector<16x1xf32>
    %21 = arith.addf %18, %20 : vector<16x1xf32>
    %22 = math.rsqrt %21 : vector<16x1xf32>
    %23 = arith.mulf %19, %22 : vector<16x1xf32>
    %c0_13 = arith.constant 0 : index
    %c0_14 = arith.constant 0 : index
    %24 = vector.load %arg5[%c0_13, %c0_14] : memref<16x1xf32, #tpu.memory_space<vmem>>, vector<16x1xf32>
    %25 = arith.mulf %9, %23 : vector<16x1xf32>
    %26 = arith.subf %24, %25 : vector<16x1xf32>
    %27 = vector.broadcast %23 : vector<16x1xf32> to vector<16x512xf32>
    %28 = arith.mulf %5, %27 : vector<16x512xf32>
    %29 = vector.broadcast %26 : vector<16x1xf32> to vector<16x512xf32>
    %30 = arith.addf %28, %29 : vector<16x512xf32>
    %cst_15 = arith.constant 0.000000e+00 : f32
    %31 = vector.broadcast %cst_15 : f32 to vector<16x512xf32>
    %32 = arith.cmpf oge, %30, %31 : vector<16x512xf32>
    %cst_16 = arith.constant 2.000000e-01 : f32
    %33 = vector.broadcast %cst_16 : f32 to vector<16x512xf32>
    %34 = arith.mulf %33, %30 : vector<16x512xf32>
    %35 = arith.select %32, %30, %34 : vector<16x512xi1>, vector<16x512xf32>
    %c0_17 = arith.constant 0 : index
    %c0_18 = arith.constant 0 : index
    %36 = vector.load %arg6[%c0_17, %c0_18] : memref<16x512xf32, #tpu.memory_space<vmem>>, vector<16x512xf32>
    tpu.vector_store %arg6[%c0_17, %c0_18], %35 {strides = array<i32>} : memref<16x512xf32, #tpu.memory_space<vmem>>, vector<16x512xf32>,
    return
  }
  func.func @transform_0(%arg0: i32) -> (i32, i32) {
    %c0_i32 = arith.constant 0 : i32
    %c0_i32_0 = arith.constant 0 : i32
    %c0_i32_1 = arith.constant 0 : i32
    return %c0_i32, %c0_i32_0 : i32, i32
  }
  func.func @transform_1(%arg0: i32) -> (i32, i32) {
    %c0_i32 = arith.constant 0 : i32
    %c0_i32_0 = arith.constant 0 : i32
    %c0_i32_1 = arith.constant 0 : i32
    return %c0_i32, %c0_i32_0 : i32, i32
  }
  func.func @transform_2(%arg0: i32) -> (i32, i32) {
    %c0_i32 = arith.constant 0 : i32
    %c0_i32_0 = arith.constant 0 : i32
    %c0_i32_1 = arith.constant 0 : i32
    return %c0_i32, %c0_i32_0 : i32, i32
  }
  func.func @transform_3(%arg0: i32) -> (i32, i32) {
    %c0_i32 = arith.constant 0 : i32
    %c0_i32_0 = arith.constant 0 : i32
    %c0_i32_1 = arith.constant 0 : i32
    return %c0_i32, %c0_i32_0 : i32, i32
  }
  func.func @transform_4(%arg0: i32) -> (i32, i32) {
    %c0_i32 = arith.constant 0 : i32
    %c0_i32_0 = arith.constant 0 : i32
    %c0_i32_1 = arith.constant 0 : i32
    return %c0_i32, %c0_i32_0 : i32, i32
  }
  func.func @transform_5(%arg0: i32) -> (i32, i32) {
    %c0_i32 = arith.constant 0 : i32
    %c0_i32_0 = arith.constant 0 : i32
    %c0_i32_1 = arith.constant 0 : i32
    return %c0_i32, %c0_i32_0 : i32, i32
  }
}

module attributes {stable_mosaic.version = 11 : i64} {
  func.func @_conv_bn_act_kernel(%arg0: i32, %arg1: memref<256x128xf32, #tpu.memory_space<vmem>>, %arg2: memref<32x256xf32, #tpu.memory_space<vmem>>, %arg3: memref<32x1xf32, #tpu.memory_space<vmem>>, %arg4: memref<32x1xf32, #tpu.memory_space<vmem>>, %arg5: memref<32x1xf32, #tpu.memory_space<vmem>>, %arg6: memref<32x128xf32, #tpu.memory_space<vmem>>) attributes {dimension_semantics = [#tpu.dimension_semantics<arbitrary>], iteration_bounds = array<i64: 1>, scalar_prefetch = 0 : i64, scratch_operands = 0 : i64, tpu.core_type = #tpu.core_type<tc>, window_params = [{pipeline_mode = #tpu.pipeline_mode<synchronous>, transform_indices = @transform_0, window_bounds = array<i64: 256, 128>}, {pipeline_mode = #tpu.pipeline_mode<synchronous>, transform_indices = @transform_1, window_bounds = array<i64: 32, 256>}, {pipeline_mode = #tpu.pipeline_mode<synchronous>, transform_indices = @transform_2, window_bounds = array<i64: 32, 1>}, {pipeline_mode = #tpu.pipeline_mode<synchronous>, transform_indices = @transform_3, window_bounds = array<i64: 32, 1>}, {pipeline_mode = #tpu.pipeline_mode<synchronous>, transform_indices = @transform_4, window_bounds = array<i64: 32, 1>}, {pipeline_mode = #tpu.pipeline_mode<synchronous>, transform_indices = @transform_5, window_bounds = array<i64: 32, 128>}]} {
    %c0 = arith.constant 0 : index
    %c0_0 = arith.constant 0 : index
    %0 = vector.load %arg2[%c0, %c0_0] : memref<32x256xf32, #tpu.memory_space<vmem>>, vector<32x256xf32>
    %c0_1 = arith.constant 0 : index
    %c0_2 = arith.constant 0 : index
    %1 = vector.load %arg1[%c0_1, %c0_2] : memref<256x128xf32, #tpu.memory_space<vmem>>, vector<256x128xf32>
    %cst = arith.constant dense<0.000000e+00> : vector<32x128xf32>
    %2 = tpu.matmul %0, %1, %cst {dimension_numbers = #tpu.dot_dimension_numbers<[1], [0], [0], [1], [0, 0, 1, 1], [], []>} : vector<32x256xf32>, vector<256x128xf32>, vector<32x128xf32> -> vector<32x128xf32>
    %c0_3 = arith.constant 0 : index
    %c0_4 = arith.constant 0 : index
    %3 = vector.load %arg3[%c0_3, %c0_4] : memref<32x1xf32, #tpu.memory_space<vmem>>, vector<32x1xf32>
    %4 = vector.broadcast %3 : vector<32x1xf32> to vector<32x128xf32>
    %5 = arith.addf %2, %4 : vector<32x128xf32>
    %cst_5 = arith.constant dense<0.000000e+00> : vector<32xf32>
    %6 = vector.multi_reduction <add>, %5, %cst_5 [1] : vector<32x128xf32> to vector<32xf32>
    %7 = vector.shape_cast %6 : vector<32xf32> to vector<32x1xf32>
    %cst_6 = arith.constant 7.812500e-03 : f32
    %8 = vector.broadcast %cst_6 : f32 to vector<32x1xf32>
    %9 = arith.mulf %7, %8 : vector<32x1xf32>
    %10 = arith.mulf %5, %5 : vector<32x128xf32>
    %cst_7 = arith.constant dense<0.000000e+00> : vector<32xf32>
    %11 = vector.multi_reduction <add>, %10, %cst_7 [1] : vector<32x128xf32> to vector<32xf32>
    %12 = vector.shape_cast %11 : vector<32xf32> to vector<32x1xf32>
    %cst_8 = arith.constant 7.812500e-03 : f32
    %13 = vector.broadcast %cst_8 : f32 to vector<32x1xf32>
    %14 = arith.mulf %12, %13 : vector<32x1xf32>
    %15 = arith.mulf %9, %9 : vector<32x1xf32>
    %16 = arith.subf %14, %15 : vector<32x1xf32>
    %cst_9 = arith.constant 0.000000e+00 : f32
    %17 = vector.broadcast %cst_9 : f32 to vector<32x1xf32>
    %18 = arith.maximumf %16, %17 : vector<32x1xf32>
    %c0_10 = arith.constant 0 : index
    %c0_11 = arith.constant 0 : index
    %19 = vector.load %arg4[%c0_10, %c0_11] : memref<32x1xf32, #tpu.memory_space<vmem>>, vector<32x1xf32>
    %cst_12 = arith.constant 9.99999974E-6 : f32
    %20 = vector.broadcast %cst_12 : f32 to vector<32x1xf32>
    %21 = arith.addf %18, %20 : vector<32x1xf32>
    %22 = math.rsqrt %21 : vector<32x1xf32>
    %23 = arith.mulf %19, %22 : vector<32x1xf32>
    %c0_13 = arith.constant 0 : index
    %c0_14 = arith.constant 0 : index
    %24 = vector.load %arg5[%c0_13, %c0_14] : memref<32x1xf32, #tpu.memory_space<vmem>>, vector<32x1xf32>
    %25 = arith.mulf %9, %23 : vector<32x1xf32>
    %26 = arith.subf %24, %25 : vector<32x1xf32>
    %27 = vector.broadcast %23 : vector<32x1xf32> to vector<32x128xf32>
    %28 = arith.mulf %5, %27 : vector<32x128xf32>
    %29 = vector.broadcast %26 : vector<32x1xf32> to vector<32x128xf32>
    %30 = arith.addf %28, %29 : vector<32x128xf32>
    %cst_15 = arith.constant 0.000000e+00 : f32
    %31 = vector.broadcast %cst_15 : f32 to vector<32x128xf32>
    %32 = arith.cmpf oge, %30, %31 : vector<32x128xf32>
    %cst_16 = arith.constant 2.000000e-01 : f32
    %33 = vector.broadcast %cst_16 : f32 to vector<32x128xf32>
    %34 = arith.mulf %33, %30 : vector<32x128xf32>
    %35 = arith.select %32, %30, %34 : vector<32x128xi1>, vector<32x128xf32>
    %c0_17 = arith.constant 0 : index
    %c0_18 = arith.constant 0 : index
    %36 = vector.load %arg6[%c0_17, %c0_18] : memref<32x128xf32, #tpu.memory_space<vmem>>, vector<32x128xf32>
    tpu.vector_store %arg6[%c0_17, %c0_18], %35 {strides = array<i32>} : memref<32x128xf32, #tpu.memory_space<vmem>>, vector<32x128xf32>,
    return
  }
  func.func @transform_0(%arg0: i32) -> (i32, i32) {
    %c0_i32 = arith.constant 0 : i32
    %c0_i32_0 = arith.constant 0 : i32
    %c0_i32_1 = arith.constant 0 : i32
    return %c0_i32, %c0_i32_0 : i32, i32
  }
  func.func @transform_1(%arg0: i32) -> (i32, i32) {
    %c0_i32 = arith.constant 0 : i32
    %c0_i32_0 = arith.constant 0 : i32
    %c0_i32_1 = arith.constant 0 : i32
    return %c0_i32, %c0_i32_0 : i32, i32
  }
  func.func @transform_2(%arg0: i32) -> (i32, i32) {
    %c0_i32 = arith.constant 0 : i32
    %c0_i32_0 = arith.constant 0 : i32
    %c0_i32_1 = arith.constant 0 : i32
    return %c0_i32, %c0_i32_0 : i32, i32
  }
  func.func @transform_3(%arg0: i32) -> (i32, i32) {
    %c0_i32 = arith.constant 0 : i32
    %c0_i32_0 = arith.constant 0 : i32
    %c0_i32_1 = arith.constant 0 : i32
    return %c0_i32, %c0_i32_0 : i32, i32
  }
  func.func @transform_4(%arg0: i32) -> (i32, i32) {
    %c0_i32 = arith.constant 0 : i32
    %c0_i32_0 = arith.constant 0 : i32
    %c0_i32_1 = arith.constant 0 : i32
    return %c0_i32, %c0_i32_0 : i32, i32
  }
  func.func @transform_5(%arg0: i32) -> (i32, i32) {
    %c0_i32 = arith.constant 0 : i32
    %c0_i32_0 = arith.constant 0 : i32
    %c0_i32_1 = arith.constant 0 : i32
    return %c0_i32, %c0_i32_0 : i32, i32
  }
}

module attributes {stable_mosaic.version = 11 : i64} {
  func.func @_conv_bn_act_kernel(%arg0: i32, %arg1: memref<512x32xf32, #tpu.memory_space<vmem>>, %arg2: memref<64x512xf32, #tpu.memory_space<vmem>>, %arg3: memref<64x1xf32, #tpu.memory_space<vmem>>, %arg4: memref<64x1xf32, #tpu.memory_space<vmem>>, %arg5: memref<64x1xf32, #tpu.memory_space<vmem>>, %arg6: memref<64x32xf32, #tpu.memory_space<vmem>>) attributes {dimension_semantics = [#tpu.dimension_semantics<arbitrary>], iteration_bounds = array<i64: 1>, scalar_prefetch = 0 : i64, scratch_operands = 0 : i64, tpu.core_type = #tpu.core_type<tc>, window_params = [{pipeline_mode = #tpu.pipeline_mode<synchronous>, transform_indices = @transform_0, window_bounds = array<i64: 512, 32>}, {pipeline_mode = #tpu.pipeline_mode<synchronous>, transform_indices = @transform_1, window_bounds = array<i64: 64, 512>}, {pipeline_mode = #tpu.pipeline_mode<synchronous>, transform_indices = @transform_2, window_bounds = array<i64: 64, 1>}, {pipeline_mode = #tpu.pipeline_mode<synchronous>, transform_indices = @transform_3, window_bounds = array<i64: 64, 1>}, {pipeline_mode = #tpu.pipeline_mode<synchronous>, transform_indices = @transform_4, window_bounds = array<i64: 64, 1>}, {pipeline_mode = #tpu.pipeline_mode<synchronous>, transform_indices = @transform_5, window_bounds = array<i64: 64, 32>}]} {
    %c0 = arith.constant 0 : index
    %c0_0 = arith.constant 0 : index
    %0 = vector.load %arg2[%c0, %c0_0] : memref<64x512xf32, #tpu.memory_space<vmem>>, vector<64x512xf32>
    %c0_1 = arith.constant 0 : index
    %c0_2 = arith.constant 0 : index
    %1 = vector.load %arg1[%c0_1, %c0_2] : memref<512x32xf32, #tpu.memory_space<vmem>>, vector<512x32xf32>
    %cst = arith.constant dense<0.000000e+00> : vector<64x32xf32>
    %2 = tpu.matmul %0, %1, %cst {dimension_numbers = #tpu.dot_dimension_numbers<[1], [0], [0], [1], [0, 0, 1, 1], [], []>} : vector<64x512xf32>, vector<512x32xf32>, vector<64x32xf32> -> vector<64x32xf32>
    %c0_3 = arith.constant 0 : index
    %c0_4 = arith.constant 0 : index
    %3 = vector.load %arg3[%c0_3, %c0_4] : memref<64x1xf32, #tpu.memory_space<vmem>>, vector<64x1xf32>
    %4 = vector.broadcast %3 : vector<64x1xf32> to vector<64x32xf32>
    %5 = arith.addf %2, %4 : vector<64x32xf32>
    %cst_5 = arith.constant dense<0.000000e+00> : vector<64xf32>
    %6 = vector.multi_reduction <add>, %5, %cst_5 [1] : vector<64x32xf32> to vector<64xf32>
    %7 = vector.shape_cast %6 : vector<64xf32> to vector<64x1xf32>
    %cst_6 = arith.constant 3.125000e-02 : f32
    %8 = vector.broadcast %cst_6 : f32 to vector<64x1xf32>
    %9 = arith.mulf %7, %8 : vector<64x1xf32>
    %10 = arith.mulf %5, %5 : vector<64x32xf32>
    %cst_7 = arith.constant dense<0.000000e+00> : vector<64xf32>
    %11 = vector.multi_reduction <add>, %10, %cst_7 [1] : vector<64x32xf32> to vector<64xf32>
    %12 = vector.shape_cast %11 : vector<64xf32> to vector<64x1xf32>
    %cst_8 = arith.constant 3.125000e-02 : f32
    %13 = vector.broadcast %cst_8 : f32 to vector<64x1xf32>
    %14 = arith.mulf %12, %13 : vector<64x1xf32>
    %15 = arith.mulf %9, %9 : vector<64x1xf32>
    %16 = arith.subf %14, %15 : vector<64x1xf32>
    %cst_9 = arith.constant 0.000000e+00 : f32
    %17 = vector.broadcast %cst_9 : f32 to vector<64x1xf32>
    %18 = arith.maximumf %16, %17 : vector<64x1xf32>
    %c0_10 = arith.constant 0 : index
    %c0_11 = arith.constant 0 : index
    %19 = vector.load %arg4[%c0_10, %c0_11] : memref<64x1xf32, #tpu.memory_space<vmem>>, vector<64x1xf32>
    %cst_12 = arith.constant 9.99999974E-6 : f32
    %20 = vector.broadcast %cst_12 : f32 to vector<64x1xf32>
    %21 = arith.addf %18, %20 : vector<64x1xf32>
    %22 = math.rsqrt %21 : vector<64x1xf32>
    %23 = arith.mulf %19, %22 : vector<64x1xf32>
    %c0_13 = arith.constant 0 : index
    %c0_14 = arith.constant 0 : index
    %24 = vector.load %arg5[%c0_13, %c0_14] : memref<64x1xf32, #tpu.memory_space<vmem>>, vector<64x1xf32>
    %25 = arith.mulf %9, %23 : vector<64x1xf32>
    %26 = arith.subf %24, %25 : vector<64x1xf32>
    %27 = vector.broadcast %23 : vector<64x1xf32> to vector<64x32xf32>
    %28 = arith.mulf %5, %27 : vector<64x32xf32>
    %29 = vector.broadcast %26 : vector<64x1xf32> to vector<64x32xf32>
    %30 = arith.addf %28, %29 : vector<64x32xf32>
    %cst_15 = arith.constant 0.000000e+00 : f32
    %31 = vector.broadcast %cst_15 : f32 to vector<64x32xf32>
    %32 = arith.cmpf oge, %30, %31 : vector<64x32xf32>
    %cst_16 = arith.constant 2.000000e-01 : f32
    %33 = vector.broadcast %cst_16 : f32 to vector<64x32xf32>
    %34 = arith.mulf %33, %30 : vector<64x32xf32>
    %35 = arith.select %32, %30, %34 : vector<64x32xi1>, vector<64x32xf32>
    %c0_17 = arith.constant 0 : index
    %c0_18 = arith.constant 0 : index
    %36 = vector.load %arg6[%c0_17, %c0_18] : memref<64x32xf32, #tpu.memory_space<vmem>>, vector<64x32xf32>
    tpu.vector_store %arg6[%c0_17, %c0_18], %35 {strides = array<i32>} : memref<64x32xf32, #tpu.memory_space<vmem>>, vector<64x32xf32>,
    return
  }
  func.func @transform_0(%arg0: i32) -> (i32, i32) {
    %c0_i32 = arith.constant 0 : i32
    %c0_i32_0 = arith.constant 0 : i32
    %c0_i32_1 = arith.constant 0 : i32
    return %c0_i32, %c0_i32_0 : i32, i32
  }
  func.func @transform_1(%arg0: i32) -> (i32, i32) {
    %c0_i32 = arith.constant 0 : i32
    %c0_i32_0 = arith.constant 0 : i32
    %c0_i32_1 = arith.constant 0 : i32
    return %c0_i32, %c0_i32_0 : i32, i32
  }
  func.func @transform_2(%arg0: i32) -> (i32, i32) {
    %c0_i32 = arith.constant 0 : i32
    %c0_i32_0 = arith.constant 0 : i32
    %c0_i32_1 = arith.constant 0 : i32
    return %c0_i32, %c0_i32_0 : i32, i32
  }
  func.func @transform_3(%arg0: i32) -> (i32, i32) {
    %c0_i32 = arith.constant 0 : i32
    %c0_i32_0 = arith.constant 0 : i32
    %c0_i32_1 = arith.constant 0 : i32
    return %c0_i32, %c0_i32_0 : i32, i32
  }
  func.func @transform_4(%arg0: i32) -> (i32, i32) {
    %c0_i32 = arith.constant 0 : i32
    %c0_i32_0 = arith.constant 0 : i32
    %c0_i32_1 = arith.constant 0 : i32
    return %c0_i32, %c0_i32_0 : i32, i32
  }
  func.func @transform_5(%arg0: i32) -> (i32, i32) {
    %c0_i32 = arith.constant 0 : i32
    %c0_i32_0 = arith.constant 0 : i32
    %c0_i32_1 = arith.constant 0 : i32
    return %c0_i32, %c0_i32_0 : i32, i32
  }
}

module attributes {stable_mosaic.version = 11 : i64} {
  func.func @_conv_bn_act_fc_kernel(%arg0: i32, %arg1: memref<576x32xf32, #tpu.memory_space<vmem>>, %arg2: memref<50x576xf32, #tpu.memory_space<vmem>>, %arg3: memref<50x1xf32, #tpu.memory_space<vmem>>, %arg4: memref<50x1xf32, #tpu.memory_space<vmem>>, %arg5: memref<50x1xf32, #tpu.memory_space<vmem>>, %arg6: memref<50x32xf32, #tpu.memory_space<vmem>>, %arg7: memref<32x2xf32, #tpu.memory_space<vmem>>, %arg8: memref<1x1xf32, #tpu.memory_space<vmem>>, %arg9: memref<1x2xf32, #tpu.memory_space<vmem>>) attributes {dimension_semantics = [#tpu.dimension_semantics<arbitrary>], iteration_bounds = array<i64: 1>, scalar_prefetch = 0 : i64, scratch_operands = 0 : i64, tpu.core_type = #tpu.core_type<tc>, window_params = [{pipeline_mode = #tpu.pipeline_mode<synchronous>, transform_indices = @transform_0, window_bounds = array<i64: 576, 32>}, {pipeline_mode = #tpu.pipeline_mode<synchronous>, transform_indices = @transform_1, window_bounds = array<i64: 50, 576>}, {pipeline_mode = #tpu.pipeline_mode<synchronous>, transform_indices = @transform_2, window_bounds = array<i64: 50, 1>}, {pipeline_mode = #tpu.pipeline_mode<synchronous>, transform_indices = @transform_3, window_bounds = array<i64: 50, 1>}, {pipeline_mode = #tpu.pipeline_mode<synchronous>, transform_indices = @transform_4, window_bounds = array<i64: 50, 1>}, {pipeline_mode = #tpu.pipeline_mode<synchronous>, transform_indices = @transform_5, window_bounds = array<i64: 50, 32>}, {pipeline_mode = #tpu.pipeline_mode<synchronous>, transform_indices = @transform_6, window_bounds = array<i64: 32, 2>}, {pipeline_mode = #tpu.pipeline_mode<synchronous>, transform_indices = @transform_7, window_bounds = array<i64: 1, 1>}, {pipeline_mode = #tpu.pipeline_mode<synchronous>, transform_indices = @transform_8, window_bounds = array<i64: 1, 2>}]} {
    %c0 = arith.constant 0 : index
    %c0_0 = arith.constant 0 : index
    %0 = vector.load %arg2[%c0, %c0_0] : memref<50x576xf32, #tpu.memory_space<vmem>>, vector<50x576xf32>
    %c0_1 = arith.constant 0 : index
    %c0_2 = arith.constant 0 : index
    %1 = vector.load %arg1[%c0_1, %c0_2] : memref<576x32xf32, #tpu.memory_space<vmem>>, vector<576x32xf32>
    %cst = arith.constant dense<0.000000e+00> : vector<50x32xf32>
    %2 = tpu.matmul %0, %1, %cst {dimension_numbers = #tpu.dot_dimension_numbers<[1], [0], [0], [1], [0, 0, 1, 1], [], []>} : vector<50x576xf32>, vector<576x32xf32>, vector<50x32xf32> -> vector<50x32xf32>
    %c0_3 = arith.constant 0 : index
    %c0_4 = arith.constant 0 : index
    %3 = vector.load %arg3[%c0_3, %c0_4] : memref<50x1xf32, #tpu.memory_space<vmem>>, vector<50x1xf32>
    %4 = vector.broadcast %3 : vector<50x1xf32> to vector<50x32xf32>
    %5 = arith.addf %2, %4 : vector<50x32xf32>
    %cst_5 = arith.constant dense<0.000000e+00> : vector<50xf32>
    %6 = vector.multi_reduction <add>, %5, %cst_5 [1] : vector<50x32xf32> to vector<50xf32>
    %7 = vector.shape_cast %6 : vector<50xf32> to vector<50x1xf32>
    %cst_6 = arith.constant 3.125000e-02 : f32
    %8 = vector.broadcast %cst_6 : f32 to vector<50x1xf32>
    %9 = arith.mulf %7, %8 : vector<50x1xf32>
    %10 = arith.mulf %5, %5 : vector<50x32xf32>
    %cst_7 = arith.constant dense<0.000000e+00> : vector<50xf32>
    %11 = vector.multi_reduction <add>, %10, %cst_7 [1] : vector<50x32xf32> to vector<50xf32>
    %12 = vector.shape_cast %11 : vector<50xf32> to vector<50x1xf32>
    %cst_8 = arith.constant 3.125000e-02 : f32
    %13 = vector.broadcast %cst_8 : f32 to vector<50x1xf32>
    %14 = arith.mulf %12, %13 : vector<50x1xf32>
    %15 = arith.mulf %9, %9 : vector<50x1xf32>
    %16 = arith.subf %14, %15 : vector<50x1xf32>
    %cst_9 = arith.constant 0.000000e+00 : f32
    %17 = vector.broadcast %cst_9 : f32 to vector<50x1xf32>
    %18 = arith.maximumf %16, %17 : vector<50x1xf32>
    %c0_10 = arith.constant 0 : index
    %c0_11 = arith.constant 0 : index
    %19 = vector.load %arg4[%c0_10, %c0_11] : memref<50x1xf32, #tpu.memory_space<vmem>>, vector<50x1xf32>
    %cst_12 = arith.constant 9.99999974E-6 : f32
    %20 = vector.broadcast %cst_12 : f32 to vector<50x1xf32>
    %21 = arith.addf %18, %20 : vector<50x1xf32>
    %22 = math.rsqrt %21 : vector<50x1xf32>
    %23 = arith.mulf %19, %22 : vector<50x1xf32>
    %c0_13 = arith.constant 0 : index
    %c0_14 = arith.constant 0 : index
    %24 = vector.load %arg5[%c0_13, %c0_14] : memref<50x1xf32, #tpu.memory_space<vmem>>, vector<50x1xf32>
    %25 = arith.mulf %9, %23 : vector<50x1xf32>
    %26 = arith.subf %24, %25 : vector<50x1xf32>
    %27 = vector.broadcast %23 : vector<50x1xf32> to vector<50x32xf32>
    %28 = arith.mulf %5, %27 : vector<50x32xf32>
    %29 = vector.broadcast %26 : vector<50x1xf32> to vector<50x32xf32>
    %30 = arith.addf %28, %29 : vector<50x32xf32>
    %cst_15 = arith.constant 0.000000e+00 : f32
    %31 = vector.broadcast %cst_15 : f32 to vector<50x32xf32>
    %32 = arith.cmpf oge, %30, %31 : vector<50x32xf32>
    %cst_16 = arith.constant 2.000000e-01 : f32
    %33 = vector.broadcast %cst_16 : f32 to vector<50x32xf32>
    %34 = arith.mulf %33, %30 : vector<50x32xf32>
    %35 = arith.select %32, %30, %34 : vector<50x32xi1>, vector<50x32xf32>
    %c0_17 = arith.constant 0 : index
    %c0_18 = arith.constant 0 : index
    %36 = vector.load %arg6[%c0_17, %c0_18] : memref<50x32xf32, #tpu.memory_space<vmem>>, vector<50x32xf32>
    %37 = arith.mulf %35, %36 : vector<50x32xf32>
    %cst_19 = arith.constant dense<0.000000e+00> : vector<32xf32>
    %38 = vector.multi_reduction <add>, %37, %cst_19 [0] : vector<50x32xf32> to vector<32xf32>
    %39 = vector.shape_cast %38 : vector<32xf32> to vector<1x32xf32>
    %c0_20 = arith.constant 0 : index
    %c0_21 = arith.constant 0 : index
    %40 = vector.load %arg7[%c0_20, %c0_21] : memref<32x2xf32, #tpu.memory_space<vmem>>, vector<32x2xf32>
    %cst_22 = arith.constant dense<0.000000e+00> : vector<1x2xf32>
    %41 = tpu.matmul %39, %40, %cst_22 {dimension_numbers = #tpu.dot_dimension_numbers<[1], [0], [0], [1], [0, 0, 1, 1], [], []>} : vector<1x32xf32>, vector<32x2xf32>, vector<1x2xf32> -> vector<1x2xf32>
    %c0_23 = arith.constant 0 : index
    %c0_24 = arith.constant 0 : index
    %42 = vector.load %arg8[%c0_23, %c0_24] : memref<1x1xf32, #tpu.memory_space<vmem>>, vector<1x1xf32>
    %43 = vector.broadcast %42 : vector<1x1xf32> to vector<1x2xf32>
    %44 = arith.addf %41, %43 : vector<1x2xf32>
    %c0_25 = arith.constant 0 : index
    %c0_26 = arith.constant 0 : index
    %45 = vector.load %arg9[%c0_25, %c0_26] : memref<1x2xf32, #tpu.memory_space<vmem>>, vector<1x2xf32>
    tpu.vector_store %arg9[%c0_25, %c0_26], %44 {strides = array<i32>} : memref<1x2xf32, #tpu.memory_space<vmem>>, vector<1x2xf32>,
    return
  }
  func.func @transform_0(%arg0: i32) -> (i32, i32) {
    %c0_i32 = arith.constant 0 : i32
    %c0_i32_0 = arith.constant 0 : i32
    %c0_i32_1 = arith.constant 0 : i32
    return %c0_i32, %c0_i32_0 : i32, i32
  }
  func.func @transform_1(%arg0: i32) -> (i32, i32) {
    %c0_i32 = arith.constant 0 : i32
    %c0_i32_0 = arith.constant 0 : i32
    %c0_i32_1 = arith.constant 0 : i32
    return %c0_i32, %c0_i32_0 : i32, i32
  }
  func.func @transform_2(%arg0: i32) -> (i32, i32) {
    %c0_i32 = arith.constant 0 : i32
    %c0_i32_0 = arith.constant 0 : i32
    %c0_i32_1 = arith.constant 0 : i32
    return %c0_i32, %c0_i32_0 : i32, i32
  }
  func.func @transform_3(%arg0: i32) -> (i32, i32) {
    %c0_i32 = arith.constant 0 : i32
    %c0_i32_0 = arith.constant 0 : i32
    %c0_i32_1 = arith.constant 0 : i32
    return %c0_i32, %c0_i32_0 : i32, i32
  }
  func.func @transform_4(%arg0: i32) -> (i32, i32) {
    %c0_i32 = arith.constant 0 : i32
    %c0_i32_0 = arith.constant 0 : i32
    %c0_i32_1 = arith.constant 0 : i32
    return %c0_i32, %c0_i32_0 : i32, i32
  }
  func.func @transform_5(%arg0: i32) -> (i32, i32) {
    %c0_i32 = arith.constant 0 : i32
    %c0_i32_0 = arith.constant 0 : i32
    %c0_i32_1 = arith.constant 0 : i32
    return %c0_i32, %c0_i32_0 : i32, i32
  }
  func.func @transform_6(%arg0: i32) -> (i32, i32) {
    %c0_i32 = arith.constant 0 : i32
    %c0_i32_0 = arith.constant 0 : i32
    %c0_i32_1 = arith.constant 0 : i32
    return %c0_i32, %c0_i32_0 : i32, i32
  }
  func.func @transform_7(%arg0: i32) -> (i32, i32) {
    %c0_i32 = arith.constant 0 : i32
    %c0_i32_0 = arith.constant 0 : i32
    %c0_i32_1 = arith.constant 0 : i32
    return %c0_i32, %c0_i32_0 : i32, i32
  }
  func.func @transform_8(%arg0: i32) -> (i32, i32) {
    %c0_i32 = arith.constant 0 : i32
    %c0_i32_0 = arith.constant 0 : i32
    %c0_i32_1 = arith.constant 0 : i32
    return %c0_i32, %c0_i32_0 : i32, i32
  }
}

</mosaic_0001>

<llo_original>
// kernel: model_b_periodic_forward.6
$region0: #{model_b_periodic_forward.6}
  #allocation0 [shape = 'u32[]', space=smem, size = 0x4, offset = 0x4, fixed_abs, tag = 'smem constant byte address 0x4 - core index']
  #allocation1 [shape = 'u32[144,128]{1,0:T(1,128)}', space=vmem, size = 0x12000, scoped, tag = 'internal scratch']
  %s0 = inlined_call_operand.vmem [shape: f32[16,8192], index: 0, kind: input, shape index: {}]
  %s1 = inlined_call_operand.vmem [shape: f32[4,16], index: 1, kind: input, shape index: {}]
  %s2 = inlined_call_operand.vmem [shape: f32[4,1], index: 2, kind: input, shape index: {}]
  %s3 = inlined_call_operand.vmem [shape: f32[4,8192], index: 3, kind: output, shape index: {}]
  %s4 = sld [smem:[#allocation0]]
  $region68: #{model_b_periodic_forward.6} parent=0
    _
  %s6 = ssub.s32 1, %s4
  %s7 = scalar_select 0, %s6, %s4
  $region1: #{model_b_periodic_forward.6} parent=0
    #allocation2 [shape = 'u8[262144]{0}', space=vmem, size = 0x40000, scoped, tag = 'input window, operand 0']
    loop: start=0, step=1, limit=6
    $region2: #{model_b_periodic_forward.6} parent=1 // loop_pre_header
      _
    $region3: #{model_b_periodic_forward.6} parent=1 // loop_header
      %s9 = sphi 0, %s13
      %p10 = scmp.ge.s32.totalorder %s9, 6
      %s19 = sphi 0, %s21
      %s22 = sphi 0, %s19
      %s23 = sphi 0, %s22
      %s39 = sphi 0, %s23
      %s43 = sphi 0, %s43
      %s45 = sphi 0, %s43
      %s46 = sphi 0, %s45
      %s60 = sphi 0, %s46
      %s64 = sphi 0, %s64
      %s66 = sphi 0, %s64
      %s67 = sphi 0, %s66
      %s81 = sphi 0, %s67
      %s87 = sphi 0, %s89
      %s90 = sphi 0, %s87
      %s91 = sphi 0, %s90
      %s107 = sphi 0, %s91
    $region4: #{model_b_periodic_forward.6} parent=1 // loop_header_branch
      %12 = sbr.rel (%p10) target = $region8
    $region5: #{model_b_periodic_forward.6} parent=1 // loop_body
      %s14 = ssub.s32 %s9, 1
      %s15 = ssub.s32 %s9, 2
      %s16 = sadd.s32 %s9, 1
      %s17 = ssub.s32 %s9, %s16
      %p18 = scmp.eq.s32.totalorder %s17, 0
      %s20 = sadd.s32 %s19, 1
      %s21 = scalar_select %p18, %s19, %s20
      %p24 = pneg %p18
      %p25 = scmp.eq.s32.totalorder %s9, 3
      %p26 = por %p24, %p25
      %p27 = scmp.ne.s32.totalorder %s19, %s22
      %p28 = scmp.eq.s32.totalorder %s9, 0
      %p29 = por %p27, %p28
      %p30 = scmp.ne.s32.totalorder %s19, %s22
      %p31 = scmp.eq.s32.totalorder %s14, 3
      %p32 = por %p30, %p31
      %p33 = scmp.ne.s32.totalorder %s22, %s23
      %p34 = scmp.eq.s32.totalorder %s14, 0
      %p35 = por %p33, %p34
      %p36 = scmp.ne.s32.totalorder %s22, %s23
      %p37 = scmp.eq.s32.totalorder %s15, 3
      %p38 = por %p36, %p37
      %p40 = scmp.ne.s32.totalorder %s23, %s39
      %p41 = scmp.eq.s32.totalorder %s15, 0
      %p42 = por %p40, %p41
      %s44 = sadd.s32 %s43, 1
      %p47 = scmp.eq.s32.totalorder %s9, 3
      %p48 = scmp.ne.s32.totalorder %s43, %s45
      %p49 = scmp.eq.s32.totalorder %s9, 0
      %p50 = por %p48, %p49
      %p51 = scmp.ne.s32.totalorder %s43, %s45
      %p52 = scmp.eq.s32.totalorder %s14, 3
      %p53 = por %p51, %p52
      %p54 = scmp.ne.s32.totalorder %s45, %s46
      %p55 = scmp.eq.s32.totalorder %s14, 0
      %p56 = por %p54, %p55
      %p57 = scmp.ne.s32.totalorder %s45, %s46
      %p58 = scmp.eq.s32.totalorder %s15, 3
      %p59 = por %p57, %p58
      %p61 = scmp.ne.s32.totalorder %s46, %s60
      %p62 = scmp.eq.s32.totalorder %s15, 0
      %p63 = por %p61, %p62
      %s65 = sadd.s32 %s64, 1
      %p68 = scmp.eq.s32.totalorder %s9, 3
      %p69 = scmp.ne.s32.totalorder %s64, %s66
      %p70 = scmp.eq.s32.totalorder %s9, 0
      %p71 = por %p69, %p70
      %p72 = scmp.ne.s32.totalorder %s64, %s66
      %p73 = scmp.eq.s32.totalorder %s14, 3
      %p74 = por %p72, %p73
      %p75 = scmp.ne.s32.totalorder %s66, %s67
      %p76 = scmp.eq.s32.totalorder %s14, 0
      %p77 = por %p75, %p76
      %p78 = scmp.ne.s32.totalorder %s66, %s67
      %p79 = scmp.eq.s32.totalorder %s15, 3
      %p80 = por %p78, %p79
      %p82 = scmp.ne.s32.totalorder %s67, %s81
      %p83 = scmp.eq.s32.totalorder %s15, 0
      %p84 = por %p82, %p83
      %s85 = ssub.s32 %s9, %s16
      %p86 = scmp.eq.s32.totalorder %s85, 0
      %s88 = sadd.s32 %s87, 1
      %s89 = scalar_select %p86, %s87, %s88
      %p92 = pneg %p86
      %p93 = scmp.eq.s32.totalorder %s9, 3
      %p94 = por %p92, %p93
      %p95 = scmp.ne.s32.totalorder %s87, %s90
      %p96 = scmp.eq.s32.totalorder %s9, 0
      %p97 = por %p95, %p96
      %p98 = scmp.ne.s32.totalorder %s87, %s90
      %p99 = scmp.eq.s32.totalorder %s14, 3
      %p100 = por %p98, %p99
      %p101 = scmp.ne.s32.totalorder %s90, %s91
      %p102 = scmp.eq.s32.totalorder %s14, 0
      %p103 = por %p101, %p102
      %p104 = scmp.ne.s32.totalorder %s90, %s91
      %p105 = scmp.eq.s32.totalorder %s15, 3
      %p106 = por %p104, %p105
      %p108 = scmp.ne.s32.totalorder %s91, %s107
      %p109 = scmp.eq.s32.totalorder %s15, 0
      %p110 = por %p108, %p109
      %p111 = scmp.le.s32.totalorder 1, %s9
      %p112 = scmp.lt.s32.totalorder %s9, 5
      %p113 = pnand %p111, %p112
      %p114 = pneg %p113
      // Predicated region
      $region9: #{model_b_periodic_forward.6} parent=5 // pred_check
        _
      $region10: #{model_b_periodic_forward.6} parent=5 // pred_check_branch
        %116 = sbr.rel (%p113) target = $region12
      $region11: #{model_b_periodic_forward.6} parent=5 // pred_region
        %s117 = ssub.s32 %s9, 1
        // Predicated region
        $region13: #{model_b_periodic_forward.6} parent=11 // pred_check
          %p118 = pneg %p56
        $region14: #{model_b_periodic_forward.6} parent=11 // pred_check_branch
          %120 = sbr.rel (%p118) target = $region16
        $region15: #{model_b_periodic_forward.6} parent=11 // pred_region
          _
        $region16: #{model_b_periodic_forward.6} parent=11 // pred_fallthru
          _
        // Predicated region
        $region17: #{model_b_periodic_forward.6} parent=11 // pred_check
          %p121 = pneg %p77
        $region18: #{model_b_periodic_forward.6} parent=11 // pred_check_branch
          %123 = sbr.rel (%p121) target = $region20
        $region19: #{model_b_periodic_forward.6} parent=11 // pred_region
          _
        $region20: #{model_b_periodic_forward.6} parent=11 // pred_fallthru
          _
      $region12: #{model_b_periodic_forward.6} parent=5 // pred_fallthru
        _
      %p124 = scmp.lt.s32.totalorder %s9, 4
      // Predicated region
      $region21: #{model_b_periodic_forward.6} parent=5 // pred_check
        %p125 = pneg %p124
      $region22: #{model_b_periodic_forward.6} parent=5 // pred_check_branch
        %127 = sbr.rel (%p125) target = $region24
      $region23: #{model_b_periodic_forward.6} parent=5 // pred_region
        // Predicated region
        $region25: #{model_b_periodic_forward.6} parent=23 // pred_check
          %p128 = pneg %p29
        $region26: #{model_b_periodic_forward.6} parent=23 // pred_check_branch
          %130 = sbr.rel (%p128) target = $region28
        $region27: #{model_b_periodic_forward.6} parent=23 // pred_region
          %s131 = sand.u32 %s19, 1
          %s132 = sand.u32 %s19, 1
          %s133 = smul.addr %s132, 256
          %s134 = scalar_lea.vmem [#allocation2], %s133
          %s135 = smul.u32 16, %s9
          %s136 = smul.addr %s135, 8
          %s137 = scalar_lea.vmem %s0, %s136
          // Predicated region
          $region29: #{model_b_periodic_forward.6} parent=27 // pred_check
            _
          $region30: #{model_b_periodic_forward.6} parent=27 // pred_check_branch
            %139 = sbr.rel (0) target = $region32
          $region31: #{model_b_periodic_forward.6} parent=27 // pred_region
            // Predicated region
            $region33: #{model_b_periodic_forward.6} parent=31 // pred_check
              _
            $region34: #{model_b_periodic_forward.6} parent=31 // pred_check_branch
              %141 = sbr.rel (0) target = $region36
            $region35: #{model_b_periodic_forward.6} parent=31 // pred_region
              loop: start=0, step=1, limit=1
              $region37: #{model_b_periodic_forward.6} parent=35 // loop_pre_header
                _
              $region38: #{model_b_periodic_forward.6} parent=35 // loop_header
                %s143 = sphi 0, %s147
                %p144 = scmp.ge.s32.totalorder %s143, 1
                %s148 = sphi %s137, %s137
                %s149 = sphi %s134, %s134
              $region39: #{model_b_periodic_forward.6} parent=35 // loop_header_branch
                %146 = sbr.rel (%p144) target = $region43
              $region40: #{model_b_periodic_forward.6} parent=35 // loop_body
                %v150 = vld [vmem:[%s148] sm:$0xff]
                %151 = vst [vmem:[%s149] sm:$0xff] %v150
                %v152 = vld [vmem:[%s148 + $0x8] sm:$0xff]
                %153 = vst [vmem:[%s149 + $0x8] sm:$0xff] %v152
                %v154 = vld [vmem:[%s148 + $0x10] sm:$0xff]
                %155 = vst [vmem:[%s149 + $0x10] sm:$0xff] %v154
                %v156 = vld [vmem:[%s148 + $0x18] sm:$0xff]
                %157 = vst [vmem:[%s149 + $0x18] sm:$0xff] %v156
                %v158 = vld [vmem:[%s148 + $0x20] sm:$0xff]
                %159 = vst [vmem:[%s149 + $0x20] sm:$0xff] %v158
                %v160 = vld [vmem:[%s148 + $0x28] sm:$0xff]
                %161 = vst [vmem:[%s149 + $0x28] sm:$0xff] %v160
                %v162 = vld [vmem:[%s148 + $0x30] sm:$0xff]
                %163 = vst [vmem:[%s149 + $0x30] sm:$0xff] %v162
                %v164 = vld [vmem:[%s148 + $0x38] sm:$0xff]
                %165 = vst [vmem:[%s149 + $0x38] sm:$0xff] %v164
                %v166 = vld [vmem:[%s148 + $0x40] sm:$0xff]
                %167 = vst [vmem:[%s149 + $0x40] sm:$0xff] %v166
                %v168 = vld [vmem:[%s148 + $0x48] sm:$0xff]
                %169 = vst [vmem:[%s149 + $0x48] sm:$0xff] %v168
                %v170 = vld [vmem:[%s148 + $0x50] sm:$0xff]
                %171 = vst [vmem:[%s149 + $0x50] sm:$0xff] %v170
                %v172 = vld [vmem:[%s148 + $0x58] sm:$0xff]
                %173 = vst [vmem:[%s149 + $0x58] sm:$0xff] %v172
                %v174 = vld [vmem:[%s148 + $0x60] sm:$0xff]
                %175 = vst [vmem:[%s149 + $0x60] sm:$0xff] %v174
                %v176 = vld [vmem:[%s148 + $0x68] sm:$0xff]
                %177 = vst [vmem:[%s149 + $0x68] sm:$0xff] %v176
                %v178 = vld [vmem:[%s148 + $0x70] sm:$0xff]
                %179 = vst [vmem:[%s149 + $0x70] sm:$0xff] %v178
                %v180 = vld [vmem:[%s148 + $0x78] sm:$0xff]
                %181 = vst [vmem:[%s149 + $0x78] sm:$0xff] %v180
                %v182 = vld [vmem:[%s148 + $0x200] sm:$0xff]
                %183 = vst [vmem:[%s149 + $0x80] sm:$0xff] %v182
                %v184 = vld [vmem:[%s148 + $0x208] sm:$0xff]
                %185 = vst [vmem:[%s149 + $0x88] sm:$0xff] %v184
                %v186 = vld [vmem:[%s148 + $0x210] sm:$0xff]
                %187 = vst [vmem:[%s149 + $0x90] sm:$0xff] %v186
                %v188 = vld [vmem:[%s148 + $0x218] sm:$0xff]
                %189 = vst [vmem:[%s149 + $0x98] sm:$0xff] %v188
                %v190 = vld [vmem:[%s148 + $0x220] sm:$0xff]
                %191 = vst [vmem:[%s149 + $0xa0] sm:$0xff] %v190
                %v192 = vld [vmem:[%s148 + $0x228] sm:$0xff]
                %193 = vst [vmem:[%s149 + $0xa8] sm:$0xff] %v192
                %v194 = vld [vmem:[%s148 + $0x230] sm:$0xff]
                %195 = vst [vmem:[%s149 + $0xb0] sm:$0xff] %v194
                %v196 = vld [vmem:[%s148 + $0x238] sm:$0xff]
                %197 = vst [vmem:[%s149 + $0xb8] sm:$0xff] %v196
                %v198 = vld [vmem:[%s148 + $0x240] sm:$0xff]
                %199 = vst [vmem:[%s149 + $0xc0] sm:$0xff] %v198
                %v200 = vld [vmem:[%s148 + $0x248] sm:$0xff]
                %201 = vst [vmem:[%s149 + $0xc8] sm:$0xff] %v200
                %v202 = vld [vmem:[%s148 + $0x250] sm:$0xff]
                %203 = vst [vmem:[%s149 + $0xd0] sm:$0xff] %v202
                %v204 = vld [vmem:[%s148 + $0x258] sm:$0xff]
                %205 = vst [vmem:[%s149 + $0xd8] sm:$0xff] %v204
                %v206 = vld [vmem:[%s148 + $0x260] sm:$0xff]
                %207 = vst [vmem:[%s149 + $0xe0] sm:$0xff] %v206
                %v208 = vld [vmem:[%s148 + $0x268] sm:$0xff]
                %209 = vst [vmem:[%s149 + $0xe8] sm:$0xff] %v208
                %v210 = vld [vmem:[%s148 + $0x270] sm:$0xff]
                %211 = vst [vmem:[%s149 + $0xf0] sm:$0xff] %v210
                %v212 = vld [vmem:[%s148 + $0x278] sm:$0xff]
                %213 = vst [vmem:[%s149 + $0xf8] sm:$0xff] %v212
              $region41: #{model_b_periodic_forward.6} parent=35 // loop_footer
                %s147 = sadd.s32 1, %s143
              $region42: #{model_b_periodic_forward.6} parent=35 // loop_footer_branch
                %142 = sbr.rel target = $region38
              $region43: #{model_b_periodic_forward.6} parent=35 // loop_exit
                _
            $region36: #{model_b_periodic_forward.6} parent=31 // pred_fallthru
              _
            // Predicated region
            $region44: #{model_b_periodic_forward.6} parent=31 // pred_check
              _
            $region45: #{model_b_periodic_forward.6} parent=31 // pred_check_branch
              %215 = sbr.rel target = $region47
            $region46: #{model_b_periodic_forward.6} parent=31 // pred_region
              _
            $region47: #{model_b_periodic_forward.6} parent=31 // pred_fallthru
              _
          $region32: #{model_b_periodic_forward.6} parent=27 // pred_fallthru
            _
          %216 = vnop
        $region28: #{model_b_periodic_forward.6} parent=23 // pred_fallthru
          _
      $region24: #{model_b_periodic_forward.6} parent=5 // pred_fallthru
        _
      %p217 = scmp.le.s32.totalorder 1, %s9
      %p218 = scmp.lt.s32.totalorder %s9, 5
      %p219 = pnand %p217, %p218
      %p220 = pneg %p219
      // Predicated region
      $region48: #{model_b_periodic_forward.6} parent=5 // pred_check
        _
      $region49: #{model_b_periodic_forward.6} parent=5 // pred_check_branch
        %222 = sbr.rel (%p219) target = $region51
      $region50: #{model_b_periodic_forward.6} parent=5 // pred_region
        %s223 = ssub.s32 %s9, 1
        %s224 = sand.u32 %s22, 1
        %s225 = sand.u32 %s22, 1
        %s226 = smul.addr %s225, 256
        %s227 = scalar_lea.vmem [#allocation2], %s226
        // Predicated region
        $region52: #{model_b_periodic_forward.6} parent=50 // pred_check
          %p228 = pneg %p35
        $region53: #{model_b_periodic_forward.6} parent=50 // pred_check_branch
          %230 = sbr.rel (%p228) target = $region55
        $region54: #{model_b_periodic_forward.6} parent=50 // pred_region
          _
        $region55: #{model_b_periodic_forward.6} parent=50 // pred_fallthru
          _
        %s231 = sand.u32 %s22, 1
        %s232 = sand.u32 %s22, 1
        %s233 = smul.addr %s232, 256
        %s234 = scalar_lea.vmem [#allocation2], %s233
        %p235 = pneg %p35
        %p236 = pneg %p32
        %p237 = pneg %p56
        %p238 = pneg %p53
        %p239 = pneg %p77
        %p240 = pneg %p74
        %p241 = pneg %p103
        %p242 = pneg %p100
        %s243 = smul.u32 16, %s14
        %p244 = scmp.lt.s32.totalorder %s243, 63
        %s245 = scalar_select %p244, %s243, 63
        %s246 = smul.addr %s245, 4
        %s247 = scalar_lea.vmem %s3, %s246
        %s248 = smul.u32 16, %s14
        %s249 = smul.u32 16, %s14
        %p250 = scmp.lt.s32.totalorder %s249, 63
        %s251 = scalar_select %p250, %s249, 63
        %s252 = smul.addr %s251, 4
        %s253 = scalar_lea.vmem %s3, %s252
        %s254 = smul.u32 16, %s14
        %v255 = vld [vmem:[%s1] sm:$0xf]
        %v256 = vld [vmem:[%s227] sm:$0xff]
        %v257 = vld [vmem:[%s227 + $0x8] sm:$0xff]
        %v258 = vld [vmem:[%s227 + $0x10] sm:$0xff]
        %v259 = vld [vmem:[%s227 + $0x18] sm:$0xff]
        %v260 = vld [vmem:[%s227 + $0x20] sm:$0xff]
        %v261 = vld [vmem:[%s227 + $0x28] sm:$0xff]
        %v262 = vld [vmem:[%s227 + $0x30] sm:$0xff]
        %v263 = vld [vmem:[%s227 + $0x38] sm:$0xff]
        %v264 = vld [vmem:[%s227 + $0x40] sm:$0xff]
        %v265 = vld [vmem:[%s227 + $0x48] sm:$0xff]
        %v266 = vld [vmem:[%s227 + $0x50] sm:$0xff]
        %v267 = vld [vmem:[%s227 + $0x58] sm:$0xff]
        %v268 = vld [vmem:[%s227 + $0x60] sm:$0xff]
        %v269 = vld [vmem:[%s227 + $0x68] sm:$0xff]
        %v270 = vld [vmem:[%s227 + $0x70] sm:$0xff]
        %v271 = vld [vmem:[%s227 + $0x78] sm:$0xff]
        %v272 = vld [vmem:[%s227 + $0x80] sm:$0xff]
        %v273 = vld [vmem:[%s227 + $0x88] sm:$0xff]
        %v274 = vld [vmem:[%s227 + $0x90] sm:$0xff]
        %v275 = vld [vmem:[%s227 + $0x98] sm:$0xff]
        %v276 = vld [vmem:[%s227 + $0xa0] sm:$0xff]
        %v277 = vld [vmem:[%s227 + $0xa8] sm:$0xff]
        %v278 = vld [vmem:[%s227 + $0xb0] sm:$0xff]
        %v279 = vld [vmem:[%s227 + $0xb8] sm:$0xff]
        %v280 = vld [vmem:[%s227 + $0xc0] sm:$0xff]
        %v281 = vld [vmem:[%s227 + $0xc8] sm:$0xff]
        %v282 = vld [vmem:[%s227 + $0xd0] sm:$0xff]
        %v283 = vld [vmem:[%s227 + $0xd8] sm:$0xff]
        %v284 = vld [vmem:[%s227 + $0xe0] sm:$0xff]
        %v285 = vld [vmem:[%s227 + $0xe8] sm:$0xff]
        %v286 = vld [vmem:[%s227 + $0xf0] sm:$0xff]
        %v287 = vld [vmem:[%s227 + $0xf8] sm:$0xff]
        %v288 = vld [vmem:[%s2] sm:$0xf]
        %290 = vset.pattern.permute.xlu0 0
        %291 = vperm.xlu0 %290, %v288
        %v292 = vpop.permute.xlu0 %291
        %vm294 = vcmask 130048
        %v296 = vsel %vm294, %v255, 0
        %298 = vmatprep.subr.mxu0 0.0
        %299 = vmatpush1.msra.mxu0 0.0
        %300 = vmatprep.subr.mxu0 0.0
        %301 = vmatpush1.msra.mxu0 0.0
        %302 = vmatprep.subr.mxu0 0.0
        %303 = vmatpush1.msra.mxu0 0.0
        %304 = vmatprep.subr.mxu0 0.0
        %305 = vmatpush1.msra.mxu0 0.0
        %306 = vmatprep.subr.mxu0 0.0
        %307 = vmatpush1.msra.mxu0 0.0
        %308 = vmatprep.subr.mxu0 0.0
        %309 = vmatpush1.msra.mxu0 0.0
        %310 = vmatprep.subr.mxu0 0.0
        %311 = vmatpush1.msra.mxu0 0.0
        %312 = vmatprep.subr.mxu0 0.0
        %313 = vmatpush1.msra.mxu0 0.0
        %314 = vmatprep.subr.mxu0 0.0
        %315 = vmatpush1.msra.mxu0 0.0
        %316 = vmatprep.subr.mxu0 0.0
        %317 = vmatpush1.msra.mxu0 0.0
        %318 = vmatprep.subr.mxu0 0.0
        %319 = vmatpush1.msra.mxu0 0.0
        %320 = vmatprep.subr.mxu0 0.0
        %321 = vmatpush1.msra.mxu0 0.0
        %322 = vmatprep.subr.mxu0 0.0
        %323 = vmatpush1.msra.mxu0 0.0
        %324 = vmatprep.subr.mxu0 0.0
        %325 = vmatpush1.msra.mxu0 0.0
        %326 = vmatprep.subr.mxu0 %v273
        %327 = vmatpush1.msra.mxu0 %v272
        %328 = vmatprep.subr.mxu0 %v257
        %329 = vmatpush1.msra.mxu0 %v256
        %330 = vmatprep.subr.mxu0 0.0
        %331 = vmatpush2.msra.mxu0 0.0
        %332 = vmatprep.subr.mxu0 0.0
        %333 = vmatpush2.msra.mxu0 0.0
        %334 = vmatprep.subr.mxu0 0.0
        %335 = vmatpush2.msra.mxu0 0.0
        %336 = vmatprep.subr.mxu0 0.0
        %337 = vmatpush2.msra.mxu0 0.0
        %338 = vmatprep.subr.mxu0 0.0
        %339 = vmatpush2.msra.mxu0 0.0
        %340 = vmatprep.subr.mxu0 0.0
        %341 = vmatpush2.msra.mxu0 0.0
        %342 = vmatprep.subr.mxu0 0.0
        %343 = vmatpush2.msra.mxu0 0.0
        %344 = vmatprep.subr.mxu0 0.0
        %345 = vmatpush2.msra.mxu0 0.0
        %346 = vmatprep.subr.mxu0 0.0
        %347 = vmatpush2.msra.mxu0 0.0
        %348 = vmatprep.subr.mxu0 0.0
        %349 = vmatpush2.msra.mxu0 0.0
        %350 = vmatprep.subr.mxu0 0.0
        %351 = vmatpush2.msra.mxu0 0.0
        %352 = vmatprep.subr.mxu0 0.0
        %353 = vmatpush2.msra.mxu0 0.0
        %354 = vmatprep.subr.mxu0 0.0
        %355 = vmatpush2.msra.mxu0 0.0
        %356 = vmatprep.subr.mxu0 0.0
        %357 = vmatpush2.msra.mxu0 0.0
        %358 = vmatprep.subr.mxu0 0.0
        %359 = vmatpush2.msra.mxu0 0.0
        %360 = vmatprep.subr.mxu0 0.0
        %361 = vmatpush2.msra.mxu0 0.0
        %362 = vmatprep.mubr.f32.mxu0 0.0
        %363 = vmatmul.mubr.f32.gmra.mxu0 %v296
        %v364 = vpop.f32.mrf.mxu0
        %v365 = vadd.f32 %v292, %v364
        %v366 = vpop.f32.mrf.mxu0
        %v367 = vadd.f32 %v292, %v366
        %368 = vdwg.mxu0
        %369 = vmatprep.subr.mxu0 0.0
        %370 = vmatpush1.msra.mxu0 0.0
        %371 = vmatprep.subr.mxu0 0.0
        %372 = vmatpush1.msra.mxu0 0.0
        %373 = vmatprep.subr.mxu0 0.0
        %374 = vmatpush1.msra.mxu0 0.0
        %375 = vmatprep.subr.mxu0 0.0
        %376 = vmatpush1.msra.mxu0 0.0
        %377 = vmatprep.subr.mxu0 0.0
        %378 = vmatpush1.msra.mxu0 0.0
        %379 = vmatprep.subr.mxu0 0.0
        %380 = vmatpush1.msra.mxu0 0.0
        %381 = vmatprep.subr.mxu0 0.0
        %382 = vmatpush1.msra.mxu0 0.0
        %383 = vmatprep.subr.mxu0 0.0
        %384 = vmatpush1.msra.mxu0 0.0
        %385 = vmatprep.subr.mxu0 0.0
        %386 = vmatpush1.msra.mxu0 0.0
        %387 = vmatprep.subr.mxu0 0.0
        %388 = vmatpush1.msra.mxu0 0.0
        %389 = vmatprep.subr.mxu0 0.0
        %390 = vmatpush1.msra.mxu0 0.0
        %391 = vmatprep.subr.mxu0 0.0
        %392 = vmatpush1.msra.mxu0 0.0
        %393 = vmatprep.subr.mxu0 0.0
        %394 = vmatpush1.msra.mxu0 0.0
        %395 = vmatprep.subr.mxu0 0.0
        %396 = vmatpush1.msra.mxu0 0.0
        %397 = vmatprep.subr.mxu0 %v275
        %398 = vmatpush1.msra.mxu0 %v274
        %399 = vmatprep.subr.mxu0 %v259
        %400 = vmatpush1.msra.mxu0 %v258
        %401 = vmatprep.subr.mxu0 0.0
        %402 = vmatpush2.msra.mxu0 0.0
        %403 = vmatprep.subr.mxu0 0.0
        %404 = vmatpush2.msra.mxu0 0.0
        %405 = vmatprep.subr.mxu0 0.0
        %406 = vmatpush2.msra.mxu0 0.0
        %407 = vmatprep.subr.mxu0 0.0
        %408 = vmatpush2.msra.mxu0 0.0
        %409 = vmatprep.subr.mxu0 0.0
        %410 = vmatpush2.msra.mxu0 0.0
        %411 = vmatprep.subr.mxu0 0.0
        %412 = vmatpush2.msra.mxu0 0.0
        %413 = vmatprep.subr.mxu0 0.0
        %414 = vmatpush2.msra.mxu0 0.0
        %415 = vmatprep.subr.mxu0 0.0
        %416 = vmatpush2.msra.mxu0 0.0
        %417 = vmatprep.subr.mxu0 0.0
        %418 = vmatpush2.msra.mxu0 0.0
        %419 = vmatprep.subr.mxu0 0.0
        %420 = vmatpush2.msra.mxu0 0.0
        %421 = vmatprep.subr.mxu0 0.0
        %422 = vmatpush2.msra.mxu0 0.0
        %423 = vmatprep.subr.mxu0 0.0
        %424 = vmatpush2.msra.mxu0 0.0
        %425 = vmatprep.subr.mxu0 0.0
        %426 = vmatpush2.msra.mxu0 0.0
        %427 = vmatprep.subr.mxu0 0.0
        %428 = vmatpush2.msra.mxu0 0.0
        %429 = vmatprep.subr.mxu0 0.0
        %430 = vmatpush2.msra.mxu0 0.0
        %431 = vmatprep.subr.mxu0 0.0
        %432 = vmatpush2.msra.mxu0 0.0
        %433 = vmatprep.mubr.f32.mxu0 0.0
        %434 = vmatmul.mubr.f32.gmra.mxu0 %v296
        %v435 = vpop.f32.mrf.mxu0
        %v436 = vadd.f32 %v292, %v435
        %v437 = vpop.f32.mrf.mxu0
        %v438 = vadd.f32 %v292, %v437
        %439 = vdwg.mxu0
        %440 = vmatprep.subr.mxu0 0.0
        %441 = vmatpush1.msra.mxu0 0.0
        %442 = vmatprep.subr.mxu0 0.0
        %443 = vmatpush1.msra.mxu0 0.0
        %444 = vmatprep.subr.mxu0 0.0
        %445 = vmatpush1.msra.mxu0 0.0
        %446 = vmatprep.subr.mxu0 0.0
        %447 = vmatpush1.msra.mxu0 0.0
        %448 = vmatprep.subr.mxu0 0.0
        %449 = vmatpush1.msra.mxu0 0.0
        %450 = vmatprep.subr.mxu0 0.0
        %451 = vmatpush1.msra.mxu0 0.0
        %452 = vmatprep.subr.mxu0 0.0
        %453 = vmatpush1.msra.mxu0 0.0
        %454 = vmatprep.subr.mxu0 0.0
        %455 = vmatpush1.msra.mxu0 0.0
        %456 = vmatprep.subr.mxu0 0.0
        %457 = vmatpush1.msra.mxu0 0.0
        %458 = vmatprep.subr.mxu0 0.0
        %459 = vmatpush1.msra.mxu0 0.0
        %460 = vmatprep.subr.mxu0 0.0
        %461 = vmatpush1.msra.mxu0 0.0
        %462 = vmatprep.subr.mxu0 0.0
        %463 = vmatpush1.msra.mxu0 0.0
        %464 = vmatprep.subr.mxu0 0.0
        %465 = vmatpush1.msra.mxu0 0.0
        %466 = vmatprep.subr.mxu0 0.0
        %467 = vmatpush1.msra.mxu0 0.0
        %468 = vmatprep.subr.mxu0 %v277
        %469 = vmatpush1.msra.mxu0 %v276
        %470 = vmatprep.subr.mxu0 %v261
        %471 = vmatpush1.msra.mxu0 %v260
        %472 = vmatprep.subr.mxu0 0.0
        %473 = vmatpush2.msra.mxu0 0.0
        %474 = vmatprep.subr.mxu0 0.0
        %475 = vmatpush2.msra.mxu0 0.0
        %476 = vmatprep.subr.mxu0 0.0
        %477 = vmatpush2.msra.mxu0 0.0
        %478 = vmatprep.subr.mxu0 0.0
        %479 = vmatpush2.msra.mxu0 0.0
        %480 = vmatprep.subr.mxu0 0.0
        %481 = vmatpush2.msra.mxu0 0.0
        %482 = vmatprep.subr.mxu0 0.0
        %483 = vmatpush2.msra.mxu0 0.0
        %484 = vmatprep.subr.mxu0 0.0
        %485 = vmatpush2.msra.mxu0 0.0
        %486 = vmatprep.subr.mxu0 0.0
        %487 = vmatpush2.msra.mxu0 0.0
        %488 = vmatprep.subr.mxu0 0.0
        %489 = vmatpush2.msra.mxu0 0.0
        %490 = vmatprep.subr.mxu0 0.0
        %491 = vmatpush2.msra.mxu0 0.0
        %492 = vmatprep.subr.mxu0 0.0
        %493 = vmatpush2.msra.mxu0 0.0
        %494 = vmatprep.subr.mxu0 0.0
        %495 = vmatpush2.msra.mxu0 0.0
        %496 = vmatprep.subr.mxu0 0.0
        %497 = vmatpush2.msra.mxu0 0.0
        %498 = vmatprep.subr.mxu0 0.0
        %499 = vmatpush2.msra.mxu0 0.0
        %500 = vmatprep.subr.mxu0 0.0
        %501 = vmatpush2.msra.mxu0 0.0
        %502 = vmatprep.subr.mxu0 0.0
        %503 = vmatpush2.msra.mxu0 0.0
        %504 = vmatprep.mubr.f32.mxu0 0.0
        %505 = vmatmul.mubr.f32.gmra.mxu0 %v296
        %v506 = vpop.f32.mrf.mxu0
        %v507 = vadd.f32 %v292, %v506
        %v508 = vpop.f32.mrf.mxu0
        %v509 = vadd.f32 %v292, %v508
        %510 = vdwg.mxu0
        %511 = vmatprep.subr.mxu0 0.0
        %512 = vmatpush1.msra.mxu0 0.0
        %513 = vmatprep.subr.mxu0 0.0
        %514 = vmatpush1.msra.mxu0 0.0
        %515 = vmatprep.subr.mxu0 0.0
        %516 = vmatpush1.msra.mxu0 0.0
        %517 = vmatprep.subr.mxu0 0.0
        %518 = vmatpush1.msra.mxu0 0.0
        %519 = vmatprep.subr.mxu0 0.0
        %520 = vmatpush1.msra.mxu0 0.0
        %521 = vmatprep.subr.mxu0 0.0
        %522 = vmatpush1.msra.mxu0 0.0
        %523 = vmatprep.subr.mxu0 0.0
        %524 = vmatpush1.msra.mxu0 0.0
        %525 = vmatprep.subr.mxu0 0.0
        %526 = vmatpush1.msra.mxu0 0.0
        %527 = vmatprep.subr.mxu0 0.0
        %528 = vmatpush1.msra.mxu0 0.0
        %529 = vmatprep.subr.mxu0 0.0
        %530 = vmatpush1.msra.mxu0 0.0
        %531 = vmatprep.subr.mxu0 0.0
        %532 = vmatpush1.msra.mxu0 0.0
        %533 = vmatprep.subr.mxu0 0.0
        %534 = vmatpush1.msra.mxu0 0.0
        %535 = vmatprep.subr.mxu0 0.0
        %536 = vmatpush1.msra.mxu0 0.0
        %537 = vmatprep.subr.mxu0 0.0
        %538 = vmatpush1.msra.mxu0 0.0
        %539 = vmatprep.subr.mxu0 %v279
        %540 = vmatpush1.msra.mxu0 %v278
        %541 = vmatprep.subr.mxu0 %v263
        %542 = vmatpush1.msra.mxu0 %v262
        %543 = vmatprep.subr.mxu0 0.0
        %544 = vmatpush2.msra.mxu0 0.0
        %545 = vmatprep.subr.mxu0 0.0
        %546 = vmatpush2.msra.mxu0 0.0
        %547 = vmatprep.subr.mxu0 0.0
        %548 = vmatpush2.msra.mxu0 0.0
        %549 = vmatprep.subr.mxu0 0.0
        %550 = vmatpush2.msra.mxu0 0.0
        %551 = vmatprep.subr.mxu0 0.0
        %552 = vmatpush2.msra.mxu0 0.0
        %553 = vmatprep.subr.mxu0 0.0
        %554 = vmatpush2.msra.mxu0 0.0
        %555 = vmatprep.subr.mxu0 0.0
        %556 = vmatpush2.msra.mxu0 0.0
        %557 = vmatprep.subr.mxu0 0.0
        %558 = vmatpush2.msra.mxu0 0.0
        %559 = vmatprep.subr.mxu0 0.0
        %560 = vmatpush2.msra.mxu0 0.0
        %561 = vmatprep.subr.mxu0 0.0
        %562 = vmatpush2.msra.mxu0 0.0
        %563 = vmatprep.subr.mxu0 0.0
        %564 = vmatpush2.msra.mxu0 0.0
        %565 = vmatprep.subr.mxu0 0.0
        %566 = vmatpush2.msra.mxu0 0.0
        %567 = vmatprep.subr.mxu0 0.0
        %568 = vmatpush2.msra.mxu0 0.0
        %569 = vmatprep.subr.mxu0 0.0
        %570 = vmatpush2.msra.mxu0 0.0
        %571 = vmatprep.subr.mxu0 0.0
        %572 = vmatpush2.msra.mxu0 0.0
        %573 = vmatprep.subr.mxu0 0.0
        %574 = vmatpush2.msra.mxu0 0.0
        %575 = vmatprep.mubr.f32.mxu0 0.0
        %576 = vmatmul.mubr.f32.gmra.mxu0 %v296
        %v577 = vpop.f32.mrf.mxu0
        %v578 = vadd.f32 %v292, %v577
        %v579 = vpop.f32.mrf.mxu0
        %v580 = vadd.f32 %v292, %v579
        %581 = vdwg.mxu0
        %582 = vmatprep.subr.mxu0 0.0
        %583 = vmatpush1.msra.mxu0 0.0
        %584 = vmatprep.subr.mxu0 0.0
        %585 = vmatpush1.msra.mxu0 0.0
        %586 = vmatprep.subr.mxu0 0.0
        %587 = vmatpush1.msra.mxu0 0.0
        %588 = vmatprep.subr.mxu0 0.0
        %589 = vmatpush1.msra.mxu0 0.0
        %590 = vmatprep.subr.mxu0 0.0
        %591 = vmatpush1.msra.mxu0 0.0
        %592 = vmatprep.subr.mxu0 0.0
        %593 = vmatpush1.msra.mxu0 0.0
        %594 = vmatprep.subr.mxu0 0.0
        %595 = vmatpush1.msra.mxu0 0.0
        %596 = vmatprep.subr.mxu0 0.0
        %597 = vmatpush1.msra.mxu0 0.0
        %598 = vmatprep.subr.mxu0 0.0
        %599 = vmatpush1.msra.mxu0 0.0
        %600 = vmatprep.subr.mxu0 0.0
        %601 = vmatpush1.msra.mxu0 0.0
        %602 = vmatprep.subr.mxu0 0.0
        %603 = vmatpush1.msra.mxu0 0.0
        %604 = vmatprep.subr.mxu0 0.0
        %605 = vmatpush1.msra.mxu0 0.0
        %606 = vmatprep.subr.mxu0 0.0
        %607 = vmatpush1.msra.mxu0 0.0
        %608 = vmatprep.subr.mxu0 0.0
        %609 = vmatpush1.msra.mxu0 0.0
        %610 = vmatprep.subr.mxu0 %v281
        %611 = vmatpush1.msra.mxu0 %v280
        %612 = vmatprep.subr.mxu0 %v265
        %613 = vmatpush1.msra.mxu0 %v264
        %614 = vmatprep.subr.mxu0 0.0
        %615 = vmatpush2.msra.mxu0 0.0
        %616 = vmatprep.subr.mxu0 0.0
        %617 = vmatpush2.msra.mxu0 0.0
        %618 = vmatprep.subr.mxu0 0.0
        %619 = vmatpush2.msra.mxu0 0.0
        %620 = vmatprep.subr.mxu0 0.0
        %621 = vmatpush2.msra.mxu0 0.0
        %622 = vmatprep.subr.mxu0 0.0
        %623 = vmatpush2.msra.mxu0 0.0
        %624 = vmatprep.subr.mxu0 0.0
        %625 = vmatpush2.msra.mxu0 0.0
        %626 = vmatprep.subr.mxu0 0.0
        %627 = vmatpush2.msra.mxu0 0.0
        %628 = vmatprep.subr.mxu0 0.0
        %629 = vmatpush2.msra.mxu0 0.0
        %630 = vmatprep.subr.mxu0 0.0
        %631 = vmatpush2.msra.mxu0 0.0
        %632 = vmatprep.subr.mxu0 0.0
        %633 = vmatpush2.msra.mxu0 0.0
        %634 = vmatprep.subr.mxu0 0.0
        %635 = vmatpush2.msra.mxu0 0.0
        %636 = vmatprep.subr.mxu0 0.0
        %637 = vmatpush2.msra.mxu0 0.0
        %638 = vmatprep.subr.mxu0 0.0
        %639 = vmatpush2.msra.mxu0 0.0
        %640 = vmatprep.subr.mxu0 0.0
        %641 = vmatpush2.msra.mxu0 0.0
        %642 = vmatprep.subr.mxu0 0.0
        %643 = vmatpush2.msra.mxu0 0.0
        %644 = vmatprep.subr.mxu0 0.0
        %645 = vmatpush2.msra.mxu0 0.0
        %646 = vmatprep.mubr.f32.mxu0 0.0
        %647 = vmatmul.mubr.f32.gmra.mxu0 %v296
        %v648 = vpop.f32.mrf.mxu0
        %v649 = vadd.f32 %v292, %v648
        %v650 = vpop.f32.mrf.mxu0
        %v651 = vadd.f32 %v292, %v650
        %652 = vdwg.mxu0
        %653 = vmatprep.subr.mxu0 0.0
        %654 = vmatpush1.msra.mxu0 0.0
        %655 = vmatprep.subr.mxu0 0.0
        %656 = vmatpush1.msra.mxu0 0.0
        %657 = vmatprep.subr.mxu0 0.0
        %658 = vmatpush1.msra.mxu0 0.0
        %659 = vmatprep.subr.mxu0 0.0
        %660 = vmatpush1.msra.mxu0 0.0
        %661 = vmatprep.subr.mxu0 0.0
        %662 = vmatpush1.msra.mxu0 0.0
        %663 = vmatprep.subr.mxu0 0.0
        %664 = vmatpush1.msra.mxu0 0.0
        %665 = vmatprep.subr.mxu0 0.0
        %666 = vmatpush1.msra.mxu0 0.0
        %667 = vmatprep.subr.mxu0 0.0
        %668 = vmatpush1.msra.mxu0 0.0
        %669 = vmatprep.subr.mxu0 0.0
        %670 = vmatpush1.msra.mxu0 0.0
        %671 = vmatprep.subr.mxu0 0.0
        %672 = vmatpush1.msra.mxu0 0.0
        %673 = vmatprep.subr.mxu0 0.0
        %674 = vmatpush1.msra.mxu0 0.0
        %675 = vmatprep.subr.mxu0 0.0
        %676 = vmatpush1.msra.mxu0 0.0
        %677 = vmatprep.subr.mxu0 0.0
        %678 = vmatpush1.msra.mxu0 0.0
        %679 = vmatprep.subr.mxu0 0.0
        %680 = vmatpush1.msra.mxu0 0.0
        %681 = vmatprep.subr.mxu0 %v283
        %682 = vmatpush1.msra.mxu0 %v282
        %683 = vmatprep.subr.mxu0 %v267
        %684 = vmatpush1.msra.mxu0 %v266
        %685 = vmatprep.subr.mxu0 0.0
        %686 = vmatpush2.msra.mxu0 0.0
        %687 = vmatprep.subr.mxu0 0.0
        %688 = vmatpush2.msra.mxu0 0.0
        %689 = vmatprep.subr.mxu0 0.0
        %690 = vmatpush2.msra.mxu0 0.0
        %691 = vmatprep.subr.mxu0 0.0
        %692 = vmatpush2.msra.mxu0 0.0
        %693 = vmatprep.subr.mxu0 0.0
        %694 = vmatpush2.msra.mxu0 0.0
        %695 = vmatprep.subr.mxu0 0.0
        %696 = vmatpush2.msra.mxu0 0.0
        %697 = vmatprep.subr.mxu0 0.0
        %698 = vmatpush2.msra.mxu0 0.0
        %699 = vmatprep.subr.mxu0 0.0
        %700 = vmatpush2.msra.mxu0 0.0
        %701 = vmatprep.subr.mxu0 0.0
        %702 = vmatpush2.msra.mxu0 0.0
        %703 = vmatprep.subr.mxu0 0.0
        %704 = vmatpush2.msra.mxu0 0.0
        %705 = vmatprep.subr.mxu0 0.0
        %706 = vmatpush2.msra.mxu0 0.0
        %707 = vmatprep.subr.mxu0 0.0
        %708 = vmatpush2.msra.mxu0 0.0
        %709 = vmatprep.subr.mxu0 0.0
        %710 = vmatpush2.msra.mxu0 0.0
        %711 = vmatprep.subr.mxu0 0.0
        %712 = vmatpush2.msra.mxu0 0.0
        %713 = vmatprep.subr.mxu0 0.0
        %714 = vmatpush2.msra.mxu0 0.0
        %715 = vmatprep.subr.mxu0 0.0
        %716 = vmatpush2.msra.mxu0 0.0
        %717 = vmatprep.mubr.f32.mxu0 0.0
        %718 = vmatmul.mubr.f32.gmra.mxu0 %v296
        %v719 = vpop.f32.mrf.mxu0
        %v720 = vadd.f32 %v292, %v719
        %v721 = vpop.f32.mrf.mxu0
        %v722 = vadd.f32 %v292, %v721
        %723 = vdwg.mxu0
        %724 = vmatprep.subr.mxu0 0.0
        %725 = vmatpush1.msra.mxu0 0.0
        %726 = vmatprep.subr.mxu0 0.0
        %727 = vmatpush1.msra.mxu0 0.0
        %728 = vmatprep.subr.mxu0 0.0
        %729 = vmatpush1.msra.mxu0 0.0
        %730 = vmatprep.subr.mxu0 0.0
        %731 = vmatpush1.msra.mxu0 0.0
        %732 = vmatprep.subr.mxu0 0.0
        %733 = vmatpush1.msra.mxu0 0.0
        %734 = vmatprep.subr.mxu0 0.0
        %735 = vmatpush1.msra.mxu0 0.0
        %736 = vmatprep.subr.mxu0 0.0
        %737 = vmatpush1.msra.mxu0 0.0
        %738 = vmatprep.subr.mxu0 0.0
        %739 = vmatpush1.msra.mxu0 0.0
        %740 = vmatprep.subr.mxu0 0.0
        %741 = vmatpush1.msra.mxu0 0.0
        %742 = vmatprep.subr.mxu0 0.0
        %743 = vmatpush1.msra.mxu0 0.0
        %744 = vmatprep.subr.mxu0 0.0
        %745 = vmatpush1.msra.mxu0 0.0
        %746 = vmatprep.subr.mxu0 0.0
        %747 = vmatpush1.msra.mxu0 0.0
        %748 = vmatprep.subr.mxu0 0.0
        %749 = vmatpush1.msra.mxu0 0.0
        %750 = vmatprep.subr.mxu0 0.0
        %751 = vmatpush1.msra.mxu0 0.0
        %752 = vmatprep.subr.mxu0 %v285
        %753 = vmatpush1.msra.mxu0 %v284
        %754 = vmatprep.subr.mxu0 %v269
        %755 = vmatpush1.msra.mxu0 %v268
        %756 = vmatprep.subr.mxu0 0.0
        %757 = vmatpush2.msra.mxu0 0.0
        %758 = vmatprep.subr.mxu0 0.0
        %759 = vmatpush2.msra.mxu0 0.0
        %760 = vmatprep.subr.mxu0 0.0
        %761 = vmatpush2.msra.mxu0 0.0
        %762 = vmatprep.subr.mxu0 0.0
        %763 = vmatpush2.msra.mxu0 0.0
        %764 = vmatprep.subr.mxu0 0.0
        %765 = vmatpush2.msra.mxu0 0.0
        %766 = vmatprep.subr.mxu0 0.0
        %767 = vmatpush2.msra.mxu0 0.0
        %768 = vmatprep.subr.mxu0 0.0
        %769 = vmatpush2.msra.mxu0 0.0
        %770 = vmatprep.subr.mxu0 0.0
        %771 = vmatpush2.msra.mxu0 0.0
        %772 = vmatprep.subr.mxu0 0.0
        %773 = vmatpush2.msra.mxu0 0.0
        %774 = vmatprep.subr.mxu0 0.0
        %775 = vmatpush2.msra.mxu0 0.0
        %776 = vmatprep.subr.mxu0 0.0
        %777 = vmatpush2.msra.mxu0 0.0
        %778 = vmatprep.subr.mxu0 0.0
        %779 = vmatpush2.msra.mxu0 0.0
        %780 = vmatprep.subr.mxu0 0.0
        %781 = vmatpush2.msra.mxu0 0.0
        %782 = vmatprep.subr.mxu0 0.0
        %783 = vmatpush2.msra.mxu0 0.0
        %784 = vmatprep.subr.mxu0 0.0
        %785 = vmatpush2.msra.mxu0 0.0
        %786 = vmatprep.subr.mxu0 0.0
        %787 = vmatpush2.msra.mxu0 0.0
        %788 = vmatprep.mubr.f32.mxu0 0.0
        %789 = vmatmul.mubr.f32.gmra.mxu0 %v296
        %v790 = vpop.f32.mrf.mxu0
        %v791 = vadd.f32 %v292, %v790
        %v792 = vpop.f32.mrf.mxu0
        %v793 = vadd.f32 %v292, %v792
        %794 = vdwg.mxu0
        %795 = vmatprep.subr.mxu0 0.0
        %796 = vmatpush1.msra.mxu0 0.0
        %797 = vmatprep.subr.mxu0 0.0
        %798 = vmatpush1.msra.mxu0 0.0
        %799 = vmatprep.subr.mxu0 0.0
        %800 = vmatpush1.msra.mxu0 0.0
        %801 = vmatprep.subr.mxu0 0.0
        %802 = vmatpush1.msra.mxu0 0.0
        %803 = vmatprep.subr.mxu0 0.0
        %804 = vmatpush1.msra.mxu0 0.0
        %805 = vmatprep.subr.mxu0 0.0
        %806 = vmatpush1.msra.mxu0 0.0
        %807 = vmatprep.subr.mxu0 0.0
        %808 = vmatpush1.msra.mxu0 0.0
        %809 = vmatprep.subr.mxu0 0.0
        %810 = vmatpush1.msra.mxu0 0.0
        %811 = vmatprep.subr.mxu0 0.0
        %812 = vmatpush1.msra.mxu0 0.0
        %813 = vmatprep.subr.mxu0 0.0
        %814 = vmatpush1.msra.mxu0 0.0
        %815 = vmatprep.subr.mxu0 0.0
        %816 = vmatpush1.msra.mxu0 0.0
        %817 = vmatprep.subr.mxu0 0.0
        %818 = vmatpush1.msra.mxu0 0.0
        %819 = vmatprep.subr.mxu0 0.0
        %820 = vmatpush1.msra.mxu0 0.0
        %821 = vmatprep.subr.mxu0 0.0
        %822 = vmatpush1.msra.mxu0 0.0
        %823 = vmatprep.subr.mxu0 %v287
        %824 = vmatpush1.msra.mxu0 %v286
        %825 = vmatprep.subr.mxu0 %v271
        %826 = vmatpush1.msra.mxu0 %v270
        %827 = vmatprep.subr.mxu0 0.0
        %828 = vmatpush2.msra.mxu0 0.0
        %829 = vmatprep.subr.mxu0 0.0
        %830 = vmatpush2.msra.mxu0 0.0
        %831 = vmatprep.subr.mxu0 0.0
        %832 = vmatpush2.msra.mxu0 0.0
        %833 = vmatprep.subr.mxu0 0.0
        %834 = vmatpush2.msra.mxu0 0.0
        %835 = vmatprep.subr.mxu0 0.0
        %836 = vmatpush2.msra.mxu0 0.0
        %837 = vmatprep.subr.mxu0 0.0
        %838 = vmatpush2.msra.mxu0 0.0
        %839 = vmatprep.subr.mxu0 0.0
        %840 = vmatpush2.msra.mxu0 0.0
        %841 = vmatprep.subr.mxu0 0.0
        %842 = vmatpush2.msra.mxu0 0.0
        %843 = vmatprep.subr.mxu0 0.0
        %844 = vmatpush2.msra.mxu0 0.0
        %845 = vmatprep.subr.mxu0 0.0
        %846 = vmatpush2.msra.mxu0 0.0
        %847 = vmatprep.subr.mxu0 0.0
        %848 = vmatpush2.msra.mxu0 0.0
        %849 = vmatprep.subr.mxu0 0.0
        %850 = vmatpush2.msra.mxu0 0.0
        %851 = vmatprep.subr.mxu0 0.0
        %852 = vmatpush2.msra.mxu0 0.0
        %853 = vmatprep.subr.mxu0 0.0
        %854 = vmatpush2.msra.mxu0 0.0
        %855 = vmatprep.subr.mxu0 0.0
        %856 = vmatpush2.msra.mxu0 0.0
        %857 = vmatprep.subr.mxu0 0.0
        %858 = vmatpush2.msra.mxu0 0.0
        %859 = vmatprep.mubr.f32.mxu0 0.0
        %860 = vmatmul.mubr.f32.gmra.mxu0 %v296
        %v861 = vpop.f32.mrf.mxu0
        %v862 = vadd.f32 %v292, %v861
        %v863 = vpop.f32.mrf.mxu0
        %v864 = vadd.f32 %v292, %v863
        %865 = vdwg.mxu0
        %vm866 = vcmp.ge.f32.partialorder %v365, 0.0
        %vm867 = vcmp.ge.f32.partialorder %v367, 0.0
        %vm868 = vcmp.ge.f32.partialorder %v436, 0.0
        %vm869 = vcmp.ge.f32.partialorder %v438, 0.0
        %vm870 = vcmp.ge.f32.partialorder %v507, 0.0
        %vm871 = vcmp.ge.f32.partialorder %v509, 0.0
        %vm872 = vcmp.ge.f32.partialorder %v578, 0.0
        %vm873 = vcmp.ge.f32.partialorder %v580, 0.0
        %vm874 = vcmp.ge.f32.partialorder %v649, 0.0
        %vm875 = vcmp.ge.f32.partialorder %v651, 0.0
        %vm876 = vcmp.ge.f32.partialorder %v720, 0.0
        %vm877 = vcmp.ge.f32.partialorder %v722, 0.0
        %vm878 = vcmp.ge.f32.partialorder %v791, 0.0
        %vm879 = vcmp.ge.f32.partialorder %v793, 0.0
        %vm880 = vcmp.ge.f32.partialorder %v862, 0.0
        %vm881 = vcmp.ge.f32.partialorder %v864, 0.0
        %v882 = vmul.f32 %v365, 0.2
        %v883 = vmul.f32 %v367, 0.2
        %v884 = vmul.f32 %v436, 0.2
        %v885 = vmul.f32 %v438, 0.2
        %v886 = vmul.f32 %v507, 0.2
        %v887 = vmul.f32 %v509, 0.2
        %v888 = vmul.f32 %v578, 0.2
        %v889 = vmul.f32 %v580, 0.2
        %v890 = vmul.f32 %v649, 0.2
        %v891 = vmul.f32 %v651, 0.2
        %v892 = vmul.f32 %v720, 0.2
        %v893 = vmul.f32 %v722, 0.2
        %v894 = vmul.f32 %v791, 0.2
        %v895 = vmul.f32 %v793, 0.2
        %v896 = vmul.f32 %v862, 0.2
        %v897 = vmul.f32 %v864, 0.2
        %v898 = vsel %vm866, %v365, %v882
        %v899 = vsel %vm867, %v367, %v883
        %v900 = vsel %vm868, %v436, %v884
        %v901 = vsel %vm869, %v438, %v885
        %v902 = vsel %vm870, %v507, %v886
        %v903 = vsel %vm871, %v509, %v887
        %v904 = vsel %vm872, %v578, %v888
        %v905 = vsel %vm873, %v580, %v889
        %v906 = vsel %vm874, %v649, %v890
        %v907 = vsel %vm875, %v651, %v891
        %v908 = vsel %vm876, %v720, %v892
        %v909 = vsel %vm877, %v722, %v893
        %v910 = vsel %vm878, %v791, %v894
        %v911 = vsel %vm879, %v793, %v895
        %v912 = vsel %vm880, %v862, %v896
        %v913 = vsel %vm881, %v864, %v897
        %v930 = vcombine.low %v898, %v899
        %v931 = vcombine.low %v900, %v901
        %v932 = vcombine.low %v902, %v903
        %v933 = vcombine.low %v904, %v905
        %v934 = vcombine.low %v906, %v907
        %v935 = vcombine.low %v908, %v909
        %v936 = vcombine.low %v910, %v911
        %v937 = vcombine.low %v912, %v913
        %946 = vst [vmem:[%s253] sm:$0xff] %v930
        %947 = vst [vmem:[%s253 + $0x8] sm:$0xff] %v931
        %948 = vst [vmem:[%s253 + $0x10] sm:$0xff] %v932
        %949 = vst [vmem:[%s253 + $0x18] sm:$0xff] %v933
        %950 = vst [vmem:[%s253 + $0x20] sm:$0xff] %v934
        %951 = vst [vmem:[%s253 + $0x28] sm:$0xff] %v935
        %952 = vst [vmem:[%s253 + $0x30] sm:$0xff] %v936
        %953 = vst [vmem:[%s253 + $0x38] sm:$0xff] %v937
        %s954 = smul.u32 16, %s14
        %p955 = scmp.lt.s32.totalorder %s954, 63
        %s956 = scalar_select %p955, %s954, 63
        %s957 = smul.addr %s956, 4
        %s958 = scalar_lea.vmem %s3, %s957
        // Predicated region
        $region56: #{model_b_periodic_forward.6} parent=50 // pred_check
          %p959 = pneg %p100
        $region57: #{model_b_periodic_forward.6} parent=50 // pred_check_branch
          %961 = sbr.rel (%p959) target = $region59
        $region58: #{model_b_periodic_forward.6} parent=50 // pred_region
          %s962 = smul.u32 16, %s14
        $region59: #{model_b_periodic_forward.6} parent=50 // pred_fallthru
          _
      $region51: #{model_b_periodic_forward.6} parent=5 // pred_fallthru
        _
      %p963 = scmp.le.s32.totalorder 2, %s9
      // Predicated region
      $region60: #{model_b_periodic_forward.6} parent=5 // pred_check
        %p964 = pneg %p963
      $region61: #{model_b_periodic_forward.6} parent=5 // pred_check_branch
        %966 = sbr.rel (%p964) target = $region63
      $region62: #{model_b_periodic_forward.6} parent=5 // pred_region
        %s967 = ssub.s32 %s9, 2
        // Predicated region
        $region64: #{model_b_periodic_forward.6} parent=62 // pred_check
          %p968 = pneg %p106
        $region65: #{model_b_periodic_forward.6} parent=62 // pred_check_branch
          %970 = sbr.rel (%p968) target = $region67
        $region66: #{model_b_periodic_forward.6} parent=62 // pred_region
          %s971 = smul.u32 16, %s15
          %p972 = scmp.lt.s32.totalorder %s971, 63
          %s973 = scalar_select %p972, %s971, 63
          %s974 = smul.addr %s973, 4
          %s975 = scalar_lea.vmem %s3, %s974
        $region67: #{model_b_periodic_forward.6} parent=62 // pred_fallthru
          _
      $region63: #{model_b_periodic_forward.6} parent=5 // pred_fallthru
        _
    $region6: #{model_b_periodic_forward.6} parent=1 // loop_footer
      %s13 = sadd.s32 1, %s9
    $region7: #{model_b_periodic_forward.6} parent=1 // loop_footer_branch
      %8 = sbr.rel target = $region3
    $region8: #{model_b_periodic_forward.6} parent=1 // loop_exit
      _

// kernel: model_b_periodic_forward.7
$region0: #{model_b_periodic_forward.7}
  #allocation0 [shape = 'u32[]', space=smem, size = 0x4, offset = 0x4, fixed_abs, tag = 'smem constant byte address 0x4 - core index']
  #allocation1 [shape = 'u32[144,128]{1,0:T(1,128)}', space=vmem, size = 0x12000, scoped, tag = 'internal scratch']
  %s0 = inlined_call_operand.vmem [shape: f32[64,2048], index: 0, kind: input, shape index: {}]
  %s1 = inlined_call_operand.vmem [shape: f32[8,64], index: 1, kind: input, shape index: {}]
  %s2 = inlined_call_operand.vmem [shape: f32[8,1], index: 2, kind: input, shape index: {}]
  %s3 = inlined_call_operand.vmem [shape: f32[8,1], index: 3, kind: input, shape index: {}]
  %s4 = inlined_call_operand.vmem [shape: f32[8,1], index: 4, kind: input, shape index: {}]
  %s5 = inlined_call_operand.vmem [shape: f32[8,2048], index: 5, kind: output, shape index: {}]
  %s6 = sld [smem:[#allocation0]]
  $region30: #{model_b_periodic_forward.7} parent=0
    _
  %s8 = ssub.s32 1, %s6
  %s9 = scalar_select 0, %s8, %s6
  // Predicated region
  $region2: #{model_b_periodic_forward.7} parent=0 // pred_check
    _
  $region3: #{model_b_periodic_forward.7} parent=0 // pred_check_branch
    %11 = sbr.rel (0) target = $region5
  $region4: #{model_b_periodic_forward.7} parent=0 // pred_region
    _
  $region5: #{model_b_periodic_forward.7} parent=0 // pred_fallthru
    _
  // Predicated region
  $region6: #{model_b_periodic_forward.7} parent=0 // pred_check
    _
  $region7: #{model_b_periodic_forward.7} parent=0 // pred_check_branch
    %13 = sbr.rel (0) target = $region9
  $region8: #{model_b_periodic_forward.7} parent=0 // pred_region
    _
  $region9: #{model_b_periodic_forward.7} parent=0 // pred_fallthru
    _
  // Predicated region
  $region10: #{model_b_periodic_forward.7} parent=0 // pred_check
    _
  $region11: #{model_b_periodic_forward.7} parent=0 // pred_check_branch
    %15 = sbr.rel (0) target = $region13
  $region12: #{model_b_periodic_forward.7} parent=0 // pred_region
    _
  $region13: #{model_b_periodic_forward.7} parent=0 // pred_fallthru
    _
  // Predicated region
  $region14: #{model_b_periodic_forward.7} parent=0 // pred_check
    _
  $region15: #{model_b_periodic_forward.7} parent=0 // pred_check_branch
    %17 = sbr.rel (0) target = $region17
  $region16: #{model_b_periodic_forward.7} parent=0 // pred_region
    _
  $region17: #{model_b_periodic_forward.7} parent=0 // pred_fallthru
    _
  // Predicated region
  $region18: #{model_b_periodic_forward.7} parent=0 // pred_check
    _
  $region19: #{model_b_periodic_forward.7} parent=0 // pred_check_branch
    %19 = sbr.rel (0) target = $region21
  $region20: #{model_b_periodic_forward.7} parent=0 // pred_region
    _
  $region21: #{model_b_periodic_forward.7} parent=0 // pred_fallthru
    _
  %v20 = vld [vmem:[%s1] sm:$0xff]
  %v21 = vld [vmem:[%s0] sm:$0xff]
  %v22 = vld [vmem:[%s0 + $0x8] sm:$0xff]
  %v23 = vld [vmem:[%s0 + $0x10] sm:$0xff]
  %v24 = vld [vmem:[%s0 + $0x18] sm:$0xff]
  %v25 = vld [vmem:[%s0 + $0x20] sm:$0xff]
  %v26 = vld [vmem:[%s0 + $0x28] sm:$0xff]
  %v27 = vld [vmem:[%s0 + $0x30] sm:$0xff]
  %v28 = vld [vmem:[%s0 + $0x38] sm:$0xff]
  %v29 = vld [vmem:[%s0 + $0x40] sm:$0xff]
  %v30 = vld [vmem:[%s0 + $0x48] sm:$0xff]
  %v31 = vld [vmem:[%s0 + $0x50] sm:$0xff]
  %v32 = vld [vmem:[%s0 + $0x58] sm:$0xff]
  %v33 = vld [vmem:[%s0 + $0x60] sm:$0xff]
  %v34 = vld [vmem:[%s0 + $0x68] sm:$0xff]
  %v35 = vld [vmem:[%s0 + $0x70] sm:$0xff]
  %v36 = vld [vmem:[%s0 + $0x78] sm:$0xff]
  %v37 = vld [vmem:[%s0 + $0x80] sm:$0xff]
  %v38 = vld [vmem:[%s0 + $0x88] sm:$0xff]
  %v39 = vld [vmem:[%s0 + $0x90] sm:$0xff]
  %v40 = vld [vmem:[%s0 + $0x98] sm:$0xff]
  %v41 = vld [vmem:[%s0 + $0xa0] sm:$0xff]
  %v42 = vld [vmem:[%s0 + $0xa8] sm:$0xff]
  %v43 = vld [vmem:[%s0 + $0xb0] sm:$0xff]
  %v44 = vld [vmem:[%s0 + $0xb8] sm:$0xff]
  %v45 = vld [vmem:[%s0 + $0xc0] sm:$0xff]
  %v46 = vld [vmem:[%s0 + $0xc8] sm:$0xff]
  %v47 = vld [vmem:[%s0 + $0xd0] sm:$0xff]
  %v48 = vld [vmem:[%s0 + $0xd8] sm:$0xff]
  %v49 = vld [vmem:[%s0 + $0xe0] sm:$0xff]
  %v50 = vld [vmem:[%s0 + $0xe8] sm:$0xff]
  %v51 = vld [vmem:[%s0 + $0xf0] sm:$0xff]
  %v52 = vld [vmem:[%s0 + $0xf8] sm:$0xff]
  %v53 = vld [vmem:[%s0 + $0x100] sm:$0xff]
  %v54 = vld [vmem:[%s0 + $0x108] sm:$0xff]
  %v55 = vld [vmem:[%s0 + $0x110] sm:$0xff]
  %v56 = vld [vmem:[%s0 + $0x118] sm:$0xff]
  %v57 = vld [vmem:[%s0 + $0x120] sm:$0xff]
  %v58 = vld [vmem:[%s0 + $0x128] sm:$0xff]
  %v59 = vld [vmem:[%s0 + $0x130] sm:$0xff]
  %v60 = vld [vmem:[%s0 + $0x138] sm:$0xff]
  %v61 = vld [vmem:[%s0 + $0x140] sm:$0xff]
  %v62 = vld [vmem:[%s0 + $0x148] sm:$0xff]
  %v63 = vld [vmem:[%s0 + $0x150] sm:$0xff]
  %v64 = vld [vmem:[%s0 + $0x158] sm:$0xff]
  %v65 = vld [vmem:[%s0 + $0x160] sm:$0xff]
  %v66 = vld [vmem:[%s0 + $0x168] sm:$0xff]
  %v67 = vld [vmem:[%s0 + $0x170] sm:$0xff]
  %v68 = vld [vmem:[%s0 + $0x178] sm:$0xff]
  %v69 = vld [vmem:[%s0 + $0x180] sm:$0xff]
  %v70 = vld [vmem:[%s0 + $0x188] sm:$0xff]
  %v71 = vld [vmem:[%s0 + $0x190] sm:$0xff]
  %v72 = vld [vmem:[%s0 + $0x198] sm:$0xff]
  %v73 = vld [vmem:[%s0 + $0x1a0] sm:$0xff]
  %v74 = vld [vmem:[%s0 + $0x1a8] sm:$0xff]
  %v75 = vld [vmem:[%s0 + $0x1b0] sm:$0xff]
  %v76 = vld [vmem:[%s0 + $0x1b8] sm:$0xff]
  %v77 = vld [vmem:[%s0 + $0x1c0] sm:$0xff]
  %v78 = vld [vmem:[%s0 + $0x1c8] sm:$0xff]
  %v79 = vld [vmem:[%s0 + $0x1d0] sm:$0xff]
  %v80 = vld [vmem:[%s0 + $0x1d8] sm:$0xff]
  %v81 = vld [vmem:[%s0 + $0x1e0] sm:$0xff]
  %v82 = vld [vmem:[%s0 + $0x1e8] sm:$0xff]
  %v83 = vld [vmem:[%s0 + $0x1f0] sm:$0xff]
  %v84 = vld [vmem:[%s0 + $0x1f8] sm:$0xff]
  %v85 = vld [vmem:[%s0 + $0x200] sm:$0xff]
  %v86 = vld [vmem:[%s0 + $0x208] sm:$0xff]
  %v87 = vld [vmem:[%s0 + $0x210] sm:$0xff]
  %v88 = vld [vmem:[%s0 + $0x218] sm:$0xff]
  %v89 = vld [vmem:[%s0 + $0x220] sm:$0xff]
  %v90 = vld [vmem:[%s0 + $0x228] sm:$0xff]
  %v91 = vld [vmem:[%s0 + $0x230] sm:$0xff]
  %v92 = vld [vmem:[%s0 + $0x238] sm:$0xff]
  %v93 = vld [vmem:[%s0 + $0x240] sm:$0xff]
  %v94 = vld [vmem:[%s0 + $0x248] sm:$0xff]
  %v95 = vld [vmem:[%s0 + $0x250] sm:$0xff]
  %v96 = vld [vmem:[%s0 + $0x258] sm:$0xff]
  %v97 = vld [vmem:[%s0 + $0x260] sm:$0xff]
  %v98 = vld [vmem:[%s0 + $0x268] sm:$0xff]
  %v99 = vld [vmem:[%s0 + $0x270] sm:$0xff]
  %v100 = vld [vmem:[%s0 + $0x278] sm:$0xff]
  %v101 = vld [vmem:[%s0 + $0x280] sm:$0xff]
  %v102 = vld [vmem:[%s0 + $0x288] sm:$0xff]
  %v103 = vld [vmem:[%s0 + $0x290] sm:$0xff]
  %v104 = vld [vmem:[%s0 + $0x298] sm:$0xff]
  %v105 = vld [vmem:[%s0 + $0x2a0] sm:$0xff]
  %v106 = vld [vmem:[%s0 + $0x2a8] sm:$0xff]
  %v107 = vld [vmem:[%s0 + $0x2b0] sm:$0xff]
  %v108 = vld [vmem:[%s0 + $0x2b8] sm:$0xff]
  %v109 = vld [vmem:[%s0 + $0x2c0] sm:$0xff]
  %v110 = vld [vmem:[%s0 + $0x2c8] sm:$0xff]
  %v111 = vld [vmem:[%s0 + $0x2d0] sm:$0xff]
  %v112 = vld [vmem:[%s0 + $0x2d8] sm:$0xff]
  %v113 = vld [vmem:[%s0 + $0x2e0] sm:$0xff]
  %v114 = vld [vmem:[%s0 + $0x2e8] sm:$0xff]
  %v115 = vld [vmem:[%s0 + $0x2f0] sm:$0xff]
  %v116 = vld [vmem:[%s0 + $0x2f8] sm:$0xff]
  %v117 = vld [vmem:[%s0 + $0x300] sm:$0xff]
  %v118 = vld [vmem:[%s0 + $0x308] sm:$0xff]
  %v119 = vld [vmem:[%s0 + $0x310] sm:$0xff]
  %v120 = vld [vmem:[%s0 + $0x318] sm:$0xff]
  %v121 = vld [vmem:[%s0 + $0x320] sm:$0xff]
  %v122 = vld [vmem:[%s0 + $0x328] sm:$0xff]
  %v123 = vld [vmem:[%s0 + $0x330] sm:$0xff]
  %v124 = vld [vmem:[%s0 + $0x338] sm:$0xff]
  %v125 = vld [vmem:[%s0 + $0x340] sm:$0xff]
  %v126 = vld [vmem:[%s0 + $0x348] sm:$0xff]
  %v127 = vld [vmem:[%s0 + $0x350] sm:$0xff]
  %v128 = vld [vmem:[%s0 + $0x358] sm:$0xff]
  %v129 = vld [vmem:[%s0 + $0x360] sm:$0xff]
  %v130 = vld [vmem:[%s0 + $0x368] sm:$0xff]
  %v131 = vld [vmem:[%s0 + $0x370] sm:$0xff]
  %v132 = vld [vmem:[%s0 + $0x378] sm:$0xff]
  %v133 = vld [vmem:[%s0 + $0x380] sm:$0xff]
  %v134 = vld [vmem:[%s0 + $0x388] sm:$0xff]
  %v135 = vld [vmem:[%s0 + $0x390] sm:$0xff]
  %v136 = vld [vmem:[%s0 + $0x398] sm:$0xff]
  %v137 = vld [vmem:[%s0 + $0x3a0] sm:$0xff]
  %v138 = vld [vmem:[%s0 + $0x3a8] sm:$0xff]
  %v139 = vld [vmem:[%s0 + $0x3b0] sm:$0xff]
  %v140 = vld [vmem:[%s0 + $0x3b8] sm:$0xff]
  %v141 = vld [vmem:[%s0 + $0x3c0] sm:$0xff]
  %v142 = vld [vmem:[%s0 + $0x3c8] sm:$0xff]
  %v143 = vld [vmem:[%s0 + $0x3d0] sm:$0xff]
  %v144 = vld [vmem:[%s0 + $0x3d8] sm:$0xff]
  %v145 = vld [vmem:[%s0 + $0x3e0] sm:$0xff]
  %v146 = vld [vmem:[%s0 + $0x3e8] sm:$0xff]
  %v147 = vld [vmem:[%s0 + $0x3f0] sm:$0xff]
  %v148 = vld [vmem:[%s0 + $0x3f8] sm:$0xff]
  %v149 = vld [vmem:[%s2] sm:$0xff]
  %151 = vset.pattern.permute.xlu0 0
  %152 = vperm.xlu0 %151, %v149
  %v153 = vpop.permute.xlu0 %152
  %vm155 = vcmask 523264
  %v157 = vsel %vm155, %v20, 0
  %159 = vmatprep.subr.mxu0 0.0
  %160 = vmatpush1.msra.mxu0 0.0
  %161 = vmatprep.subr.mxu0 0.0
  %162 = vmatpush1.msra.mxu0 0.0
  %163 = vmatprep.subr.mxu0 0.0
  %164 = vmatpush1.msra.mxu0 0.0
  %165 = vmatprep.subr.mxu0 0.0
  %166 = vmatpush1.msra.mxu0 0.0
  %167 = vmatprep.subr.mxu0 0.0
  %168 = vmatpush1.msra.mxu0 0.0
  %169 = vmatprep.subr.mxu0 0.0
  %170 = vmatpush1.msra.mxu0 0.0
  %171 = vmatprep.subr.mxu0 0.0
  %172 = vmatpush1.msra.mxu0 0.0
  %173 = vmatprep.subr.mxu0 0.0
  %174 = vmatpush1.msra.mxu0 0.0
  %175 = vmatprep.subr.mxu0 %v134
  %176 = vmatpush1.msra.mxu0 %v133
  %177 = vmatprep.subr.mxu0 %v118
  %178 = vmatpush1.msra.mxu0 %v117
  %179 = vmatprep.subr.mxu0 %v102
  %180 = vmatpush1.msra.mxu0 %v101
  %181 = vmatprep.subr.mxu0 %v86
  %182 = vmatpush1.msra.mxu0 %v85
  %183 = vmatprep.subr.mxu0 %v70
  %184 = vmatpush1.msra.mxu0 %v69
  %185 = vmatprep.subr.mxu0 %v54
  %186 = vmatpush1.msra.mxu0 %v53
  %187 = vmatprep.subr.mxu0 %v38
  %188 = vmatpush1.msra.mxu0 %v37
  %189 = vmatprep.subr.mxu0 %v22
  %190 = vmatpush1.msra.mxu0 %v21
  %191 = vmatprep.subr.mxu0 0.0
  %192 = vmatpush2.msra.mxu0 0.0
  %193 = vmatprep.subr.mxu0 0.0
  %194 = vmatpush2.msra.mxu0 0.0
  %195 = vmatprep.subr.mxu0 0.0
  %196 = vmatpush2.msra.mxu0 0.0
  %197 = vmatprep.subr.mxu0 0.0
  %198 = vmatpush2.msra.mxu0 0.0
  %199 = vmatprep.subr.mxu0 0.0
  %200 = vmatpush2.msra.mxu0 0.0
  %201 = vmatprep.subr.mxu0 0.0
  %202 = vmatpush2.msra.mxu0 0.0
  %203 = vmatprep.subr.mxu0 0.0
  %204 = vmatpush2.msra.mxu0 0.0
  %205 = vmatprep.subr.mxu0 0.0
  %206 = vmatpush2.msra.mxu0 0.0
  %207 = vmatprep.subr.mxu0 0.0
  %208 = vmatpush2.msra.mxu0 0.0
  %209 = vmatprep.subr.mxu0 0.0
  %210 = vmatpush2.msra.mxu0 0.0
  %211 = vmatprep.subr.mxu0 0.0
  %212 = vmatpush2.msra.mxu0 0.0
  %213 = vmatprep.subr.mxu0 0.0
  %214 = vmatpush2.msra.mxu0 0.0
  %215 = vmatprep.subr.mxu0 0.0
  %216 = vmatpush2.msra.mxu0 0.0
  %217 = vmatprep.subr.mxu0 0.0
  %218 = vmatpush2.msra.mxu0 0.0
  %219 = vmatprep.subr.mxu0 0.0
  %220 = vmatpush2.msra.mxu0 0.0
  %221 = vmatprep.subr.mxu0 0.0
  %222 = vmatpush2.msra.mxu0 0.0
  %223 = vmatprep.mubr.f32.mxu0 0.0
  %224 = vmatmul.mubr.f32.gmra.mxu0 %v157
  %v225 = vpop.f32.mrf.mxu0
  %v226 = vadd.f32 %v153, %v225
  %v227 = vpop.f32.mrf.mxu0
  %v228 = vadd.f32 %v153, %v227
  %229 = vdwg.mxu0
  %230 = vmatprep.subr.mxu0 0.0
  %231 = vmatpush1.msra.mxu0 0.0
  %232 = vmatprep.subr.mxu0 0.0
  %233 = vmatpush1.msra.mxu0 0.0
  %234 = vmatprep.subr.mxu0 0.0
  %235 = vmatpush1.msra.mxu0 0.0
  %236 = vmatprep.subr.mxu0 0.0
  %237 = vmatpush1.msra.mxu0 0.0
  %238 = vmatprep.subr.mxu0 0.0
  %239 = vmatpush1.msra.mxu0 0.0
  %240 = vmatprep.subr.mxu0 0.0
  %241 = vmatpush1.msra.mxu0 0.0
  %242 = vmatprep.subr.mxu0 0.0
  %243 = vmatpush1.msra.mxu0 0.0
  %244 = vmatprep.subr.mxu0 0.0
  %245 = vmatpush1.msra.mxu0 0.0
  %246 = vmatprep.subr.mxu0 %v136
  %247 = vmatpush1.msra.mxu0 %v135
  %248 = vmatprep.subr.mxu0 %v120
  %249 = vmatpush1.msra.mxu0 %v119
  %250 = vmatprep.subr.mxu0 %v104
  %251 = vmatpush1.msra.mxu0 %v103
  %252 = vmatprep.subr.mxu0 %v88
  %253 = vmatpush1.msra.mxu0 %v87
  %254 = vmatprep.subr.mxu0 %v72
  %255 = vmatpush1.msra.mxu0 %v71
  %256 = vmatprep.subr.mxu0 %v56
  %257 = vmatpush1.msra.mxu0 %v55
  %258 = vmatprep.subr.mxu0 %v40
  %259 = vmatpush1.msra.mxu0 %v39
  %260 = vmatprep.subr.mxu0 %v24
  %261 = vmatpush1.msra.mxu0 %v23
  %262 = vmatprep.subr.mxu0 0.0
  %263 = vmatpush2.msra.mxu0 0.0
  %264 = vmatprep.subr.mxu0 0.0
  %265 = vmatpush2.msra.mxu0 0.0
  %266 = vmatprep.subr.mxu0 0.0
  %267 = vmatpush2.msra.mxu0 0.0
  %268 = vmatprep.subr.mxu0 0.0
  %269 = vmatpush2.msra.mxu0 0.0
  %270 = vmatprep.subr.mxu0 0.0
  %271 = vmatpush2.msra.mxu0 0.0
  %272 = vmatprep.subr.mxu0 0.0
  %273 = vmatpush2.msra.mxu0 0.0
  %274 = vmatprep.subr.mxu0 0.0
  %275 = vmatpush2.msra.mxu0 0.0
  %276 = vmatprep.subr.mxu0 0.0
  %277 = vmatpush2.msra.mxu0 0.0
  %278 = vmatprep.subr.mxu0 0.0
  %279 = vmatpush2.msra.mxu0 0.0
  %280 = vmatprep.subr.mxu0 0.0
  %281 = vmatpush2.msra.mxu0 0.0
  %282 = vmatprep.subr.mxu0 0.0
  %283 = vmatpush2.msra.mxu0 0.0
  %284 = vmatprep.subr.mxu0 0.0
  %285 = vmatpush2.msra.mxu0 0.0
  %286 = vmatprep.subr.mxu0 0.0
  %287 = vmatpush2.msra.mxu0 0.0
  %288 = vmatprep.subr.mxu0 0.0
  %289 = vmatpush2.msra.mxu0 0.0
  %290 = vmatprep.subr.mxu0 0.0
  %291 = vmatpush2.msra.mxu0 0.0
  %292 = vmatprep.subr.mxu0 0.0
  %293 = vmatpush2.msra.mxu0 0.0
  %294 = vmatprep.mubr.f32.mxu0 0.0
  %295 = vmatmul.mubr.f32.gmra.mxu0 %v157
  %v296 = vpop.f32.mrf.mxu0
  %v297 = vadd.f32 %v153, %v296
  %v298 = vpop.f32.mrf.mxu0
  %v299 = vadd.f32 %v153, %v298
  %300 = vdwg.mxu0
  %301 = vmatprep.subr.mxu0 0.0
  %302 = vmatpush1.msra.mxu0 0.0
  %303 = vmatprep.subr.mxu0 0.0
  %304 = vmatpush1.msra.mxu0 0.0
  %305 = vmatprep.subr.mxu0 0.0
  %306 = vmatpush1.msra.mxu0 0.0
  %307 = vmatprep.subr.mxu0 0.0
  %308 = vmatpush1.msra.mxu0 0.0
  %309 = vmatprep.subr.mxu0 0.0
  %310 = vmatpush1.msra.mxu0 0.0
  %311 = vmatprep.subr.mxu0 0.0
  %312 = vmatpush1.msra.mxu0 0.0
  %313 = vmatprep.subr.mxu0 0.0
  %314 = vmatpush1.msra.mxu0 0.0
  %315 = vmatprep.subr.mxu0 0.0
  %316 = vmatpush1.msra.mxu0 0.0
  %317 = vmatprep.subr.mxu0 %v138
  %318 = vmatpush1.msra.mxu0 %v137
  %319 = vmatprep.subr.mxu0 %v122
  %320 = vmatpush1.msra.mxu0 %v121
  %321 = vmatprep.subr.mxu0 %v106
  %322 = vmatpush1.msra.mxu0 %v105
  %323 = vmatprep.subr.mxu0 %v90
  %324 = vmatpush1.msra.mxu0 %v89
  %325 = vmatprep.subr.mxu0 %v74
  %326 = vmatpush1.msra.mxu0 %v73
  %327 = vmatprep.subr.mxu0 %v58
  %328 = vmatpush1.msra.mxu0 %v57
  %329 = vmatprep.subr.mxu0 %v42
  %330 = vmatpush1.msra.mxu0 %v41
  %331 = vmatprep.subr.mxu0 %v26
  %332 = vmatpush1.msra.mxu0 %v25
  %333 = vmatprep.subr.mxu0 0.0
  %334 = vmatpush2.msra.mxu0 0.0
  %335 = vmatprep.subr.mxu0 0.0
  %336 = vmatpush2.msra.mxu0 0.0
  %337 = vmatprep.subr.mxu0 0.0
  %338 = vmatpush2.msra.mxu0 0.0
  %339 = vmatprep.subr.mxu0 0.0
  %340 = vmatpush2.msra.mxu0 0.0
  %341 = vmatprep.subr.mxu0 0.0
  %342 = vmatpush2.msra.mxu0 0.0
  %343 = vmatprep.subr.mxu0 0.0
  %344 = vmatpush2.msra.mxu0 0.0
  %345 = vmatprep.subr.mxu0 0.0
  %346 = vmatpush2.msra.mxu0 0.0
  %347 = vmatprep.subr.mxu0 0.0
  %348 = vmatpush2.msra.mxu0 0.0
  %349 = vmatprep.subr.mxu0 0.0
  %350 = vmatpush2.msra.mxu0 0.0
  %351 = vmatprep.subr.mxu0 0.0
  %352 = vmatpush2.msra.mxu0 0.0
  %353 = vmatprep.subr.mxu0 0.0
  %354 = vmatpush2.msra.mxu0 0.0
  %355 = vmatprep.subr.mxu0 0.0
  %356 = vmatpush2.msra.mxu0 0.0
  %357 = vmatprep.subr.mxu0 0.0
  %358 = vmatpush2.msra.mxu0 0.0
  %359 = vmatprep.subr.mxu0 0.0
  %360 = vmatpush2.msra.mxu0 0.0
  %361 = vmatprep.subr.mxu0 0.0
  %362 = vmatpush2.msra.mxu0 0.0
  %363 = vmatprep.subr.mxu0 0.0
  %364 = vmatpush2.msra.mxu0 0.0
  %365 = vmatprep.mubr.f32.mxu0 0.0
  %366 = vmatmul.mubr.f32.gmra.mxu0 %v157
  %v367 = vpop.f32.mrf.mxu0
  %v368 = vadd.f32 %v153, %v367
  %v369 = vpop.f32.mrf.mxu0
  %v370 = vadd.f32 %v153, %v369
  %371 = vdwg.mxu0
  %372 = vmatprep.subr.mxu0 0.0
  %373 = vmatpush1.msra.mxu0 0.0
  %374 = vmatprep.subr.mxu0 0.0
  %375 = vmatpush1.msra.mxu0 0.0
  %376 = vmatprep.subr.mxu0 0.0
  %377 = vmatpush1.msra.mxu0 0.0
  %378 = vmatprep.subr.mxu0 0.0
  %379 = vmatpush1.msra.mxu0 0.0
  %380 = vmatprep.subr.mxu0 0.0
  %381 = vmatpush1.msra.mxu0 0.0
  %382 = vmatprep.subr.mxu0 0.0
  %383 = vmatpush1.msra.mxu0 0.0
  %384 = vmatprep.subr.mxu0 0.0
  %385 = vmatpush1.msra.mxu0 0.0
  %386 = vmatprep.subr.mxu0 0.0
  %387 = vmatpush1.msra.mxu0 0.0
  %388 = vmatprep.subr.mxu0 %v140
  %389 = vmatpush1.msra.mxu0 %v139
  %390 = vmatprep.subr.mxu0 %v124
  %391 = vmatpush1.msra.mxu0 %v123
  %392 = vmatprep.subr.mxu0 %v108
  %393 = vmatpush1.msra.mxu0 %v107
  %394 = vmatprep.subr.mxu0 %v92
  %395 = vmatpush1.msra.mxu0 %v91
  %396 = vmatprep.subr.mxu0 %v76
  %397 = vmatpush1.msra.mxu0 %v75
  %398 = vmatprep.subr.mxu0 %v60
  %399 = vmatpush1.msra.mxu0 %v59
  %400 = vmatprep.subr.mxu0 %v44
  %401 = vmatpush1.msra.mxu0 %v43
  %402 = vmatprep.subr.mxu0 %v28
  %403 = vmatpush1.msra.mxu0 %v27
  %404 = vmatprep.subr.mxu0 0.0
  %405 = vmatpush2.msra.mxu0 0.0
  %406 = vmatprep.subr.mxu0 0.0
  %407 = vmatpush2.msra.mxu0 0.0
  %408 = vmatprep.subr.mxu0 0.0
  %409 = vmatpush2.msra.mxu0 0.0
  %410 = vmatprep.subr.mxu0 0.0
  %411 = vmatpush2.msra.mxu0 0.0
  %412 = vmatprep.subr.mxu0 0.0
  %413 = vmatpush2.msra.mxu0 0.0
  %414 = vmatprep.subr.mxu0 0.0
  %415 = vmatpush2.msra.mxu0 0.0
  %416 = vmatprep.subr.mxu0 0.0
  %417 = vmatpush2.msra.mxu0 0.0
  %418 = vmatprep.subr.mxu0 0.0
  %419 = vmatpush2.msra.mxu0 0.0
  %420 = vmatprep.subr.mxu0 0.0
  %421 = vmatpush2.msra.mxu0 0.0
  %422 = vmatprep.subr.mxu0 0.0
  %423 = vmatpush2.msra.mxu0 0.0
  %424 = vmatprep.subr.mxu0 0.0
  %425 = vmatpush2.msra.mxu0 0.0
  %426 = vmatprep.subr.mxu0 0.0
  %427 = vmatpush2.msra.mxu0 0.0
  %428 = vmatprep.subr.mxu0 0.0
  %429 = vmatpush2.msra.mxu0 0.0
  %430 = vmatprep.subr.mxu0 0.0
  %431 = vmatpush2.msra.mxu0 0.0
  %432 = vmatprep.subr.mxu0 0.0
  %433 = vmatpush2.msra.mxu0 0.0
  %434 = vmatprep.subr.mxu0 0.0
  %435 = vmatpush2.msra.mxu0 0.0
  %436 = vmatprep.mubr.f32.mxu0 0.0
  %437 = vmatmul.mubr.f32.gmra.mxu0 %v157
  %v438 = vpop.f32.mrf.mxu0
  %v439 = vadd.f32 %v153, %v438
  %v440 = vpop.f32.mrf.mxu0
  %v441 = vadd.f32 %v153, %v440
  %442 = vdwg.mxu0
  %443 = vmatprep.subr.mxu0 0.0
  %444 = vmatpush1.msra.mxu0 0.0
  %445 = vmatprep.subr.mxu0 0.0
  %446 = vmatpush1.msra.mxu0 0.0
  %447 = vmatprep.subr.mxu0 0.0
  %448 = vmatpush1.msra.mxu0 0.0
  %449 = vmatprep.subr.mxu0 0.0
  %450 = vmatpush1.msra.mxu0 0.0
  %451 = vmatprep.subr.mxu0 0.0
  %452 = vmatpush1.msra.mxu0 0.0
  %453 = vmatprep.subr.mxu0 0.0
  %454 = vmatpush1.msra.mxu0 0.0
  %455 = vmatprep.subr.mxu0 0.0
  %456 = vmatpush1.msra.mxu0 0.0
  %457 = vmatprep.subr.mxu0 0.0
  %458 = vmatpush1.msra.mxu0 0.0
  %459 = vmatprep.subr.mxu0 %v142
  %460 = vmatpush1.msra.mxu0 %v141
  %461 = vmatprep.subr.mxu0 %v126
  %462 = vmatpush1.msra.mxu0 %v125
  %463 = vmatprep.subr.mxu0 %v110
  %464 = vmatpush1.msra.mxu0 %v109
  %465 = vmatprep.subr.mxu0 %v94
  %466 = vmatpush1.msra.mxu0 %v93
  %467 = vmatprep.subr.mxu0 %v78
  %468 = vmatpush1.msra.mxu0 %v77
  %469 = vmatprep.subr.mxu0 %v62
  %470 = vmatpush1.msra.mxu0 %v61
  %471 = vmatprep.subr.mxu0 %v46
  %472 = vmatpush1.msra.mxu0 %v45
  %473 = vmatprep.subr.mxu0 %v30
  %474 = vmatpush1.msra.mxu0 %v29
  %475 = vmatprep.subr.mxu0 0.0
  %476 = vmatpush2.msra.mxu0 0.0
  %477 = vmatprep.subr.mxu0 0.0
  %478 = vmatpush2.msra.mxu0 0.0
  %479 = vmatprep.subr.mxu0 0.0
  %480 = vmatpush2.msra.mxu0 0.0
  %481 = vmatprep.subr.mxu0 0.0
  %482 = vmatpush2.msra.mxu0 0.0
  %483 = vmatprep.subr.mxu0 0.0
  %484 = vmatpush2.msra.mxu0 0.0
  %485 = vmatprep.subr.mxu0 0.0
  %486 = vmatpush2.msra.mxu0 0.0
  %487 = vmatprep.subr.mxu0 0.0
  %488 = vmatpush2.msra.mxu0 0.0
  %489 = vmatprep.subr.mxu0 0.0
  %490 = vmatpush2.msra.mxu0 0.0
  %491 = vmatprep.subr.mxu0 0.0
  %492 = vmatpush2.msra.mxu0 0.0
  %493 = vmatprep.subr.mxu0 0.0
  %494 = vmatpush2.msra.mxu0 0.0
  %495 = vmatprep.subr.mxu0 0.0
  %496 = vmatpush2.msra.mxu0 0.0
  %497 = vmatprep.subr.mxu0 0.0
  %498 = vmatpush2.msra.mxu0 0.0
  %499 = vmatprep.subr.mxu0 0.0
  %500 = vmatpush2.msra.mxu0 0.0
  %501 = vmatprep.subr.mxu0 0.0
  %502 = vmatpush2.msra.mxu0 0.0
  %503 = vmatprep.subr.mxu0 0.0
  %504 = vmatpush2.msra.mxu0 0.0
  %505 = vmatprep.subr.mxu0 0.0
  %506 = vmatpush2.msra.mxu0 0.0
  %507 = vmatprep.mubr.f32.mxu0 0.0
  %508 = vmatmul.mubr.f32.gmra.mxu0 %v157
  %v509 = vpop.f32.mrf.mxu0
  %v510 = vadd.f32 %v153, %v509
  %v511 = vpop.f32.mrf.mxu0
  %v512 = vadd.f32 %v153, %v511
  %513 = vdwg.mxu0
  %514 = vmatprep.subr.mxu0 0.0
  %515 = vmatpush1.msra.mxu0 0.0
  %516 = vmatprep.subr.mxu0 0.0
  %517 = vmatpush1.msra.mxu0 0.0
  %518 = vmatprep.subr.mxu0 0.0
  %519 = vmatpush1.msra.mxu0 0.0
  %520 = vmatprep.subr.mxu0 0.0
  %521 = vmatpush1.msra.mxu0 0.0
  %522 = vmatprep.subr.mxu0 0.0
  %523 = vmatpush1.msra.mxu0 0.0
  %524 = vmatprep.subr.mxu0 0.0
  %525 = vmatpush1.msra.mxu0 0.0
  %526 = vmatprep.subr.mxu0 0.0
  %527 = vmatpush1.msra.mxu0 0.0
  %528 = vmatprep.subr.mxu0 0.0
  %529 = vmatpush1.msra.mxu0 0.0
  %530 = vmatprep.subr.mxu0 %v144
  %531 = vmatpush1.msra.mxu0 %v143
  %532 = vmatprep.subr.mxu0 %v128
  %533 = vmatpush1.msra.mxu0 %v127
  %534 = vmatprep.subr.mxu0 %v112
  %535 = vmatpush1.msra.mxu0 %v111
  %536 = vmatprep.subr.mxu0 %v96
  %537 = vmatpush1.msra.mxu0 %v95
  %538 = vmatprep.subr.mxu0 %v80
  %539 = vmatpush1.msra.mxu0 %v79
  %540 = vmatprep.subr.mxu0 %v64
  %541 = vmatpush1.msra.mxu0 %v63
  %542 = vmatprep.subr.mxu0 %v48
  %543 = vmatpush1.msra.mxu0 %v47
  %544 = vmatprep.subr.mxu0 %v32
  %545 = vmatpush1.msra.mxu0 %v31
  %546 = vmatprep.subr.mxu0 0.0
  %547 = vmatpush2.msra.mxu0 0.0
  %548 = vmatprep.subr.mxu0 0.0
  %549 = vmatpush2.msra.mxu0 0.0
  %550 = vmatprep.subr.mxu0 0.0
  %551 = vmatpush2.msra.mxu0 0.0
  %552 = vmatprep.subr.mxu0 0.0
  %553 = vmatpush2.msra.mxu0 0.0
  %554 = vmatprep.subr.mxu0 0.0
  %555 = vmatpush2.msra.mxu0 0.0
  %556 = vmatprep.subr.mxu0 0.0
  %557 = vmatpush2.msra.mxu0 0.0
  %558 = vmatprep.subr.mxu0 0.0
  %559 = vmatpush2.msra.mxu0 0.0
  %560 = vmatprep.subr.mxu0 0.0
  %561 = vmatpush2.msra.mxu0 0.0
  %562 = vmatprep.subr.mxu0 0.0
  %563 = vmatpush2.msra.mxu0 0.0
  %564 = vmatprep.subr.mxu0 0.0
  %565 = vmatpush2.msra.mxu0 0.0
  %566 = vmatprep.subr.mxu0 0.0
  %567 = vmatpush2.msra.mxu0 0.0
  %568 = vmatprep.subr.mxu0 0.0
  %569 = vmatpush2.msra.mxu0 0.0
  %570 = vmatprep.subr.mxu0 0.0
  %571 = vmatpush2.msra.mxu0 0.0
  %572 = vmatprep.subr.mxu0 0.0
  %573 = vmatpush2.msra.mxu0 0.0
  %574 = vmatprep.subr.mxu0 0.0
  %575 = vmatpush2.msra.mxu0 0.0
  %576 = vmatprep.subr.mxu0 0.0
  %577 = vmatpush2.msra.mxu0 0.0
  %578 = vmatprep.mubr.f32.mxu0 0.0
  %579 = vmatmul.mubr.f32.gmra.mxu0 %v157
  %v580 = vpop.f32.mrf.mxu0
  %v581 = vadd.f32 %v153, %v580
  %v582 = vpop.f32.mrf.mxu0
  %v583 = vadd.f32 %v153, %v582
  %584 = vdwg.mxu0
  %585 = vmatprep.subr.mxu0 0.0
  %586 = vmatpush1.msra.mxu0 0.0
  %587 = vmatprep.subr.mxu0 0.0
  %588 = vmatpush1.msra.mxu0 0.0
  %589 = vmatprep.subr.mxu0 0.0
  %590 = vmatpush1.msra.mxu0 0.0
  %591 = vmatprep.subr.mxu0 0.0
  %592 = vmatpush1.msra.mxu0 0.0
  %593 = vmatprep.subr.mxu0 0.0
  %594 = vmatpush1.msra.mxu0 0.0
  %595 = vmatprep.subr.mxu0 0.0
  %596 = vmatpush1.msra.mxu0 0.0
  %597 = vmatprep.subr.mxu0 0.0
  %598 = vmatpush1.msra.mxu0 0.0
  %599 = vmatprep.subr.mxu0 0.0
  %600 = vmatpush1.msra.mxu0 0.0
  %601 = vmatprep.subr.mxu0 %v146
  %602 = vmatpush1.msra.mxu0 %v145
  %603 = vmatprep.subr.mxu0 %v130
  %604 = vmatpush1.msra.mxu0 %v129
  %605 = vmatprep.subr.mxu0 %v114
  %606 = vmatpush1.msra.mxu0 %v113
  %607 = vmatprep.subr.mxu0 %v98
  %608 = vmatpush1.msra.mxu0 %v97
  %609 = vmatprep.subr.mxu0 %v82
  %610 = vmatpush1.msra.mxu0 %v81
  %611 = vmatprep.subr.mxu0 %v66
  %612 = vmatpush1.msra.mxu0 %v65
  %613 = vmatprep.subr.mxu0 %v50
  %614 = vmatpush1.msra.mxu0 %v49
  %615 = vmatprep.subr.mxu0 %v34
  %616 = vmatpush1.msra.mxu0 %v33
  %617 = vmatprep.subr.mxu0 0.0
  %618 = vmatpush2.msra.mxu0 0.0
  %619 = vmatprep.subr.mxu0 0.0
  %620 = vmatpush2.msra.mxu0 0.0
  %621 = vmatprep.subr.mxu0 0.0
  %622 = vmatpush2.msra.mxu0 0.0
  %623 = vmatprep.subr.mxu0 0.0
  %624 = vmatpush2.msra.mxu0 0.0
  %625 = vmatprep.subr.mxu0 0.0
  %626 = vmatpush2.msra.mxu0 0.0
  %627 = vmatprep.subr.mxu0 0.0
  %628 = vmatpush2.msra.mxu0 0.0
  %629 = vmatprep.subr.mxu0 0.0
  %630 = vmatpush2.msra.mxu0 0.0
  %631 = vmatprep.subr.mxu0 0.0
  %632 = vmatpush2.msra.mxu0 0.0
  %633 = vmatprep.subr.mxu0 0.0
  %634 = vmatpush2.msra.mxu0 0.0
  %635 = vmatprep.subr.mxu0 0.0
  %636 = vmatpush2.msra.mxu0 0.0
  %637 = vmatprep.subr.mxu0 0.0
  %638 = vmatpush2.msra.mxu0 0.0
  %639 = vmatprep.subr.mxu0 0.0
  %640 = vmatpush2.msra.mxu0 0.0
  %641 = vmatprep.subr.mxu0 0.0
  %642 = vmatpush2.msra.mxu0 0.0
  %643 = vmatprep.subr.mxu0 0.0
  %644 = vmatpush2.msra.mxu0 0.0
  %645 = vmatprep.subr.mxu0 0.0
  %646 = vmatpush2.msra.mxu0 0.0
  %647 = vmatprep.subr.mxu0 0.0
  %648 = vmatpush2.msra.mxu0 0.0
  %649 = vmatprep.mubr.f32.mxu0 0.0
  %650 = vmatmul.mubr.f32.gmra.mxu0 %v157
  %v651 = vpop.f32.mrf.mxu0
  %v652 = vadd.f32 %v153, %v651
  %v653 = vpop.f32.mrf.mxu0
  %v654 = vadd.f32 %v153, %v653
  %655 = vdwg.mxu0
  %656 = vmatprep.subr.mxu0 0.0
  %657 = vmatpush1.msra.mxu0 0.0
  %658 = vmatprep.subr.mxu0 0.0
  %659 = vmatpush1.msra.mxu0 0.0
  %660 = vmatprep.subr.mxu0 0.0
  %661 = vmatpush1.msra.mxu0 0.0
  %662 = vmatprep.subr.mxu0 0.0
  %663 = vmatpush1.msra.mxu0 0.0
  %664 = vmatprep.subr.mxu0 0.0
  %665 = vmatpush1.msra.mxu0 0.0
  %666 = vmatprep.subr.mxu0 0.0
  %667 = vmatpush1.msra.mxu0 0.0
  %668 = vmatprep.subr.mxu0 0.0
  %669 = vmatpush1.msra.mxu0 0.0
  %670 = vmatprep.subr.mxu0 0.0
  %671 = vmatpush1.msra.mxu0 0.0
  %672 = vmatprep.subr.mxu0 %v148
  %673 = vmatpush1.msra.mxu0 %v147
  %674 = vmatprep.subr.mxu0 %v132
  %675 = vmatpush1.msra.mxu0 %v131
  %676 = vmatprep.subr.mxu0 %v116
  %677 = vmatpush1.msra.mxu0 %v115
  %678 = vmatprep.subr.mxu0 %v100
  %679 = vmatpush1.msra.mxu0 %v99
  %680 = vmatprep.subr.mxu0 %v84
  %681 = vmatpush1.msra.mxu0 %v83
  %682 = vmatprep.subr.mxu0 %v68
  %683 = vmatpush1.msra.mxu0 %v67
  %684 = vmatprep.subr.mxu0 %v52
  %685 = vmatpush1.msra.mxu0 %v51
  %686 = vmatprep.subr.mxu0 %v36
  %687 = vmatpush1.msra.mxu0 %v35
  %688 = vmatprep.subr.mxu0 0.0
  %689 = vmatpush2.msra.mxu0 0.0
  %690 = vmatprep.subr.mxu0 0.0
  %691 = vmatpush2.msra.mxu0 0.0
  %692 = vmatprep.subr.mxu0 0.0
  %693 = vmatpush2.msra.mxu0 0.0
  %694 = vmatprep.subr.mxu0 0.0
  %695 = vmatpush2.msra.mxu0 0.0
  %696 = vmatprep.subr.mxu0 0.0
  %697 = vmatpush2.msra.mxu0 0.0
  %698 = vmatprep.subr.mxu0 0.0
  %699 = vmatpush2.msra.mxu0 0.0
  %700 = vmatprep.subr.mxu0 0.0
  %701 = vmatpush2.msra.mxu0 0.0
  %702 = vmatprep.subr.mxu0 0.0
  %703 = vmatpush2.msra.mxu0 0.0
  %704 = vmatprep.subr.mxu0 0.0
  %705 = vmatpush2.msra.mxu0 0.0
  %706 = vmatprep.subr.mxu0 0.0
  %707 = vmatpush2.msra.mxu0 0.0
  %708 = vmatprep.subr.mxu0 0.0
  %709 = vmatpush2.msra.mxu0 0.0
  %710 = vmatprep.subr.mxu0 0.0
  %711 = vmatpush2.msra.mxu0 0.0
  %712 = vmatprep.subr.mxu0 0.0
  %713 = vmatpush2.msra.mxu0 0.0
  %714 = vmatprep.subr.mxu0 0.0
  %715 = vmatpush2.msra.mxu0 0.0
  %716 = vmatprep.subr.mxu0 0.0
  %717 = vmatpush2.msra.mxu0 0.0
  %718 = vmatprep.subr.mxu0 0.0
  %719 = vmatpush2.msra.mxu0 0.0
  %720 = vmatprep.mubr.f32.mxu0 0.0
  %721 = vmatmul.mubr.f32.gmra.mxu0 %v157
  %v722 = vpop.f32.mrf.mxu0
  %v723 = vadd.f32 %v153, %v722
  %v724 = vpop.f32.mrf.mxu0
  %v725 = vadd.f32 %v153, %v724
  %726 = vdwg.mxu0
  %v727 = vadd.f32 %v226, %v228
  %v728 = vadd.f32 %v727, %v297
  %v729 = vadd.f32 %v728, %v299
  %v730 = vadd.f32 %v729, %v368
  %v731 = vadd.f32 %v730, %v370
  %v732 = vadd.f32 %v731, %v439
  %v733 = vadd.f32 %v732, %v441
  %v734 = vadd.f32 %v733, %v510
  %v735 = vadd.f32 %v734, %v512
  %v736 = vadd.f32 %v735, %v581
  %v737 = vadd.f32 %v736, %v583
  %v738 = vadd.f32 %v737, %v652
  %v739 = vadd.f32 %v738, %v654
  %v740 = vadd.f32 %v739, %v723
  %v741 = vadd.f32 %v740, %v725
  %742 = vadd.xlane.f32.xlu0 %v741
  %v743 = vpop.xlane.xlu0 %742
  %v744 = vmul.f32 %v743, 0.00048828125
  %v745 = vmul.f32 %v226, %v226
  %v746 = vmul.f32 %v228, %v228
  %v747 = vmul.f32 %v297, %v297
  %v748 = vmul.f32 %v299, %v299
  %v749 = vmul.f32 %v368, %v368
  %v750 = vmul.f32 %v370, %v370
  %v751 = vmul.f32 %v439, %v439
  %v752 = vmul.f32 %v441, %v441
  %v753 = vmul.f32 %v510, %v510
  %v754 = vmul.f32 %v512, %v512
  %v755 = vmul.f32 %v581, %v581
  %v756 = vmul.f32 %v583, %v583
  %v757 = vmul.f32 %v652, %v652
  %v758 = vmul.f32 %v654, %v654
  %v759 = vmul.f32 %v723, %v723
  %v760 = vmul.f32 %v725, %v725
  %v761 = vadd.f32 %v745, %v746
  %v762 = vadd.f32 %v761, %v747
  %v763 = vadd.f32 %v762, %v748
  %v764 = vadd.f32 %v763, %v749
  %v765 = vadd.f32 %v764, %v750
  %v766 = vadd.f32 %v765, %v751
  %v767 = vadd.f32 %v766, %v752
  %v768 = vadd.f32 %v767, %v753
  %v769 = vadd.f32 %v768, %v754
  %v770 = vadd.f32 %v769, %v755
  %v771 = vadd.f32 %v770, %v756
  %v772 = vadd.f32 %v771, %v757
  %v773 = vadd.f32 %v772, %v758
  %v774 = vadd.f32 %v773, %v759
  %v775 = vadd.f32 %v774, %v760
  %776 = vadd.xlane.f32.xlu0 %v775
  %v777 = vpop.xlane.xlu0 %776
  %v778 = vmul.f32 %v777, 0.00048828125
  %v779 = vmul.f32 %v744, %v744
  %v780 = vsub.f32 %v778, %v779
  %v781 = vmax.f32 %v780, 0.0
  %v782 = vld [vmem:[%s3] sm:$0xff]
  %v783 = vadd.f32 %v781, 1e-05
  %v784 = vrsqrt.pop %v783
  %v785 = vmul.f32 %v782, %v784
  %v786 = vld [vmem:[%s4] sm:$0xff]
  %v787 = vmul.f32 %v744, %v785
  %v788 = vsub.f32 %v786, %v787
  %790 = vset.pattern.permute.xlu0 0
  %791 = vperm.xlu0 %790, %v785
  %v792 = vpop.permute.xlu0 %791
  %v794 = vmul.f32 %v226, %v792
  %v795 = vmul.f32 %v228, %v792
  %v796 = vmul.f32 %v297, %v792
  %v797 = vmul.f32 %v299, %v792
  %v798 = vmul.f32 %v368, %v792
  %v799 = vmul.f32 %v370, %v792
  %v800 = vmul.f32 %v439, %v792
  %v801 = vmul.f32 %v441, %v792
  %v802 = vmul.f32 %v510, %v792
  %v803 = vmul.f32 %v512, %v792
  %v804 = vmul.f32 %v581, %v792
  %v805 = vmul.f32 %v583, %v792
  %v806 = vmul.f32 %v652, %v792
  %v807 = vmul.f32 %v654, %v792
  %v808 = vmul.f32 %v723, %v792
  %v809 = vmul.f32 %v725, %v792
  %811 = vset.pattern.permute.xlu0 0
  %812 = vperm.xlu0 %811, %v788
  %v813 = vpop.permute.xlu0 %812
  %v815 = vadd.f32 %v794, %v813
  %v816 = vadd.f32 %v795, %v813
  %v817 = vadd.f32 %v796, %v813
  %v818 = vadd.f32 %v797, %v813
  %v819 = vadd.f32 %v798, %v813
  %v820 = vadd.f32 %v799, %v813
  %v821 = vadd.f32 %v800, %v813
  %v822 = vadd.f32 %v801, %v813
  %v823 = vadd.f32 %v802, %v813
  %v824 = vadd.f32 %v803, %v813
  %v825 = vadd.f32 %v804, %v813
  %v826 = vadd.f32 %v805, %v813
  %v827 = vadd.f32 %v806, %v813
  %v828 = vadd.f32 %v807, %v813
  %v829 = vadd.f32 %v808, %v813
  %v830 = vadd.f32 %v809, %v813
  %vm831 = vcmp.ge.f32.partialorder %v815, 0.0
  %vm832 = vcmp.ge.f32.partialorder %v816, 0.0
  %vm833 = vcmp.ge.f32.partialorder %v817, 0.0
  %vm834 = vcmp.ge.f32.partialorder %v818, 0.0
  %vm835 = vcmp.ge.f32.partialorder %v819, 0.0
  %vm836 = vcmp.ge.f32.partialorder %v820, 0.0
  %vm837 = vcmp.ge.f32.partialorder %v821, 0.0
  %vm838 = vcmp.ge.f32.partialorder %v822, 0.0
  %vm839 = vcmp.ge.f32.partialorder %v823, 0.0
  %vm840 = vcmp.ge.f32.partialorder %v824, 0.0
  %vm841 = vcmp.ge.f32.partialorder %v825, 0.0
  %vm842 = vcmp.ge.f32.partialorder %v826, 0.0
  %vm843 = vcmp.ge.f32.partialorder %v827, 0.0
  %vm844 = vcmp.ge.f32.partialorder %v828, 0.0
  %vm845 = vcmp.ge.f32.partialorder %v829, 0.0
  %vm846 = vcmp.ge.f32.partialorder %v830, 0.0
  %v847 = vmul.f32 %v815, 0.2
  %v848 = vmul.f32 %v816, 0.2
  %v849 = vmul.f32 %v817, 0.2
  %v850 = vmul.f32 %v818, 0.2
  %v851 = vmul.f32 %v819, 0.2
  %v852 = vmul.f32 %v820, 0.2
  %v853 = vmul.f32 %v821, 0.2
  %v854 = vmul.f32 %v822, 0.2
  %v855 = vmul.f32 %v823, 0.2
  %v856 = vmul.f32 %v824, 0.2
  %v857 = vmul.f32 %v825, 0.2
  %v858 = vmul.f32 %v826, 0.2
  %v859 = vmul.f32 %v827, 0.2
  %v860 = vmul.f32 %v828, 0.2
  %v861 = vmul.f32 %v829, 0.2
  %v862 = vmul.f32 %v830, 0.2
  %v863 = vsel %vm831, %v815, %v847
  %v864 = vsel %vm832, %v816, %v848
  %v865 = vsel %vm833, %v817, %v849
  %v866 = vsel %vm834, %v818, %v850
  %v867 = vsel %vm835, %v819, %v851
  %v868 = vsel %vm836, %v820, %v852
  %v869 = vsel %vm837, %v821, %v853
  %v870 = vsel %vm838, %v822, %v854
  %v871 = vsel %vm839, %v823, %v855
  %v872 = vsel %vm840, %v824, %v856
  %v873 = vsel %vm841, %v825, %v857
  %v874 = vsel %vm842, %v826, %v858
  %v875 = vsel %vm843, %v827, %v859
  %v876 = vsel %vm844, %v828, %v860
  %v877 = vsel %vm845, %v829, %v861
  %v878 = vsel %vm846, %v830, %v862
  %879 = vst [vmem:[%s5] sm:$0xff] %v863
  %880 = vst [vmem:[%s5 + $0x8] sm:$0xff] %v864
  %881 = vst [vmem:[%s5 + $0x10] sm:$0xff] %v865
  %882 = vst [vmem:[%s5 + $0x18] sm:$0xff] %v866
  %883 = vst [vmem:[%s5 + $0x20] sm:$0xff] %v867
  %884 = vst [vmem:[%s5 + $0x28] sm:$0xff] %v868
  %885 = vst [vmem:[%s5 + $0x30] sm:$0xff] %v869
  %886 = vst [vmem:[%s5 + $0x38] sm:$0xff] %v870
  %887 = vst [vmem:[%s5 + $0x40] sm:$0xff] %v871
  %888 = vst [vmem:[%s5 + $0x48] sm:$0xff] %v872
  %889 = vst [vmem:[%s5 + $0x50] sm:$0xff] %v873
  %890 = vst [vmem:[%s5 + $0x58] sm:$0xff] %v874
  %891 = vst [vmem:[%s5 + $0x60] sm:$0xff] %v875
  %892 = vst [vmem:[%s5 + $0x68] sm:$0xff] %v876
  %893 = vst [vmem:[%s5 + $0x70] sm:$0xff] %v877
  %894 = vst [vmem:[%s5 + $0x78] sm:$0xff] %v878
  // Predicated region
  $region22: #{model_b_periodic_forward.7} parent=0 // pred_check
    _
  $region23: #{model_b_periodic_forward.7} parent=0 // pred_check_branch
    %896 = sbr.rel (0) target = $region25
  $region24: #{model_b_periodic_forward.7} parent=0 // pred_region
    _
  $region25: #{model_b_periodic_forward.7} parent=0 // pred_fallthru
    _
  // Predicated region
  $region26: #{model_b_periodic_forward.7} parent=0 // pred_check
    _
  $region27: #{model_b_periodic_forward.7} parent=0 // pred_check_branch
    %898 = sbr.rel (0) target = $region29
  $region28: #{model_b_periodic_forward.7} parent=0 // pred_region
    _
  $region29: #{model_b_periodic_forward.7} parent=0 // pred_fallthru
    _

// kernel: model_b_periodic_forward.8
$region0: #{model_b_periodic_forward.8}
  #allocation0 [shape = 'u32[]', space=smem, size = 0x4, offset = 0x4, fixed_abs, tag = 'smem constant byte address 0x4 - core index']
  #allocation1 [shape = 'u32[144,128]{1,0:T(1,128)}', space=vmem, size = 0x12000, scoped, tag = 'internal scratch']
  %s0 = inlined_call_operand.vmem [shape: f32[128,512], index: 0, kind: input, shape index: {}]
  %s1 = inlined_call_operand.vmem [shape: f32[16,128], index: 1, kind: input, shape index: {}]
  %s2 = inlined_call_operand.vmem [shape: f32[16,1], index: 2, kind: input, shape index: {}]
  %s3 = inlined_call_operand.vmem [shape: f32[16,1], index: 3, kind: input, shape index: {}]
  %s4 = inlined_call_operand.vmem [shape: f32[16,1], index: 4, kind: input, shape index: {}]
  %s5 = inlined_call_operand.vmem [shape: f32[16,512], index: 5, kind: output, shape index: {}]
  %s6 = sld [smem:[#allocation0]]
  $region30: #{model_b_periodic_forward.8} parent=0
    _
  %s8 = ssub.s32 1, %s6
  %s9 = scalar_select 0, %s8, %s6
  // Predicated region
  $region2: #{model_b_periodic_forward.8} parent=0 // pred_check
    _
  $region3: #{model_b_periodic_forward.8} parent=0 // pred_check_branch
    %11 = sbr.rel (0) target = $region5
  $region4: #{model_b_periodic_forward.8} parent=0 // pred_region
    _
  $region5: #{model_b_periodic_forward.8} parent=0 // pred_fallthru
    _
  // Predicated region
  $region6: #{model_b_periodic_forward.8} parent=0 // pred_check
    _
  $region7: #{model_b_periodic_forward.8} parent=0 // pred_check_branch
    %13 = sbr.rel (0) target = $region9
  $region8: #{model_b_periodic_forward.8} parent=0 // pred_region
    _
  $region9: #{model_b_periodic_forward.8} parent=0 // pred_fallthru
    _
  // Predicated region
  $region10: #{model_b_periodic_forward.8} parent=0 // pred_check
    _
  $region11: #{model_b_periodic_forward.8} parent=0 // pred_check_branch
    %15 = sbr.rel (0) target = $region13
  $region12: #{model_b_periodic_forward.8} parent=0 // pred_region
    _
  $region13: #{model_b_periodic_forward.8} parent=0 // pred_fallthru
    _
  // Predicated region
  $region14: #{model_b_periodic_forward.8} parent=0 // pred_check
    _
  $region15: #{model_b_periodic_forward.8} parent=0 // pred_check_branch
    %17 = sbr.rel (0) target = $region17
  $region16: #{model_b_periodic_forward.8} parent=0 // pred_region
    _
  $region17: #{model_b_periodic_forward.8} parent=0 // pred_fallthru
    _
  // Predicated region
  $region18: #{model_b_periodic_forward.8} parent=0 // pred_check
    _
  $region19: #{model_b_periodic_forward.8} parent=0 // pred_check_branch
    %19 = sbr.rel (0) target = $region21
  $region20: #{model_b_periodic_forward.8} parent=0 // pred_region
    _
  $region21: #{model_b_periodic_forward.8} parent=0 // pred_fallthru
    _
  %v20 = vld [vmem:[%s1] sm:$0xff]
  %v21 = vld [vmem:[%s1 + $0x8] sm:$0xff]
  %v22 = vld [vmem:[%s0] sm:$0xff]
  %v23 = vld [vmem:[%s0 + $0x8] sm:$0xff]
  %v24 = vld [vmem:[%s0 + $0x10] sm:$0xff]
  %v25 = vld [vmem:[%s0 + $0x18] sm:$0xff]
  %v26 = vld [vmem:[%s0 + $0x20] sm:$0xff]
  %v27 = vld [vmem:[%s0 + $0x28] sm:$0xff]
  %v28 = vld [vmem:[%s0 + $0x30] sm:$0xff]
  %v29 = vld [vmem:[%s0 + $0x38] sm:$0xff]
  %v30 = vld [vmem:[%s0 + $0x40] sm:$0xff]
  %v31 = vld [vmem:[%s0 + $0x48] sm:$0xff]
  %v32 = vld [vmem:[%s0 + $0x50] sm:$0xff]
  %v33 = vld [vmem:[%s0 + $0x58] sm:$0xff]
  %v34 = vld [vmem:[%s0 + $0x60] sm:$0xff]
  %v35 = vld [vmem:[%s0 + $0x68] sm:$0xff]
  %v36 = vld [vmem:[%s0 + $0x70] sm:$0xff]
  %v37 = vld [vmem:[%s0 + $0x78] sm:$0xff]
  %v38 = vld [vmem:[%s0 + $0x80] sm:$0xff]
  %v39 = vld [vmem:[%s0 + $0x88] sm:$0xff]
  %v40 = vld [vmem:[%s0 + $0x90] sm:$0xff]
  %v41 = vld [vmem:[%s0 + $0x98] sm:$0xff]
  %v42 = vld [vmem:[%s0 + $0xa0] sm:$0xff]
  %v43 = vld [vmem:[%s0 + $0xa8] sm:$0xff]
  %v44 = vld [vmem:[%s0 + $0xb0] sm:$0xff]
  %v45 = vld [vmem:[%s0 + $0xb8] sm:$0xff]
  %v46 = vld [vmem:[%s0 + $0xc0] sm:$0xff]
  %v47 = vld [vmem:[%s0 + $0xc8] sm:$0xff]
  %v48 = vld [vmem:[%s0 + $0xd0] sm:$0xff]
  %v49 = vld [vmem:[%s0 + $0xd8] sm:$0xff]
  %v50 = vld [vmem:[%s0 + $0xe0] sm:$0xff]
  %v51 = vld [vmem:[%s0 + $0xe8] sm:$0xff]
  %v52 = vld [vmem:[%s0 + $0xf0] sm:$0xff]
  %v53 = vld [vmem:[%s0 + $0xf8] sm:$0xff]
  %v54 = vld [vmem:[%s0 + $0x100] sm:$0xff]
  %v55 = vld [vmem:[%s0 + $0x108] sm:$0xff]
  %v56 = vld [vmem:[%s0 + $0x110] sm:$0xff]
  %v57 = vld [vmem:[%s0 + $0x118] sm:$0xff]
  %v58 = vld [vmem:[%s0 + $0x120] sm:$0xff]
  %v59 = vld [vmem:[%s0 + $0x128] sm:$0xff]
  %v60 = vld [vmem:[%s0 + $0x130] sm:$0xff]
  %v61 = vld [vmem:[%s0 + $0x138] sm:$0xff]
  %v62 = vld [vmem:[%s0 + $0x140] sm:$0xff]
  %v63 = vld [vmem:[%s0 + $0x148] sm:$0xff]
  %v64 = vld [vmem:[%s0 + $0x150] sm:$0xff]
  %v65 = vld [vmem:[%s0 + $0x158] sm:$0xff]
  %v66 = vld [vmem:[%s0 + $0x160] sm:$0xff]
  %v67 = vld [vmem:[%s0 + $0x168] sm:$0xff]
  %v68 = vld [vmem:[%s0 + $0x170] sm:$0xff]
  %v69 = vld [vmem:[%s0 + $0x178] sm:$0xff]
  %v70 = vld [vmem:[%s0 + $0x180] sm:$0xff]
  %v71 = vld [vmem:[%s0 + $0x188] sm:$0xff]
  %v72 = vld [vmem:[%s0 + $0x190] sm:$0xff]
  %v73 = vld [vmem:[%s0 + $0x198] sm:$0xff]
  %v74 = vld [vmem:[%s0 + $0x1a0] sm:$0xff]
  %v75 = vld [vmem:[%s0 + $0x1a8] sm:$0xff]
  %v76 = vld [vmem:[%s0 + $0x1b0] sm:$0xff]
  %v77 = vld [vmem:[%s0 + $0x1b8] sm:$0xff]
  %v78 = vld [vmem:[%s0 + $0x1c0] sm:$0xff]
  %v79 = vld [vmem:[%s0 + $0x1c8] sm:$0xff]
  %v80 = vld [vmem:[%s0 + $0x1d0] sm:$0xff]
  %v81 = vld [vmem:[%s0 + $0x1d8] sm:$0xff]
  %v82 = vld [vmem:[%s0 + $0x1e0] sm:$0xff]
  %v83 = vld [vmem:[%s0 + $0x1e8] sm:$0xff]
  %v84 = vld [vmem:[%s0 + $0x1f0] sm:$0xff]
  %v85 = vld [vmem:[%s0 + $0x1f8] sm:$0xff]
  %v86 = vld [vmem:[%s2] sm:$0xff]
  %v87 = vld [vmem:[%s2 + $0x8] sm:$0xff]
  %89 = vset.pattern.permute.xlu0 0
  %90 = vperm.xlu0 %89, %v86
  %v91 = vpop.permute.xlu0 %90
  %94 = vset.pattern.permute.xlu0 0
  %95 = vperm.xlu0 %94, %v87
  %v96 = vpop.permute.xlu0 %95
  %98 = vmatprep.subr.mxu0 %v83
  %99 = vmatpush1.msra.mxu0 %v82
  %100 = vmatprep.subr.mxu0 %v79
  %101 = vmatpush1.msra.mxu0 %v78
  %102 = vmatprep.subr.mxu0 %v75
  %103 = vmatpush1.msra.mxu0 %v74
  %104 = vmatprep.subr.mxu0 %v71
  %105 = vmatpush1.msra.mxu0 %v70
  %106 = vmatprep.subr.mxu0 %v67
  %107 = vmatpush1.msra.mxu0 %v66
  %108 = vmatprep.subr.mxu0 %v63
  %109 = vmatpush1.msra.mxu0 %v62
  %110 = vmatprep.subr.mxu0 %v59
  %111 = vmatpush1.msra.mxu0 %v58
  %112 = vmatprep.subr.mxu0 %v55
  %113 = vmatpush1.msra.mxu0 %v54
  %114 = vmatprep.subr.mxu0 %v51
  %115 = vmatpush1.msra.mxu0 %v50
  %116 = vmatprep.subr.mxu0 %v47
  %117 = vmatpush1.msra.mxu0 %v46
  %118 = vmatprep.subr.mxu0 %v43
  %119 = vmatpush1.msra.mxu0 %v42
  %120 = vmatprep.subr.mxu0 %v39
  %121 = vmatpush1.msra.mxu0 %v38
  %122 = vmatprep.subr.mxu0 %v35
  %123 = vmatpush1.msra.mxu0 %v34
  %124 = vmatprep.subr.mxu0 %v31
  %125 = vmatpush1.msra.mxu0 %v30
  %126 = vmatprep.subr.mxu0 %v27
  %127 = vmatpush1.msra.mxu0 %v26
  %128 = vmatprep.subr.mxu0 %v23
  %129 = vmatpush1.msra.mxu0 %v22
  %130 = vmatprep.subr.mxu0 0.0
  %131 = vmatpush2.msra.mxu0 0.0
  %132 = vmatprep.subr.mxu0 0.0
  %133 = vmatpush2.msra.mxu0 0.0
  %134 = vmatprep.subr.mxu0 0.0
  %135 = vmatpush2.msra.mxu0 0.0
  %136 = vmatprep.subr.mxu0 0.0
  %137 = vmatpush2.msra.mxu0 0.0
  %138 = vmatprep.subr.mxu0 0.0
  %139 = vmatpush2.msra.mxu0 0.0
  %140 = vmatprep.subr.mxu0 0.0
  %141 = vmatpush2.msra.mxu0 0.0
  %142 = vmatprep.subr.mxu0 0.0
  %143 = vmatpush2.msra.mxu0 0.0
  %144 = vmatprep.subr.mxu0 0.0
  %145 = vmatpush2.msra.mxu0 0.0
  %146 = vmatprep.subr.mxu0 0.0
  %147 = vmatpush2.msra.mxu0 0.0
  %148 = vmatprep.subr.mxu0 0.0
  %149 = vmatpush2.msra.mxu0 0.0
  %150 = vmatprep.subr.mxu0 0.0
  %151 = vmatpush2.msra.mxu0 0.0
  %152 = vmatprep.subr.mxu0 0.0
  %153 = vmatpush2.msra.mxu0 0.0
  %154 = vmatprep.subr.mxu0 0.0
  %155 = vmatpush2.msra.mxu0 0.0
  %156 = vmatprep.subr.mxu0 0.0
  %157 = vmatpush2.msra.mxu0 0.0
  %158 = vmatprep.subr.mxu0 0.0
  %159 = vmatpush2.msra.mxu0 0.0
  %160 = vmatprep.subr.mxu0 0.0
  %161 = vmatpush2.msra.mxu0 0.0
  %162 = vmatprep.mubr.f32.mxu0 0.0
  %163 = vmatmul.mubr.f32.gmra.mxu0 %v20
  %v164 = vpop.f32.mrf.mxu0
  %v165 = vadd.f32 %v91, %v164
  %v166 = vpop.f32.mrf.mxu0
  %v167 = vadd.f32 %v91, %v166
  %168 = vmatprep.mubr.f32.mxu0 0.0
  %169 = vmatmul.mubr.f32.gmra.mxu0 %v21
  %v170 = vpop.f32.mrf.mxu0
  %v171 = vadd.f32 %v96, %v170
  %v172 = vpop.f32.mrf.mxu0
  %v173 = vadd.f32 %v96, %v172
  %174 = vdwg.mxu0
  %175 = vmatprep.subr.mxu0 %v85
  %176 = vmatpush1.msra.mxu0 %v84
  %177 = vmatprep.subr.mxu0 %v81
  %178 = vmatpush1.msra.mxu0 %v80
  %179 = vmatprep.subr.mxu0 %v77
  %180 = vmatpush1.msra.mxu0 %v76
  %181 = vmatprep.subr.mxu0 %v73
  %182 = vmatpush1.msra.mxu0 %v72
  %183 = vmatprep.subr.mxu0 %v69
  %184 = vmatpush1.msra.mxu0 %v68
  %185 = vmatprep.subr.mxu0 %v65
  %186 = vmatpush1.msra.mxu0 %v64
  %187 = vmatprep.subr.mxu0 %v61
  %188 = vmatpush1.msra.mxu0 %v60
  %189 = vmatprep.subr.mxu0 %v57
  %190 = vmatpush1.msra.mxu0 %v56
  %191 = vmatprep.subr.mxu0 %v53
  %192 = vmatpush1.msra.mxu0 %v52
  %193 = vmatprep.subr.mxu0 %v49
  %194 = vmatpush1.msra.mxu0 %v48
  %195 = vmatprep.subr.mxu0 %v45
  %196 = vmatpush1.msra.mxu0 %v44
  %197 = vmatprep.subr.mxu0 %v41
  %198 = vmatpush1.msra.mxu0 %v40
  %199 = vmatprep.subr.mxu0 %v37
  %200 = vmatpush1.msra.mxu0 %v36
  %201 = vmatprep.subr.mxu0 %v33
  %202 = vmatpush1.msra.mxu0 %v32
  %203 = vmatprep.subr.mxu0 %v29
  %204 = vmatpush1.msra.mxu0 %v28
  %205 = vmatprep.subr.mxu0 %v25
  %206 = vmatpush1.msra.mxu0 %v24
  %207 = vmatprep.subr.mxu0 0.0
  %208 = vmatpush2.msra.mxu0 0.0
  %209 = vmatprep.subr.mxu0 0.0
  %210 = vmatpush2.msra.mxu0 0.0
  %211 = vmatprep.subr.mxu0 0.0
  %212 = vmatpush2.msra.mxu0 0.0
  %213 = vmatprep.subr.mxu0 0.0
  %214 = vmatpush2.msra.mxu0 0.0
  %215 = vmatprep.subr.mxu0 0.0
  %216 = vmatpush2.msra.mxu0 0.0
  %217 = vmatprep.subr.mxu0 0.0
  %218 = vmatpush2.msra.mxu0 0.0
  %219 = vmatprep.subr.mxu0 0.0
  %220 = vmatpush2.msra.mxu0 0.0
  %221 = vmatprep.subr.mxu0 0.0
  %222 = vmatpush2.msra.mxu0 0.0
  %223 = vmatprep.subr.mxu0 0.0
  %224 = vmatpush2.msra.mxu0 0.0
  %225 = vmatprep.subr.mxu0 0.0
  %226 = vmatpush2.msra.mxu0 0.0
  %227 = vmatprep.subr.mxu0 0.0
  %228 = vmatpush2.msra.mxu0 0.0
  %229 = vmatprep.subr.mxu0 0.0
  %230 = vmatpush2.msra.mxu0 0.0
  %231 = vmatprep.subr.mxu0 0.0
  %232 = vmatpush2.msra.mxu0 0.0
  %233 = vmatprep.subr.mxu0 0.0
  %234 = vmatpush2.msra.mxu0 0.0
  %235 = vmatprep.subr.mxu0 0.0
  %236 = vmatpush2.msra.mxu0 0.0
  %237 = vmatprep.subr.mxu0 0.0
  %238 = vmatpush2.msra.mxu0 0.0
  %239 = vmatprep.mubr.f32.mxu0 0.0
  %240 = vmatmul.mubr.f32.gmra.mxu0 %v20
  %v241 = vpop.f32.mrf.mxu0
  %v242 = vadd.f32 %v91, %v241
  %v243 = vpop.f32.mrf.mxu0
  %v244 = vadd.f32 %v91, %v243
  %245 = vmatprep.mubr.f32.mxu0 0.0
  %246 = vmatmul.mubr.f32.gmra.mxu0 %v21
  %v247 = vpop.f32.mrf.mxu0
  %v248 = vadd.f32 %v96, %v247
  %v249 = vpop.f32.mrf.mxu0
  %v250 = vadd.f32 %v96, %v249
  %251 = vdwg.mxu0
  %v252 = vadd.f32 %v165, %v167
  %v253 = vadd.f32 %v252, %v242
  %v254 = vadd.f32 %v253, %v244
  %255 = vadd.xlane.f32.xlu0 %v254
  %v256 = vpop.xlane.xlu0 %255
  %v257 = vadd.f32 %v171, %v173
  %v258 = vadd.f32 %v257, %v248
  %v259 = vadd.f32 %v258, %v250
  %260 = vadd.xlane.f32.xlu0 %v259
  %v261 = vpop.xlane.xlu0 %260
  %v262 = vmul.f32 %v256, 0.001953125
  %v263 = vmul.f32 %v261, 0.001953125
  %v264 = vmul.f32 %v165, %v165
  %v265 = vmul.f32 %v167, %v167
  %v266 = vmul.f32 %v242, %v242
  %v267 = vmul.f32 %v244, %v244
  %v268 = vmul.f32 %v171, %v171
  %v269 = vmul.f32 %v173, %v173
  %v270 = vmul.f32 %v248, %v248
  %v271 = vmul.f32 %v250, %v250
  %v272 = vadd.f32 %v264, %v265
  %v273 = vadd.f32 %v272, %v266
  %v274 = vadd.f32 %v273, %v267
  %275 = vadd.xlane.f32.xlu0 %v274
  %v276 = vpop.xlane.xlu0 %275
  %v277 = vadd.f32 %v268, %v269
  %v278 = vadd.f32 %v277, %v270
  %v279 = vadd.f32 %v278, %v271
  %280 = vadd.xlane.f32.xlu0 %v279
  %v281 = vpop.xlane.xlu0 %280
  %v282 = vmul.f32 %v276, 0.001953125
  %v283 = vmul.f32 %v281, 0.001953125
  %v284 = vmul.f32 %v262, %v262
  %v285 = vmul.f32 %v263, %v263
  %v286 = vsub.f32 %v282, %v284
  %v287 = vsub.f32 %v283, %v285
  %v288 = vmax.f32 %v286, 0.0
  %v289 = vmax.f32 %v287, 0.0
  %v290 = vld [vmem:[%s3] sm:$0xff]
  %v291 = vld [vmem:[%s3 + $0x8] sm:$0xff]
  %v292 = vadd.f32 %v288, 1e-05
  %v293 = vadd.f32 %v289, 1e-05
  %v294 = vrsqrt.pop %v292
  %v295 = vrsqrt.pop %v293
  %v296 = vmul.f32 %v290, %v294
  %v297 = vmul.f32 %v291, %v295
  %v298 = vld [vmem:[%s4] sm:$0xff]
  %v299 = vld [vmem:[%s4 + $0x8] sm:$0xff]
  %v300 = vmul.f32 %v262, %v296
  %v301 = vmul.f32 %v263, %v297
  %v302 = vsub.f32 %v298, %v300
  %v303 = vsub.f32 %v299, %v301
  %305 = vset.pattern.permute.xlu0 0
  %306 = vperm.xlu0 %305, %v296
  %v307 = vpop.permute.xlu0 %306
  %310 = vset.pattern.permute.xlu0 0
  %311 = vperm.xlu0 %310, %v297
  %v312 = vpop.permute.xlu0 %311
  %v314 = vmul.f32 %v165, %v307
  %v315 = vmul.f32 %v167, %v307
  %v316 = vmul.f32 %v242, %v307
  %v317 = vmul.f32 %v244, %v307
  %v318 = vmul.f32 %v171, %v312
  %v319 = vmul.f32 %v173, %v312
  %v320 = vmul.f32 %v248, %v312
  %v321 = vmul.f32 %v250, %v312
  %323 = vset.pattern.permute.xlu0 0
  %324 = vperm.xlu0 %323, %v302
  %v325 = vpop.permute.xlu0 %324
  %328 = vset.pattern.permute.xlu0 0
  %329 = vperm.xlu0 %328, %v303
  %v330 = vpop.permute.xlu0 %329
  %v332 = vadd.f32 %v314, %v325
  %v333 = vadd.f32 %v315, %v325
  %v334 = vadd.f32 %v316, %v325
  %v335 = vadd.f32 %v317, %v325
  %v336 = vadd.f32 %v318, %v330
  %v337 = vadd.f32 %v319, %v330
  %v338 = vadd.f32 %v320, %v330
  %v339 = vadd.f32 %v321, %v330
  %vm340 = vcmp.ge.f32.partialorder %v332, 0.0
  %vm341 = vcmp.ge.f32.partialorder %v333, 0.0
  %vm342 = vcmp.ge.f32.partialorder %v334, 0.0
  %vm343 = vcmp.ge.f32.partialorder %v335, 0.0
  %vm344 = vcmp.ge.f32.partialorder %v336, 0.0
  %vm345 = vcmp.ge.f32.partialorder %v337, 0.0
  %vm346 = vcmp.ge.f32.partialorder %v338, 0.0
  %vm347 = vcmp.ge.f32.partialorder %v339, 0.0
  %v348 = vmul.f32 %v332, 0.2
  %v349 = vmul.f32 %v333, 0.2
  %v350 = vmul.f32 %v334, 0.2
  %v351 = vmul.f32 %v335, 0.2
  %v352 = vmul.f32 %v336, 0.2
  %v353 = vmul.f32 %v337, 0.2
  %v354 = vmul.f32 %v338, 0.2
  %v355 = vmul.f32 %v339, 0.2
  %v356 = vsel %vm340, %v332, %v348
  %v357 = vsel %vm341, %v333, %v349
  %v358 = vsel %vm342, %v334, %v350
  %v359 = vsel %vm343, %v335, %v351
  %v360 = vsel %vm344, %v336, %v352
  %v361 = vsel %vm345, %v337, %v353
  %v362 = vsel %vm346, %v338, %v354
  %v363 = vsel %vm347, %v339, %v355
  %364 = vst [vmem:[%s5] sm:$0xff] %v356
  %365 = vst [vmem:[%s5 + $0x8] sm:$0xff] %v357
  %366 = vst [vmem:[%s5 + $0x10] sm:$0xff] %v358
  %367 = vst [vmem:[%s5 + $0x18] sm:$0xff] %v359
  %368 = vst [vmem:[%s5 + $0x20] sm:$0xff] %v360
  %369 = vst [vmem:[%s5 + $0x28] sm:$0xff] %v361
  %370 = vst [vmem:[%s5 + $0x30] sm:$0xff] %v362
  %371 = vst [vmem:[%s5 + $0x38] sm:$0xff] %v363
  // Predicated region
  $region22: #{model_b_periodic_forward.8} parent=0 // pred_check
    _
  $region23: #{model_b_periodic_forward.8} parent=0 // pred_check_branch
    %373 = sbr.rel (0) target = $region25
  $region24: #{model_b_periodic_forward.8} parent=0 // pred_region
    _
  $region25: #{model_b_periodic_forward.8} parent=0 // pred_fallthru
    _
  // Predicated region
  $region26: #{model_b_periodic_forward.8} parent=0 // pred_check
    _
  $region27: #{model_b_periodic_forward.8} parent=0 // pred_check_branch
    %375 = sbr.rel (0) target = $region29
  $region28: #{model_b_periodic_forward.8} parent=0 // pred_region
    _
  $region29: #{model_b_periodic_forward.8} parent=0 // pred_fallthru
    _

// kernel: model_b_periodic_forward.9
$region0: #{model_b_periodic_forward.9}
  #allocation0 [shape = 'u32[]', space=smem, size = 0x4, offset = 0x4, fixed_abs, tag = 'smem constant byte address 0x4 - core index']
  #allocation1 [shape = 'u32[144,128]{1,0:T(1,128)}', space=vmem, size = 0x12000, scoped, tag = 'internal scratch']
  %s0 = inlined_call_operand.vmem [shape: f32[256,128], index: 0, kind: input, shape index: {}]
  %s1 = inlined_call_operand.vmem [shape: f32[32,256], index: 1, kind: input, shape index: {}]
  %s2 = inlined_call_operand.vmem [shape: f32[32,1], index: 2, kind: input, shape index: {}]
  %s3 = inlined_call_operand.vmem [shape: f32[32,1], index: 3, kind: input, shape index: {}]
  %s4 = inlined_call_operand.vmem [shape: f32[32,1], index: 4, kind: input, shape index: {}]
  %s5 = inlined_call_operand.vmem [shape: f32[32,128], index: 5, kind: output, shape index: {}]
  %s6 = sld [smem:[#allocation0]]
  $region30: #{model_b_periodic_forward.9} parent=0
    _
  %s8 = ssub.s32 1, %s6
  %s9 = scalar_select 0, %s8, %s6
  // Predicated region
  $region2: #{model_b_periodic_forward.9} parent=0 // pred_check
    _
  $region3: #{model_b_periodic_forward.9} parent=0 // pred_check_branch
    %11 = sbr.rel (0) target = $region5
  $region4: #{model_b_periodic_forward.9} parent=0 // pred_region
    _
  $region5: #{model_b_periodic_forward.9} parent=0 // pred_fallthru
    _
  // Predicated region
  $region6: #{model_b_periodic_forward.9} parent=0 // pred_check
    _
  $region7: #{model_b_periodic_forward.9} parent=0 // pred_check_branch
    %13 = sbr.rel (0) target = $region9
  $region8: #{model_b_periodic_forward.9} parent=0 // pred_region
    _
  $region9: #{model_b_periodic_forward.9} parent=0 // pred_fallthru
    _
  // Predicated region
  $region10: #{model_b_periodic_forward.9} parent=0 // pred_check
    _
  $region11: #{model_b_periodic_forward.9} parent=0 // pred_check_branch
    %15 = sbr.rel (0) target = $region13
  $region12: #{model_b_periodic_forward.9} parent=0 // pred_region
    _
  $region13: #{model_b_periodic_forward.9} parent=0 // pred_fallthru
    _
  // Predicated region
  $region14: #{model_b_periodic_forward.9} parent=0 // pred_check
    _
  $region15: #{model_b_periodic_forward.9} parent=0 // pred_check_branch
    %17 = sbr.rel (0) target = $region17
  $region16: #{model_b_periodic_forward.9} parent=0 // pred_region
    _
  $region17: #{model_b_periodic_forward.9} parent=0 // pred_fallthru
    _
  // Predicated region
  $region18: #{model_b_periodic_forward.9} parent=0 // pred_check
    _
  $region19: #{model_b_periodic_forward.9} parent=0 // pred_check_branch
    %19 = sbr.rel (0) target = $region21
  $region20: #{model_b_periodic_forward.9} parent=0 // pred_region
    _
  $region21: #{model_b_periodic_forward.9} parent=0 // pred_fallthru
    _
  %v20 = vld [vmem:[%s1] sm:$0xff]
  %v21 = vld [vmem:[%s1 + $0x8] sm:$0xff]
  %v22 = vld [vmem:[%s1 + $0x10] sm:$0xff]
  %v23 = vld [vmem:[%s1 + $0x18] sm:$0xff]
  %v24 = vld [vmem:[%s1 + $0x20] sm:$0xff]
  %v25 = vld [vmem:[%s1 + $0x28] sm:$0xff]
  %v26 = vld [vmem:[%s1 + $0x30] sm:$0xff]
  %v27 = vld [vmem:[%s1 + $0x38] sm:$0xff]
  %v28 = vld [vmem:[%s0] sm:$0xff]
  %v29 = vld [vmem:[%s0 + $0x8] sm:$0xff]
  %v30 = vld [vmem:[%s0 + $0x10] sm:$0xff]
  %v31 = vld [vmem:[%s0 + $0x18] sm:$0xff]
  %v32 = vld [vmem:[%s0 + $0x20] sm:$0xff]
  %v33 = vld [vmem:[%s0 + $0x28] sm:$0xff]
  %v34 = vld [vmem:[%s0 + $0x30] sm:$0xff]
  %v35 = vld [vmem:[%s0 + $0x38] sm:$0xff]
  %v36 = vld [vmem:[%s0 + $0x40] sm:$0xff]
  %v37 = vld [vmem:[%s0 + $0x48] sm:$0xff]
  %v38 = vld [vmem:[%s0 + $0x50] sm:$0xff]
  %v39 = vld [vmem:[%s0 + $0x58] sm:$0xff]
  %v40 = vld [vmem:[%s0 + $0x60] sm:$0xff]
  %v41 = vld [vmem:[%s0 + $0x68] sm:$0xff]
  %v42 = vld [vmem:[%s0 + $0x70] sm:$0xff]
  %v43 = vld [vmem:[%s0 + $0x78] sm:$0xff]
  %v44 = vld [vmem:[%s0 + $0x80] sm:$0xff]
  %v45 = vld [vmem:[%s0 + $0x88] sm:$0xff]
  %v46 = vld [vmem:[%s0 + $0x90] sm:$0xff]
  %v47 = vld [vmem:[%s0 + $0x98] sm:$0xff]
  %v48 = vld [vmem:[%s0 + $0xa0] sm:$0xff]
  %v49 = vld [vmem:[%s0 + $0xa8] sm:$0xff]
  %v50 = vld [vmem:[%s0 + $0xb0] sm:$0xff]
  %v51 = vld [vmem:[%s0 + $0xb8] sm:$0xff]
  %v52 = vld [vmem:[%s0 + $0xc0] sm:$0xff]
  %v53 = vld [vmem:[%s0 + $0xc8] sm:$0xff]
  %v54 = vld [vmem:[%s0 + $0xd0] sm:$0xff]
  %v55 = vld [vmem:[%s0 + $0xd8] sm:$0xff]
  %v56 = vld [vmem:[%s0 + $0xe0] sm:$0xff]
  %v57 = vld [vmem:[%s0 + $0xe8] sm:$0xff]
  %v58 = vld [vmem:[%s0 + $0xf0] sm:$0xff]
  %v59 = vld [vmem:[%s0 + $0xf8] sm:$0xff]
  %v60 = vld [vmem:[%s2] sm:$0xff]
  %v61 = vld [vmem:[%s2 + $0x8] sm:$0xff]
  %v62 = vld [vmem:[%s2 + $0x10] sm:$0xff]
  %v63 = vld [vmem:[%s2 + $0x18] sm:$0xff]
  %65 = vset.pattern.permute.xlu0 0
  %66 = vperm.xlu0 %65, %v60
  %v67 = vpop.permute.xlu0 %66
  %70 = vset.pattern.permute.xlu0 0
  %71 = vperm.xlu0 %70, %v61
  %v72 = vpop.permute.xlu0 %71
  %75 = vset.pattern.permute.xlu0 0
  %76 = vperm.xlu0 %75, %v62
  %v77 = vpop.permute.xlu0 %76
  %80 = vset.pattern.permute.xlu0 0
  %81 = vperm.xlu0 %80, %v63
  %v82 = vpop.permute.xlu0 %81
  %84 = vmatprep.subr.mxu0 0.0
  %85 = vmatpush1.msra.mxu0 %v43
  %86 = vmatprep.subr.mxu0 0.0
  %87 = vmatpush1.msra.mxu0 %v42
  %88 = vmatprep.subr.mxu0 0.0
  %89 = vmatpush1.msra.mxu0 %v41
  %90 = vmatprep.subr.mxu0 0.0
  %91 = vmatpush1.msra.mxu0 %v40
  %92 = vmatprep.subr.mxu0 0.0
  %93 = vmatpush1.msra.mxu0 %v39
  %94 = vmatprep.subr.mxu0 0.0
  %95 = vmatpush1.msra.mxu0 %v38
  %96 = vmatprep.subr.mxu0 0.0
  %97 = vmatpush1.msra.mxu0 %v37
  %98 = vmatprep.subr.mxu0 0.0
  %99 = vmatpush1.msra.mxu0 %v36
  %100 = vmatprep.subr.mxu0 0.0
  %101 = vmatpush1.msra.mxu0 %v35
  %102 = vmatprep.subr.mxu0 0.0
  %103 = vmatpush1.msra.mxu0 %v34
  %104 = vmatprep.subr.mxu0 0.0
  %105 = vmatpush1.msra.mxu0 %v33
  %106 = vmatprep.subr.mxu0 0.0
  %107 = vmatpush1.msra.mxu0 %v32
  %108 = vmatprep.subr.mxu0 0.0
  %109 = vmatpush1.msra.mxu0 %v31
  %110 = vmatprep.subr.mxu0 0.0
  %111 = vmatpush1.msra.mxu0 %v30
  %112 = vmatprep.subr.mxu0 0.0
  %113 = vmatpush1.msra.mxu0 %v29
  %114 = vmatprep.subr.mxu0 0.0
  %115 = vmatpush1.msra.mxu0 %v28
  %116 = vmatprep.subr.mxu0 0.0
  %117 = vmatpush2.msra.mxu0 %v59
  %118 = vmatprep.subr.mxu0 0.0
  %119 = vmatpush2.msra.mxu0 %v58
  %120 = vmatprep.subr.mxu0 0.0
  %121 = vmatpush2.msra.mxu0 %v57
  %122 = vmatprep.subr.mxu0 0.0
  %123 = vmatpush2.msra.mxu0 %v56
  %124 = vmatprep.subr.mxu0 0.0
  %125 = vmatpush2.msra.mxu0 %v55
  %126 = vmatprep.subr.mxu0 0.0
  %127 = vmatpush2.msra.mxu0 %v54
  %128 = vmatprep.subr.mxu0 0.0
  %129 = vmatpush2.msra.mxu0 %v53
  %130 = vmatprep.subr.mxu0 0.0
  %131 = vmatpush2.msra.mxu0 %v52
  %132 = vmatprep.subr.mxu0 0.0
  %133 = vmatpush2.msra.mxu0 %v51
  %134 = vmatprep.subr.mxu0 0.0
  %135 = vmatpush2.msra.mxu0 %v50
  %136 = vmatprep.subr.mxu0 0.0
  %137 = vmatpush2.msra.mxu0 %v49
  %138 = vmatprep.subr.mxu0 0.0
  %139 = vmatpush2.msra.mxu0 %v48
  %140 = vmatprep.subr.mxu0 0.0
  %141 = vmatpush2.msra.mxu0 %v47
  %142 = vmatprep.subr.mxu0 0.0
  %143 = vmatpush2.msra.mxu0 %v46
  %144 = vmatprep.subr.mxu0 0.0
  %145 = vmatpush2.msra.mxu0 %v45
  %146 = vmatprep.subr.mxu0 0.0
  %147 = vmatpush2.msra.mxu0 %v44
  %148 = vmatprep.mubr.f32.mxu0 %v21
  %149 = vmatmul.mubr.f32.gmra.mxu0 %v20
  %v150 = vpop.f32.mrf.mxu0
  %v151 = vadd.f32 %v67, %v150
  %v152 = vpop.f32.mrf.mxu0
  %153 = vmatprep.mubr.f32.mxu0 %v23
  %154 = vmatmul.mubr.f32.gmra.mxu0 %v22
  %v155 = vpop.f32.mrf.mxu0
  %v156 = vadd.f32 %v72, %v155
  %v157 = vpop.f32.mrf.mxu0
  %158 = vmatprep.mubr.f32.mxu0 %v25
  %159 = vmatmul.mubr.f32.gmra.mxu0 %v24
  %v160 = vpop.f32.mrf.mxu0
  %v161 = vadd.f32 %v77, %v160
  %v162 = vpop.f32.mrf.mxu0
  %163 = vmatprep.mubr.f32.mxu0 %v27
  %164 = vmatmul.mubr.f32.gmra.mxu0 %v26
  %v165 = vpop.f32.mrf.mxu0
  %v166 = vadd.f32 %v82, %v165
  %v167 = vpop.f32.mrf.mxu0
  %168 = vdwg.mxu0
  %169 = vadd.xlane.f32.xlu0 %v151
  %v170 = vpop.xlane.xlu0 %169
  %171 = vadd.xlane.f32.xlu0 %v156
  %v172 = vpop.xlane.xlu0 %171
  %173 = vadd.xlane.f32.xlu0 %v161
  %v174 = vpop.xlane.xlu0 %173
  %175 = vadd.xlane.f32.xlu0 %v166
  %v176 = vpop.xlane.xlu0 %175
  %v177 = vmul.f32 %v170, 0.0078125
  %v178 = vmul.f32 %v172, 0.0078125
  %v179 = vmul.f32 %v174, 0.0078125
  %v180 = vmul.f32 %v176, 0.0078125
  %v181 = vmul.f32 %v151, %v151
  %v182 = vmul.f32 %v156, %v156
  %v183 = vmul.f32 %v161, %v161
  %v184 = vmul.f32 %v166, %v166
  %185 = vadd.xlane.f32.xlu0 %v181
  %v186 = vpop.xlane.xlu0 %185
  %187 = vadd.xlane.f32.xlu0 %v182
  %v188 = vpop.xlane.xlu0 %187
  %189 = vadd.xlane.f32.xlu0 %v183
  %v190 = vpop.xlane.xlu0 %189
  %191 = vadd.xlane.f32.xlu0 %v184
  %v192 = vpop.xlane.xlu0 %191
  %v193 = vmul.f32 %v186, 0.0078125
  %v194 = vmul.f32 %v188, 0.0078125
  %v195 = vmul.f32 %v190, 0.0078125
  %v196 = vmul.f32 %v192, 0.0078125
  %v197 = vmul.f32 %v177, %v177
  %v198 = vmul.f32 %v178, %v178
  %v199 = vmul.f32 %v179, %v179
  %v200 = vmul.f32 %v180, %v180
  %v201 = vsub.f32 %v193, %v197
  %v202 = vsub.f32 %v194, %v198
  %v203 = vsub.f32 %v195, %v199
  %v204 = vsub.f32 %v196, %v200
  %v205 = vmax.f32 %v201, 0.0
  %v206 = vmax.f32 %v202, 0.0
  %v207 = vmax.f32 %v203, 0.0
  %v208 = vmax.f32 %v204, 0.0
  %v209 = vld [vmem:[%s3] sm:$0xff]
  %v210 = vld [vmem:[%s3 + $0x8] sm:$0xff]
  %v211 = vld [vmem:[%s3 + $0x10] sm:$0xff]
  %v212 = vld [vmem:[%s3 + $0x18] sm:$0xff]
  %v213 = vadd.f32 %v205, 1e-05
  %v214 = vadd.f32 %v206, 1e-05
  %v215 = vadd.f32 %v207, 1e-05
  %v216 = vadd.f32 %v208, 1e-05
  %v217 = vrsqrt.pop %v213
  %v218 = vrsqrt.pop %v214
  %v219 = vrsqrt.pop %v215
  %v220 = vrsqrt.pop %v216
  %v221 = vmul.f32 %v209, %v217
  %v222 = vmul.f32 %v210, %v218
  %v223 = vmul.f32 %v211, %v219
  %v224 = vmul.f32 %v212, %v220
  %v225 = vld [vmem:[%s4] sm:$0xff]
  %v226 = vld [vmem:[%s4 + $0x8] sm:$0xff]
  %v227 = vld [vmem:[%s4 + $0x10] sm:$0xff]
  %v228 = vld [vmem:[%s4 + $0x18] sm:$0xff]
  %v229 = vmul.f32 %v177, %v221
  %v230 = vmul.f32 %v178, %v222
  %v231 = vmul.f32 %v179, %v223
  %v232 = vmul.f32 %v180, %v224
  %v233 = vsub.f32 %v225, %v229
  %v234 = vsub.f32 %v226, %v230
  %v235 = vsub.f32 %v227, %v231
  %v236 = vsub.f32 %v228, %v232
  %238 = vset.pattern.permute.xlu0 0
  %239 = vperm.xlu0 %238, %v221
  %v240 = vpop.permute.xlu0 %239
  %243 = vset.pattern.permute.xlu0 0
  %244 = vperm.xlu0 %243, %v222
  %v245 = vpop.permute.xlu0 %244
  %248 = vset.pattern.permute.xlu0 0
  %249 = vperm.xlu0 %248, %v223
  %v250 = vpop.permute.xlu0 %249
  %253 = vset.pattern.permute.xlu0 0
  %254 = vperm.xlu0 %253, %v224
  %v255 = vpop.permute.xlu0 %254
  %v257 = vmul.f32 %v151, %v240
  %v258 = vmul.f32 %v156, %v245
  %v259 = vmul.f32 %v161, %v250
  %v260 = vmul.f32 %v166, %v255
  %262 = vset.pattern.permute.xlu0 0
  %263 = vperm.xlu0 %262, %v233
  %v264 = vpop.permute.xlu0 %263
  %267 = vset.pattern.permute.xlu0 0
  %268 = vperm.xlu0 %267, %v234
  %v269 = vpop.permute.xlu0 %268
  %272 = vset.pattern.permute.xlu0 0
  %273 = vperm.xlu0 %272, %v235
  %v274 = vpop.permute.xlu0 %273
  %277 = vset.pattern.permute.xlu0 0
  %278 = vperm.xlu0 %277, %v236
  %v279 = vpop.permute.xlu0 %278
  %v281 = vadd.f32 %v257, %v264
  %v282 = vadd.f32 %v258, %v269
  %v283 = vadd.f32 %v259, %v274
  %v284 = vadd.f32 %v260, %v279
  %vm285 = vcmp.ge.f32.partialorder %v281, 0.0
  %vm286 = vcmp.ge.f32.partialorder %v282, 0.0
  %vm287 = vcmp.ge.f32.partialorder %v283, 0.0
  %vm288 = vcmp.ge.f32.partialorder %v284, 0.0
  %v289 = vmul.f32 %v281, 0.2
  %v290 = vmul.f32 %v282, 0.2
  %v291 = vmul.f32 %v283, 0.2
  %v292 = vmul.f32 %v284, 0.2
  %v293 = vsel %vm285, %v281, %v289
  %v294 = vsel %vm286, %v282, %v290
  %v295 = vsel %vm287, %v283, %v291
  %v296 = vsel %vm288, %v284, %v292
  %297 = vst [vmem:[%s5] sm:$0xff] %v293
  %298 = vst [vmem:[%s5 + $0x8] sm:$0xff] %v294
  %299 = vst [vmem:[%s5 + $0x10] sm:$0xff] %v295
  %300 = vst [vmem:[%s5 + $0x18] sm:$0xff] %v296
  // Predicated region
  $region22: #{model_b_periodic_forward.9} parent=0 // pred_check
    _
  $region23: #{model_b_periodic_forward.9} parent=0 // pred_check_branch
    %302 = sbr.rel (0) target = $region25
  $region24: #{model_b_periodic_forward.9} parent=0 // pred_region
    _
  $region25: #{model_b_periodic_forward.9} parent=0 // pred_fallthru
    _
  // Predicated region
  $region26: #{model_b_periodic_forward.9} parent=0 // pred_check
    _
  $region27: #{model_b_periodic_forward.9} parent=0 // pred_check_branch
    %304 = sbr.rel (0) target = $region29
  $region28: #{model_b_periodic_forward.9} parent=0 // pred_region
    _
  $region29: #{model_b_periodic_forward.9} parent=0 // pred_fallthru
    _

// kernel: model_b_periodic_forward.10
$region0: #{model_b_periodic_forward.10}
  #allocation0 [shape = 'u32[]', space=smem, size = 0x4, offset = 0x4, fixed_abs, tag = 'smem constant byte address 0x4 - core index']
  #allocation1 [shape = 'u32[144,128]{1,0:T(1,128)}', space=vmem, size = 0x12000, scoped, tag = 'internal scratch']
  %s0 = inlined_call_operand.vmem [shape: f32[512,32], index: 0, kind: input, shape index: {}]
  %s1 = inlined_call_operand.vmem [shape: f32[64,512], index: 1, kind: input, shape index: {}]
  %s2 = inlined_call_operand.vmem [shape: f32[64,1], index: 2, kind: input, shape index: {}]
  %s3 = inlined_call_operand.vmem [shape: f32[64,1], index: 3, kind: input, shape index: {}]
  %s4 = inlined_call_operand.vmem [shape: f32[64,1], index: 4, kind: input, shape index: {}]
  %s5 = inlined_call_operand.vmem [shape: f32[64,32], index: 5, kind: output, shape index: {}]
  %s6 = sld [smem:[#allocation0]]
  $region30: #{model_b_periodic_forward.10} parent=0
    _
  %s8 = ssub.s32 1, %s6
  %s9 = scalar_select 0, %s8, %s6
  // Predicated region
  $region2: #{model_b_periodic_forward.10} parent=0 // pred_check
    _
  $region3: #{model_b_periodic_forward.10} parent=0 // pred_check_branch
    %11 = sbr.rel (0) target = $region5
  $region4: #{model_b_periodic_forward.10} parent=0 // pred_region
    _
  $region5: #{model_b_periodic_forward.10} parent=0 // pred_fallthru
    _
  // Predicated region
  $region6: #{model_b_periodic_forward.10} parent=0 // pred_check
    _
  $region7: #{model_b_periodic_forward.10} parent=0 // pred_check_branch
    %13 = sbr.rel (0) target = $region9
  $region8: #{model_b_periodic_forward.10} parent=0 // pred_region
    _
  $region9: #{model_b_periodic_forward.10} parent=0 // pred_fallthru
    _
  // Predicated region
  $region10: #{model_b_periodic_forward.10} parent=0 // pred_check
    _
  $region11: #{model_b_periodic_forward.10} parent=0 // pred_check_branch
    %15 = sbr.rel (0) target = $region13
  $region12: #{model_b_periodic_forward.10} parent=0 // pred_region
    _
  $region13: #{model_b_periodic_forward.10} parent=0 // pred_fallthru
    _
  // Predicated region
  $region14: #{model_b_periodic_forward.10} parent=0 // pred_check
    _
  $region15: #{model_b_periodic_forward.10} parent=0 // pred_check_branch
    %17 = sbr.rel (0) target = $region17
  $region16: #{model_b_periodic_forward.10} parent=0 // pred_region
    _
  $region17: #{model_b_periodic_forward.10} parent=0 // pred_fallthru
    _
  // Predicated region
  $region18: #{model_b_periodic_forward.10} parent=0 // pred_check
    _
  $region19: #{model_b_periodic_forward.10} parent=0 // pred_check_branch
    %19 = sbr.rel (0) target = $region21
  $region20: #{model_b_periodic_forward.10} parent=0 // pred_region
    _
  $region21: #{model_b_periodic_forward.10} parent=0 // pred_fallthru
    _
  %v20 = vld [vmem:[%s1] sm:$0xff]
  %v21 = vld [vmem:[%s1 + $0x8] sm:$0xff]
  %v22 = vld [vmem:[%s1 + $0x10] sm:$0xff]
  %v23 = vld [vmem:[%s1 + $0x18] sm:$0xff]
  %v24 = vld [vmem:[%s1 + $0x20] sm:$0xff]
  %v25 = vld [vmem:[%s1 + $0x28] sm:$0xff]
  %v26 = vld [vmem:[%s1 + $0x30] sm:$0xff]
  %v27 = vld [vmem:[%s1 + $0x38] sm:$0xff]
  %v28 = vld [vmem:[%s1 + $0x40] sm:$0xff]
  %v29 = vld [vmem:[%s1 + $0x48] sm:$0xff]
  %v30 = vld [vmem:[%s1 + $0x50] sm:$0xff]
  %v31 = vld [vmem:[%s1 + $0x58] sm:$0xff]
  %v32 = vld [vmem:[%s1 + $0x60] sm:$0xff]
  %v33 = vld [vmem:[%s1 + $0x68] sm:$0xff]
  %v34 = vld [vmem:[%s1 + $0x70] sm:$0xff]
  %v35 = vld [vmem:[%s1 + $0x78] sm:$0xff]
  %v36 = vld [vmem:[%s1 + $0x80] sm:$0xff]
  %v37 = vld [vmem:[%s1 + $0x88] sm:$0xff]
  %v38 = vld [vmem:[%s1 + $0x90] sm:$0xff]
  %v39 = vld [vmem:[%s1 + $0x98] sm:$0xff]
  %v40 = vld [vmem:[%s1 + $0xa0] sm:$0xff]
  %v41 = vld [vmem:[%s1 + $0xa8] sm:$0xff]
  %v42 = vld [vmem:[%s1 + $0xb0] sm:$0xff]
  %v43 = vld [vmem:[%s1 + $0xb8] sm:$0xff]
  %v44 = vld [vmem:[%s1 + $0xc0] sm:$0xff]
  %v45 = vld [vmem:[%s1 + $0xc8] sm:$0xff]
  %v46 = vld [vmem:[%s1 + $0xd0] sm:$0xff]
  %v47 = vld [vmem:[%s1 + $0xd8] sm:$0xff]
  %v48 = vld [vmem:[%s1 + $0xe0] sm:$0xff]
  %v49 = vld [vmem:[%s1 + $0xe8] sm:$0xff]
  %v50 = vld [vmem:[%s1 + $0xf0] sm:$0xff]
  %v51 = vld [vmem:[%s1 + $0xf8] sm:$0xff]
  %v52 = vld [vmem:[%s0] sm:$0xff]
  %v53 = vld [vmem:[%s0 + $0x8] sm:$0xff]
  %v54 = vld [vmem:[%s0 + $0x10] sm:$0xff]
  %v55 = vld [vmem:[%s0 + $0x18] sm:$0xff]
  %v56 = vld [vmem:[%s0 + $0x20] sm:$0xff]
  %v57 = vld [vmem:[%s0 + $0x28] sm:$0xff]
  %v58 = vld [vmem:[%s0 + $0x30] sm:$0xff]
  %v59 = vld [vmem:[%s0 + $0x38] sm:$0xff]
  %v60 = vld [vmem:[%s0 + $0x40] sm:$0xff]
  %v61 = vld [vmem:[%s0 + $0x48] sm:$0xff]
  %v62 = vld [vmem:[%s0 + $0x50] sm:$0xff]
  %v63 = vld [vmem:[%s0 + $0x58] sm:$0xff]
  %v64 = vld [vmem:[%s0 + $0x60] sm:$0xff]
  %v65 = vld [vmem:[%s0 + $0x68] sm:$0xff]
  %v66 = vld [vmem:[%s0 + $0x70] sm:$0xff]
  %v67 = vld [vmem:[%s0 + $0x78] sm:$0xff]
  %v68 = vld [vmem:[%s0 + $0x80] sm:$0xff]
  %v69 = vld [vmem:[%s0 + $0x88] sm:$0xff]
  %v70 = vld [vmem:[%s0 + $0x90] sm:$0xff]
  %v71 = vld [vmem:[%s0 + $0x98] sm:$0xff]
  %v72 = vld [vmem:[%s0 + $0xa0] sm:$0xff]
  %v73 = vld [vmem:[%s0 + $0xa8] sm:$0xff]
  %v74 = vld [vmem:[%s0 + $0xb0] sm:$0xff]
  %v75 = vld [vmem:[%s0 + $0xb8] sm:$0xff]
  %v76 = vld [vmem:[%s0 + $0xc0] sm:$0xff]
  %v77 = vld [vmem:[%s0 + $0xc8] sm:$0xff]
  %v78 = vld [vmem:[%s0 + $0xd0] sm:$0xff]
  %v79 = vld [vmem:[%s0 + $0xd8] sm:$0xff]
  %v80 = vld [vmem:[%s0 + $0xe0] sm:$0xff]
  %v81 = vld [vmem:[%s0 + $0xe8] sm:$0xff]
  %v82 = vld [vmem:[%s0 + $0xf0] sm:$0xff]
  %v83 = vld [vmem:[%s0 + $0xf8] sm:$0xff]
  %v84 = vld [vmem:[%s0 + $0x100] sm:$0xff]
  %v85 = vld [vmem:[%s0 + $0x108] sm:$0xff]
  %v86 = vld [vmem:[%s0 + $0x110] sm:$0xff]
  %v87 = vld [vmem:[%s0 + $0x118] sm:$0xff]
  %v88 = vld [vmem:[%s0 + $0x120] sm:$0xff]
  %v89 = vld [vmem:[%s0 + $0x128] sm:$0xff]
  %v90 = vld [vmem:[%s0 + $0x130] sm:$0xff]
  %v91 = vld [vmem:[%s0 + $0x138] sm:$0xff]
  %v92 = vld [vmem:[%s0 + $0x140] sm:$0xff]
  %v93 = vld [vmem:[%s0 + $0x148] sm:$0xff]
  %v94 = vld [vmem:[%s0 + $0x150] sm:$0xff]
  %v95 = vld [vmem:[%s0 + $0x158] sm:$0xff]
  %v96 = vld [vmem:[%s0 + $0x160] sm:$0xff]
  %v97 = vld [vmem:[%s0 + $0x168] sm:$0xff]
  %v98 = vld [vmem:[%s0 + $0x170] sm:$0xff]
  %v99 = vld [vmem:[%s0 + $0x178] sm:$0xff]
  %v100 = vld [vmem:[%s0 + $0x180] sm:$0xff]
  %v101 = vld [vmem:[%s0 + $0x188] sm:$0xff]
  %v102 = vld [vmem:[%s0 + $0x190] sm:$0xff]
  %v103 = vld [vmem:[%s0 + $0x198] sm:$0xff]
  %v104 = vld [vmem:[%s0 + $0x1a0] sm:$0xff]
  %v105 = vld [vmem:[%s0 + $0x1a8] sm:$0xff]
  %v106 = vld [vmem:[%s0 + $0x1b0] sm:$0xff]
  %v107 = vld [vmem:[%s0 + $0x1b8] sm:$0xff]
  %v108 = vld [vmem:[%s0 + $0x1c0] sm:$0xff]
  %v109 = vld [vmem:[%s0 + $0x1c8] sm:$0xff]
  %v110 = vld [vmem:[%s0 + $0x1d0] sm:$0xff]
  %v111 = vld [vmem:[%s0 + $0x1d8] sm:$0xff]
  %v112 = vld [vmem:[%s0 + $0x1e0] sm:$0xff]
  %v113 = vld [vmem:[%s0 + $0x1e8] sm:$0xff]
  %v114 = vld [vmem:[%s0 + $0x1f0] sm:$0xff]
  %v115 = vld [vmem:[%s0 + $0x1f8] sm:$0xff]
  %v116 = vld [vmem:[%s2] sm:$0xff]
  %v117 = vld [vmem:[%s2 + $0x8] sm:$0xff]
  %v118 = vld [vmem:[%s2 + $0x10] sm:$0xff]
  %v119 = vld [vmem:[%s2 + $0x18] sm:$0xff]
  %v120 = vld [vmem:[%s2 + $0x20] sm:$0xff]
  %v121 = vld [vmem:[%s2 + $0x28] sm:$0xff]
  %v122 = vld [vmem:[%s2 + $0x30] sm:$0xff]
  %v123 = vld [vmem:[%s2 + $0x38] sm:$0xff]
  %125 = vset.pattern.permute.xlu0 0
  %126 = vperm.xlu0 %125, %v116
  %v127 = vpop.permute.xlu0 %126
  %130 = vset.pattern.permute.xlu0 0
  %131 = vperm.xlu0 %130, %v117
  %v132 = vpop.permute.xlu0 %131
  %135 = vset.pattern.permute.xlu0 0
  %136 = vperm.xlu0 %135, %v118
  %v137 = vpop.permute.xlu0 %136
  %140 = vset.pattern.permute.xlu0 0
  %141 = vperm.xlu0 %140, %v119
  %v142 = vpop.permute.xlu0 %141
  %145 = vset.pattern.permute.xlu0 0
  %146 = vperm.xlu0 %145, %v120
  %v147 = vpop.permute.xlu0 %146
  %150 = vset.pattern.permute.xlu0 0
  %151 = vperm.xlu0 %150, %v121
  %v152 = vpop.permute.xlu0 %151
  %155 = vset.pattern.permute.xlu0 0
  %156 = vperm.xlu0 %155, %v122
  %v157 = vpop.permute.xlu0 %156
  %160 = vset.pattern.permute.xlu0 0
  %161 = vperm.xlu0 %160, %v123
  %v162 = vpop.permute.xlu0 %161
  %164 = vmatprep.subr.mxu0 0.0
  %165 = vmatpush1.msra.mxu0 %v67
  %166 = vmatprep.subr.mxu0 0.0
  %167 = vmatpush1.msra.mxu0 %v66
  %168 = vmatprep.subr.mxu0 0.0
  %169 = vmatpush1.msra.mxu0 %v65
  %170 = vmatprep.subr.mxu0 0.0
  %171 = vmatpush1.msra.mxu0 %v64
  %172 = vmatprep.subr.mxu0 0.0
  %173 = vmatpush1.msra.mxu0 %v63
  %174 = vmatprep.subr.mxu0 0.0
  %175 = vmatpush1.msra.mxu0 %v62
  %176 = vmatprep.subr.mxu0 0.0
  %177 = vmatpush1.msra.mxu0 %v61
  %178 = vmatprep.subr.mxu0 0.0
  %179 = vmatpush1.msra.mxu0 %v60
  %180 = vmatprep.subr.mxu0 0.0
  %181 = vmatpush1.msra.mxu0 %v59
  %182 = vmatprep.subr.mxu0 0.0
  %183 = vmatpush1.msra.mxu0 %v58
  %184 = vmatprep.subr.mxu0 0.0
  %185 = vmatpush1.msra.mxu0 %v57
  %186 = vmatprep.subr.mxu0 0.0
  %187 = vmatpush1.msra.mxu0 %v56
  %188 = vmatprep.subr.mxu0 0.0
  %189 = vmatpush1.msra.mxu0 %v55
  %190 = vmatprep.subr.mxu0 0.0
  %191 = vmatpush1.msra.mxu0 %v54
  %192 = vmatprep.subr.mxu0 0.0
  %193 = vmatpush1.msra.mxu0 %v53
  %194 = vmatprep.subr.mxu0 0.0
  %195 = vmatpush1.msra.mxu0 %v52
  %196 = vmatprep.subr.mxu0 0.0
  %197 = vmatpush2.msra.mxu0 %v83
  %198 = vmatprep.subr.mxu0 0.0
  %199 = vmatpush2.msra.mxu0 %v82
  %200 = vmatprep.subr.mxu0 0.0
  %201 = vmatpush2.msra.mxu0 %v81
  %202 = vmatprep.subr.mxu0 0.0
  %203 = vmatpush2.msra.mxu0 %v80
  %204 = vmatprep.subr.mxu0 0.0
  %205 = vmatpush2.msra.mxu0 %v79
  %206 = vmatprep.subr.mxu0 0.0
  %207 = vmatpush2.msra.mxu0 %v78
  %208 = vmatprep.subr.mxu0 0.0
  %209 = vmatpush2.msra.mxu0 %v77
  %210 = vmatprep.subr.mxu0 0.0
  %211 = vmatpush2.msra.mxu0 %v76
  %212 = vmatprep.subr.mxu0 0.0
  %213 = vmatpush2.msra.mxu0 %v75
  %214 = vmatprep.subr.mxu0 0.0
  %215 = vmatpush2.msra.mxu0 %v74
  %216 = vmatprep.subr.mxu0 0.0
  %217 = vmatpush2.msra.mxu0 %v73
  %218 = vmatprep.subr.mxu0 0.0
  %219 = vmatpush2.msra.mxu0 %v72
  %220 = vmatprep.subr.mxu0 0.0
  %221 = vmatpush2.msra.mxu0 %v71
  %222 = vmatprep.subr.mxu0 0.0
  %223 = vmatpush2.msra.mxu0 %v70
  %224 = vmatprep.subr.mxu0 0.0
  %225 = vmatpush2.msra.mxu0 %v69
  %226 = vmatprep.subr.mxu0 0.0
  %227 = vmatpush2.msra.mxu0 %v68
  %228 = vmatprep.mubr.f32.mxu0 %v21
  %229 = vmatmul.mubr.f32.gmra.mxu0 %v20
  %v230 = vpop.f32.mrf.mxu0
  %v231 = vadd.f32 %v127, %v230
  %v232 = vpop.f32.mrf.mxu0
  %233 = vmatprep.mubr.f32.mxu0 %v25
  %234 = vmatmul.mubr.f32.gmra.mxu0 %v24
  %v235 = vpop.f32.mrf.mxu0
  %v236 = vadd.f32 %v132, %v235
  %v237 = vpop.f32.mrf.mxu0
  %238 = vmatprep.mubr.f32.mxu0 %v29
  %239 = vmatmul.mubr.f32.gmra.mxu0 %v28
  %v240 = vpop.f32.mrf.mxu0
  %v241 = vadd.f32 %v137, %v240
  %v242 = vpop.f32.mrf.mxu0
  %243 = vmatprep.mubr.f32.mxu0 %v33
  %244 = vmatmul.mubr.f32.gmra.mxu0 %v32
  %v245 = vpop.f32.mrf.mxu0
  %v246 = vadd.f32 %v142, %v245
  %v247 = vpop.f32.mrf.mxu0
  %248 = vmatprep.mubr.f32.mxu0 %v37
  %249 = vmatmul.mubr.f32.gmra.mxu0 %v36
  %v250 = vpop.f32.mrf.mxu0
  %v251 = vadd.f32 %v147, %v250
  %v252 = vpop.f32.mrf.mxu0
  %253 = vmatprep.mubr.f32.mxu0 %v41
  %254 = vmatmul.mubr.f32.gmra.mxu0 %v40
  %v255 = vpop.f32.mrf.mxu0
  %v256 = vadd.f32 %v152, %v255
  %v257 = vpop.f32.mrf.mxu0
  %258 = vmatprep.mubr.f32.mxu0 %v45
  %259 = vmatmul.mubr.f32.gmra.mxu0 %v44
  %v260 = vpop.f32.mrf.mxu0
  %v261 = vadd.f32 %v157, %v260
  %v262 = vpop.f32.mrf.mxu0
  %263 = vmatprep.mubr.f32.mxu0 %v49
  %264 = vmatmul.mubr.f32.gmra.mxu0 %v48
  %v265 = vpop.f32.mrf.mxu0
  %v266 = vadd.f32 %v162, %v265
  %v267 = vpop.f32.mrf.mxu0
  %268 = vdwg.mxu0
  %269 = vmatprep.subr.mxu0 0.0
  %270 = vmatpush1.msra.mxu0 %v99
  %271 = vmatprep.subr.mxu0 0.0
  %272 = vmatpush1.msra.mxu0 %v98
  %273 = vmatprep.subr.mxu0 0.0
  %274 = vmatpush1.msra.mxu0 %v97
  %275 = vmatprep.subr.mxu0 0.0
  %276 = vmatpush1.msra.mxu0 %v96
  %277 = vmatprep.subr.mxu0 0.0
  %278 = vmatpush1.msra.mxu0 %v95
  %279 = vmatprep.subr.mxu0 0.0
  %280 = vmatpush1.msra.mxu0 %v94
  %281 = vmatprep.subr.mxu0 0.0
  %282 = vmatpush1.msra.mxu0 %v93
  %283 = vmatprep.subr.mxu0 0.0
  %284 = vmatpush1.msra.mxu0 %v92
  %285 = vmatprep.subr.mxu0 0.0
  %286 = vmatpush1.msra.mxu0 %v91
  %287 = vmatprep.subr.mxu0 0.0
  %288 = vmatpush1.msra.mxu0 %v90
  %289 = vmatprep.subr.mxu0 0.0
  %290 = vmatpush1.msra.mxu0 %v89
  %291 = vmatprep.subr.mxu0 0.0
  %292 = vmatpush1.msra.mxu0 %v88
  %293 = vmatprep.subr.mxu0 0.0
  %294 = vmatpush1.msra.mxu0 %v87
  %295 = vmatprep.subr.mxu0 0.0
  %296 = vmatpush1.msra.mxu0 %v86
  %297 = vmatprep.subr.mxu0 0.0
  %298 = vmatpush1.msra.mxu0 %v85
  %299 = vmatprep.subr.mxu0 0.0
  %300 = vmatpush1.msra.mxu0 %v84
  %301 = vmatprep.subr.mxu0 0.0
  %302 = vmatpush2.msra.mxu0 %v115
  %303 = vmatprep.subr.mxu0 0.0
  %304 = vmatpush2.msra.mxu0 %v114
  %305 = vmatprep.subr.mxu0 0.0
  %306 = vmatpush2.msra.mxu0 %v113
  %307 = vmatprep.subr.mxu0 0.0
  %308 = vmatpush2.msra.mxu0 %v112
  %309 = vmatprep.subr.mxu0 0.0
  %310 = vmatpush2.msra.mxu0 %v111
  %311 = vmatprep.subr.mxu0 0.0
  %312 = vmatpush2.msra.mxu0 %v110
  %313 = vmatprep.subr.mxu0 0.0
  %314 = vmatpush2.msra.mxu0 %v109
  %315 = vmatprep.subr.mxu0 0.0
  %316 = vmatpush2.msra.mxu0 %v108
  %317 = vmatprep.subr.mxu0 0.0
  %318 = vmatpush2.msra.mxu0 %v107
  %319 = vmatprep.subr.mxu0 0.0
  %320 = vmatpush2.msra.mxu0 %v106
  %321 = vmatprep.subr.mxu0 0.0
  %322 = vmatpush2.msra.mxu0 %v105
  %323 = vmatprep.subr.mxu0 0.0
  %324 = vmatpush2.msra.mxu0 %v104
  %325 = vmatprep.subr.mxu0 0.0
  %326 = vmatpush2.msra.mxu0 %v103
  %327 = vmatprep.subr.mxu0 0.0
  %328 = vmatpush2.msra.mxu0 %v102
  %329 = vmatprep.subr.mxu0 0.0
  %330 = vmatpush2.msra.mxu0 %v101
  %331 = vmatprep.subr.mxu0 0.0
  %332 = vmatpush2.msra.mxu0 %v100
  %333 = vmatprep.mubr.f32.mxu0 %v23
  %334 = vmatmul.mubr.f32.gmra.mxu0 %v22
  %v335 = vpop.f32.mrf.mxu0
  %v336 = vadd.f32 %v231, %v335
  %v337 = vpop.f32.mrf.mxu0
  %338 = vmatprep.mubr.f32.mxu0 %v27
  %339 = vmatmul.mubr.f32.gmra.mxu0 %v26
  %v340 = vpop.f32.mrf.mxu0
  %v341 = vadd.f32 %v236, %v340
  %v342 = vpop.f32.mrf.mxu0
  %343 = vmatprep.mubr.f32.mxu0 %v31
  %344 = vmatmul.mubr.f32.gmra.mxu0 %v30
  %v345 = vpop.f32.mrf.mxu0
  %v346 = vadd.f32 %v241, %v345
  %v347 = vpop.f32.mrf.mxu0
  %348 = vmatprep.mubr.f32.mxu0 %v35
  %349 = vmatmul.mubr.f32.gmra.mxu0 %v34
  %v350 = vpop.f32.mrf.mxu0
  %v351 = vadd.f32 %v246, %v350
  %v352 = vpop.f32.mrf.mxu0
  %353 = vmatprep.mubr.f32.mxu0 %v39
  %354 = vmatmul.mubr.f32.gmra.mxu0 %v38
  %v355 = vpop.f32.mrf.mxu0
  %v356 = vadd.f32 %v251, %v355
  %v357 = vpop.f32.mrf.mxu0
  %358 = vmatprep.mubr.f32.mxu0 %v43
  %359 = vmatmul.mubr.f32.gmra.mxu0 %v42
  %v360 = vpop.f32.mrf.mxu0
  %v361 = vadd.f32 %v256, %v360
  %v362 = vpop.f32.mrf.mxu0
  %363 = vmatprep.mubr.f32.mxu0 %v47
  %364 = vmatmul.mubr.f32.gmra.mxu0 %v46
  %v365 = vpop.f32.mrf.mxu0
  %v366 = vadd.f32 %v261, %v365
  %v367 = vpop.f32.mrf.mxu0
  %368 = vmatprep.mubr.f32.mxu0 %v51
  %369 = vmatmul.mubr.f32.gmra.mxu0 %v50
  %v370 = vpop.f32.mrf.mxu0
  %v371 = vadd.f32 %v266, %v370
  %v372 = vpop.f32.mrf.mxu0
  %373 = vdwg.mxu0
  %vm374 = vcmask 261120
  %v375 = vsel %vm374, %v336, 0.0
  %376 = vadd.xlane.f32.xlu0 %v375
  %v377 = vpop.xlane.xlu0 %376
  %v378 = vsel %vm374, %v341, 0.0
  %379 = vadd.xlane.f32.xlu0 %v378
  %v380 = vpop.xlane.xlu0 %379
  %v381 = vsel %vm374, %v346, 0.0
  %382 = vadd.xlane.f32.xlu0 %v381
  %v383 = vpop.xlane.xlu0 %382
  %v384 = vsel %vm374, %v351, 0.0
  %385 = vadd.xlane.f32.xlu0 %v384
  %v386 = vpop.xlane.xlu0 %385
  %v387 = vsel %vm374, %v356, 0.0
  %388 = vadd.xlane.f32.xlu0 %v387
  %v389 = vpop.xlane.xlu0 %388
  %v390 = vsel %vm374, %v361, 0.0
  %391 = vadd.xlane.f32.xlu0 %v390
  %v392 = vpop.xlane.xlu0 %391
  %v393 = vsel %vm374, %v366, 0.0
  %394 = vadd.xlane.f32.xlu0 %v393
  %v395 = vpop.xlane.xlu0 %394
  %v396 = vsel %vm374, %v371, 0.0
  %397 = vadd.xlane.f32.xlu0 %v396
  %v398 = vpop.xlane.xlu0 %397
  %v399 = vmul.f32 %v377, 0.03125
  %v400 = vmul.f32 %v380, 0.03125
  %v401 = vmul.f32 %v383, 0.03125
  %v402 = vmul.f32 %v386, 0.03125
  %v403 = vmul.f32 %v389, 0.03125
  %v404 = vmul.f32 %v392, 0.03125
  %v405 = vmul.f32 %v395, 0.03125
  %v406 = vmul.f32 %v398, 0.03125
  %v407 = vmul.f32 %v336, %v336
  %v408 = vmul.f32 %v341, %v341
  %v409 = vmul.f32 %v346, %v346
  %v410 = vmul.f32 %v351, %v351
  %v411 = vmul.f32 %v356, %v356
  %v412 = vmul.f32 %v361, %v361
  %v413 = vmul.f32 %v366, %v366
  %v414 = vmul.f32 %v371, %v371
  %v415 = vsel %vm374, %v407, 0.0
  %416 = vadd.xlane.f32.xlu0 %v415
  %v417 = vpop.xlane.xlu0 %416
  %v418 = vsel %vm374, %v408, 0.0
  %419 = vadd.xlane.f32.xlu0 %v418
  %v420 = vpop.xlane.xlu0 %419
  %v421 = vsel %vm374, %v409, 0.0
  %422 = vadd.xlane.f32.xlu0 %v421
  %v423 = vpop.xlane.xlu0 %422
  %v424 = vsel %vm374, %v410, 0.0
  %425 = vadd.xlane.f32.xlu0 %v424
  %v426 = vpop.xlane.xlu0 %425
  %v427 = vsel %vm374, %v411, 0.0
  %428 = vadd.xlane.f32.xlu0 %v427
  %v429 = vpop.xlane.xlu0 %428
  %v430 = vsel %vm374, %v412, 0.0
  %431 = vadd.xlane.f32.xlu0 %v430
  %v432 = vpop.xlane.xlu0 %431
  %v433 = vsel %vm374, %v413, 0.0
  %434 = vadd.xlane.f32.xlu0 %v433
  %v435 = vpop.xlane.xlu0 %434
  %v436 = vsel %vm374, %v414, 0.0
  %437 = vadd.xlane.f32.xlu0 %v436
  %v438 = vpop.xlane.xlu0 %437
  %v439 = vmul.f32 %v417, 0.03125
  %v440 = vmul.f32 %v420, 0.03125
  %v441 = vmul.f32 %v423, 0.03125
  %v442 = vmul.f32 %v426, 0.03125
  %v443 = vmul.f32 %v429, 0.03125
  %v444 = vmul.f32 %v432, 0.03125
  %v445 = vmul.f32 %v435, 0.03125
  %v446 = vmul.f32 %v438, 0.03125
  %v447 = vmul.f32 %v399, %v399
  %v448 = vmul.f32 %v400, %v400
  %v449 = vmul.f32 %v401, %v401
  %v450 = vmul.f32 %v402, %v402
  %v451 = vmul.f32 %v403, %v403
  %v452 = vmul.f32 %v404, %v404
  %v453 = vmul.f32 %v405, %v405
  %v454 = vmul.f32 %v406, %v406
  %v455 = vsub.f32 %v439, %v447
  %v456 = vsub.f32 %v440, %v448
  %v457 = vsub.f32 %v441, %v449
  %v458 = vsub.f32 %v442, %v450
  %v459 = vsub.f32 %v443, %v451
  %v460 = vsub.f32 %v444, %v452
  %v461 = vsub.f32 %v445, %v453
  %v462 = vsub.f32 %v446, %v454
  %v463 = vmax.f32 %v455, 0.0
  %v464 = vmax.f32 %v456, 0.0
  %v465 = vmax.f32 %v457, 0.0
  %v466 = vmax.f32 %v458, 0.0
  %v467 = vmax.f32 %v459, 0.0
  %v468 = vmax.f32 %v460, 0.0
  %v469 = vmax.f32 %v461, 0.0
  %v470 = vmax.f32 %v462, 0.0
  %v471 = vld [vmem:[%s3] sm:$0xff]
  %v472 = vld [vmem:[%s3 + $0x8] sm:$0xff]
  %v473 = vld [vmem:[%s3 + $0x10] sm:$0xff]
  %v474 = vld [vmem:[%s3 + $0x18] sm:$0xff]
  %v475 = vld [vmem:[%s3 + $0x20] sm:$0xff]
  %v476 = vld [vmem:[%s3 + $0x28] sm:$0xff]
  %v477 = vld [vmem:[%s3 + $0x30] sm:$0xff]
  %v478 = vld [vmem:[%s3 + $0x38] sm:$0xff]
  %v479 = vadd.f32 %v463, 1e-05
  %v480 = vadd.f32 %v464, 1e-05
  %v481 = vadd.f32 %v465, 1e-05
  %v482 = vadd.f32 %v466, 1e-05
  %v483 = vadd.f32 %v467, 1e-05
  %v484 = vadd.f32 %v468, 1e-05
  %v485 = vadd.f32 %v469, 1e-05
  %v486 = vadd.f32 %v470, 1e-05
  %v487 = vrsqrt.pop %v479
  %v488 = vrsqrt.pop %v480
  %v489 = vrsqrt.pop %v481
  %v490 = vrsqrt.pop %v482
  %v491 = vrsqrt.pop %v483
  %v492 = vrsqrt.pop %v484
  %v493 = vrsqrt.pop %v485
  %v494 = vrsqrt.pop %v486
  %v495 = vmul.f32 %v471, %v487
  %v496 = vmul.f32 %v472, %v488
  %v497 = vmul.f32 %v473, %v489
  %v498 = vmul.f32 %v474, %v490
  %v499 = vmul.f32 %v475, %v491
  %v500 = vmul.f32 %v476, %v492
  %v501 = vmul.f32 %v477, %v493
  %v502 = vmul.f32 %v478, %v494
  %v503 = vld [vmem:[%s4] sm:$0xff]
  %v504 = vld [vmem:[%s4 + $0x8] sm:$0xff]
  %v505 = vld [vmem:[%s4 + $0x10] sm:$0xff]
  %v506 = vld [vmem:[%s4 + $0x18] sm:$0xff]
  %v507 = vld [vmem:[%s4 + $0x20] sm:$0xff]
  %v508 = vld [vmem:[%s4 + $0x28] sm:$0xff]
  %v509 = vld [vmem:[%s4 + $0x30] sm:$0xff]
  %v510 = vld [vmem:[%s4 + $0x38] sm:$0xff]
  %v511 = vmul.f32 %v399, %v495
  %v512 = vmul.f32 %v400, %v496
  %v513 = vmul.f32 %v401, %v497
  %v514 = vmul.f32 %v402, %v498
  %v515 = vmul.f32 %v403, %v499
  %v516 = vmul.f32 %v404, %v500
  %v517 = vmul.f32 %v405, %v501
  %v518 = vmul.f32 %v406, %v502
  %v519 = vsub.f32 %v503, %v511
  %v520 = vsub.f32 %v504, %v512
  %v521 = vsub.f32 %v505, %v513
  %v522 = vsub.f32 %v506, %v514
  %v523 = vsub.f32 %v507, %v515
  %v524 = vsub.f32 %v508, %v516
  %v525 = vsub.f32 %v509, %v517
  %v526 = vsub.f32 %v510, %v518
  %528 = vset.pattern.permute.xlu0 0
  %529 = vperm.xlu0 %528, %v495
  %v530 = vpop.permute.xlu0 %529
  %533 = vset.pattern.permute.xlu0 0
  %534 = vperm.xlu0 %533, %v496
  %v535 = vpop.permute.xlu0 %534
  %538 = vset.pattern.permute.xlu0 0
  %539 = vperm.xlu0 %538, %v497
  %v540 = vpop.permute.xlu0 %539
  %543 = vset.pattern.permute.xlu0 0
  %544 = vperm.xlu0 %543, %v498
  %v545 = vpop.permute.xlu0 %544
  %548 = vset.pattern.permute.xlu0 0
  %549 = vperm.xlu0 %548, %v499
  %v550 = vpop.permute.xlu0 %549
  %553 = vset.pattern.permute.xlu0 0
  %554 = vperm.xlu0 %553, %v500
  %v555 = vpop.permute.xlu0 %554
  %558 = vset.pattern.permute.xlu0 0
  %559 = vperm.xlu0 %558, %v501
  %v560 = vpop.permute.xlu0 %559
  %563 = vset.pattern.permute.xlu0 0
  %564 = vperm.xlu0 %563, %v502
  %v565 = vpop.permute.xlu0 %564
  %v567 = vmul.f32 %v336, %v530
  %v568 = vmul.f32 %v341, %v535
  %v569 = vmul.f32 %v346, %v540
  %v570 = vmul.f32 %v351, %v545
  %v571 = vmul.f32 %v356, %v550
  %v572 = vmul.f32 %v361, %v555
  %v573 = vmul.f32 %v366, %v560
  %v574 = vmul.f32 %v371, %v565
  %576 = vset.pattern.permute.xlu0 0
  %577 = vperm.xlu0 %576, %v519
  %v578 = vpop.permute.xlu0 %577
  %581 = vset.pattern.permute.xlu0 0
  %582 = vperm.xlu0 %581, %v520
  %v583 = vpop.permute.xlu0 %582
  %586 = vset.pattern.permute.xlu0 0
  %587 = vperm.xlu0 %586, %v521
  %v588 = vpop.permute.xlu0 %587
  %591 = vset.pattern.permute.xlu0 0
  %592 = vperm.xlu0 %591, %v522
  %v593 = vpop.permute.xlu0 %592
  %596 = vset.pattern.permute.xlu0 0
  %597 = vperm.xlu0 %596, %v523
  %v598 = vpop.permute.xlu0 %597
  %601 = vset.pattern.permute.xlu0 0
  %602 = vperm.xlu0 %601, %v524
  %v603 = vpop.permute.xlu0 %602
  %606 = vset.pattern.permute.xlu0 0
  %607 = vperm.xlu0 %606, %v525
  %v608 = vpop.permute.xlu0 %607
  %611 = vset.pattern.permute.xlu0 0
  %612 = vperm.xlu0 %611, %v526
  %v613 = vpop.permute.xlu0 %612
  %v615 = vadd.f32 %v567, %v578
  %v616 = vadd.f32 %v568, %v583
  %v617 = vadd.f32 %v569, %v588
  %v618 = vadd.f32 %v570, %v593
  %v619 = vadd.f32 %v571, %v598
  %v620 = vadd.f32 %v572, %v603
  %v621 = vadd.f32 %v573, %v608
  %v622 = vadd.f32 %v574, %v613
  %vm623 = vcmp.ge.f32.partialorder %v615, 0.0
  %vm624 = vcmp.ge.f32.partialorder %v616, 0.0
  %vm625 = vcmp.ge.f32.partialorder %v617, 0.0
  %vm626 = vcmp.ge.f32.partialorder %v618, 0.0
  %vm627 = vcmp.ge.f32.partialorder %v619, 0.0
  %vm628 = vcmp.ge.f32.partialorder %v620, 0.0
  %vm629 = vcmp.ge.f32.partialorder %v621, 0.0
  %vm630 = vcmp.ge.f32.partialorder %v622, 0.0
  %v631 = vmul.f32 %v615, 0.2
  %v632 = vmul.f32 %v616, 0.2
  %v633 = vmul.f32 %v617, 0.2
  %v634 = vmul.f32 %v618, 0.2
  %v635 = vmul.f32 %v619, 0.2
  %v636 = vmul.f32 %v620, 0.2
  %v637 = vmul.f32 %v621, 0.2
  %v638 = vmul.f32 %v622, 0.2
  %v639 = vsel %vm623, %v615, %v631
  %v640 = vsel %vm624, %v616, %v632
  %v641 = vsel %vm625, %v617, %v633
  %v642 = vsel %vm626, %v618, %v634
  %v643 = vsel %vm627, %v619, %v635
  %v644 = vsel %vm628, %v620, %v636
  %v645 = vsel %vm629, %v621, %v637
  %v646 = vsel %vm630, %v622, %v638
  %647 = vst.msk [vmem:[%s5] sm:$0xff] %vm374, %v639
  %648 = vst.msk [vmem:[%s5 + $0x8] sm:$0xff] %vm374, %v640
  %649 = vst.msk [vmem:[%s5 + $0x10] sm:$0xff] %vm374, %v641
  %650 = vst.msk [vmem:[%s5 + $0x18] sm:$0xff] %vm374, %v642
  %651 = vst.msk [vmem:[%s5 + $0x20] sm:$0xff] %vm374, %v643
  %652 = vst.msk [vmem:[%s5 + $0x28] sm:$0xff] %vm374, %v644
  %653 = vst.msk [vmem:[%s5 + $0x30] sm:$0xff] %vm374, %v645
  %654 = vst.msk [vmem:[%s5 + $0x38] sm:$0xff] %vm374, %v646
  // Predicated region
  $region22: #{model_b_periodic_forward.10} parent=0 // pred_check
    _
  $region23: #{model_b_periodic_forward.10} parent=0 // pred_check_branch
    %656 = sbr.rel (0) target = $region25
  $region24: #{model_b_periodic_forward.10} parent=0 // pred_region
    _
  $region25: #{model_b_periodic_forward.10} parent=0 // pred_fallthru
    _
  // Predicated region
  $region26: #{model_b_periodic_forward.10} parent=0 // pred_check
    _
  $region27: #{model_b_periodic_forward.10} parent=0 // pred_check_branch
    %658 = sbr.rel (0) target = $region29
  $region28: #{model_b_periodic_forward.10} parent=0 // pred_region
    _
  $region29: #{model_b_periodic_forward.10} parent=0 // pred_fallthru
    _

// kernel: model_b_periodic_forward.11
$region0: #{model_b_periodic_forward.11}
  #allocation0 [shape = 'u32[]', space=smem, size = 0x4, offset = 0x4, fixed_abs, tag = 'smem constant byte address 0x4 - core index']
  #allocation1 [shape = 'u32[144,128]{1,0:T(1,128)}', space=vmem, size = 0x12000, scoped, tag = 'internal scratch']
  #allocation2 [shape = 'f32[1,1]{1,0:T(1,128)S(1)}', space=vmem, size = 0x200, scoped, tag = 'scoped memory for model_b_periodic_forward.11']
  %s0 = inlined_call_operand.vmem [shape: f32[576,32], index: 0, kind: input, shape index: {}]
  %s1 = inlined_call_operand.vmem [shape: f32[50,576], index: 1, kind: input, shape index: {}]
  %s2 = inlined_call_operand.vmem [shape: f32[50,1], index: 2, kind: input, shape index: {}]
  %s3 = inlined_call_operand.vmem [shape: f32[50,1], index: 3, kind: input, shape index: {}]
  %s4 = inlined_call_operand.vmem [shape: f32[50,1], index: 4, kind: input, shape index: {}]
  %s5 = inlined_call_operand.vmem [shape: f32[50,32], index: 5, kind: input, shape index: {}]
  %s6 = inlined_call_operand.vmem [shape: f32[32,2], index: 6, kind: input, shape index: {}]
  %s7 = inlined_call_operand.<no memory space> [shape: f32[1,1], index: 7, kind: input, shape index: {}]
  %s8 = inlined_call_operand.hbm [shape: f32[1,2], index: 8, kind: output, shape index: {}]
  %s9 = sld [smem:[#allocation0]]
  $region42: #{model_b_periodic_forward.11} parent=0
    _
  %s11 = ssub.s32 1, %s9
  %s12 = scalar_select 0, %s11, %s9
  %v13 = vstv %s7
  %14 = vst [vmem:[#allocation2] sm:$0x1] %v13
  $region1: #{model_b_periodic_forward.11} parent=0
    #allocation3 [shape = 'u8[512]{0}', space=vmem, size = 0x400, scoped, tag = 'output window, operand 0, single buffered']
    #allocation4 [shape = 's32[1]{0}', space=sflag, size = 0x4, scoped, tag = 'scoped memory for model_b_periodic_forward.11']
    %15 = vsyncpa [#allocation4], 0
    // Predicated region
    $region2: #{model_b_periodic_forward.11} parent=1 // pred_check
      _
    $region3: #{model_b_periodic_forward.11} parent=1 // pred_check_branch
      %17 = sbr.rel (0) target = $region5
    $region4: #{model_b_periodic_forward.11} parent=1 // pred_region
      _
    $region5: #{model_b_periodic_forward.11} parent=1 // pred_fallthru
      _
    // Predicated region
    $region6: #{model_b_periodic_forward.11} parent=1 // pred_check
      _
    $region7: #{model_b_periodic_forward.11} parent=1 // pred_check_branch
      %19 = sbr.rel (0) target = $region9
    $region8: #{model_b_periodic_forward.11} parent=1 // pred_region
      _
    $region9: #{model_b_periodic_forward.11} parent=1 // pred_fallthru
      _
    // Predicated region
    $region10: #{model_b_periodic_forward.11} parent=1 // pred_check
      _
    $region11: #{model_b_periodic_forward.11} parent=1 // pred_check_branch
      %21 = sbr.rel (0) target = $region13
    $region12: #{model_b_periodic_forward.11} parent=1 // pred_region
      _
    $region13: #{model_b_periodic_forward.11} parent=1 // pred_fallthru
      _
    // Predicated region
    $region14: #{model_b_periodic_forward.11} parent=1 // pred_check
      _
    $region15: #{model_b_periodic_forward.11} parent=1 // pred_check_branch
      %23 = sbr.rel (0) target = $region17
    $region16: #{model_b_periodic_forward.11} parent=1 // pred_region
      _
    $region17: #{model_b_periodic_forward.11} parent=1 // pred_fallthru
      _
    // Predicated region
    $region18: #{model_b_periodic_forward.11} parent=1 // pred_check
      _
    $region19: #{model_b_periodic_forward.11} parent=1 // pred_check_branch
      %25 = sbr.rel (0) target = $region21
    $region20: #{model_b_periodic_forward.11} parent=1 // pred_region
      _
    $region21: #{model_b_periodic_forward.11} parent=1 // pred_fallthru
      _
    // Predicated region
    $region22: #{model_b_periodic_forward.11} parent=1 // pred_check
      _
    $region23: #{model_b_periodic_forward.11} parent=1 // pred_check_branch
      %27 = sbr.rel (0) target = $region25
    $region24: #{model_b_periodic_forward.11} parent=1 // pred_region
      _
    $region25: #{model_b_periodic_forward.11} parent=1 // pred_fallthru
      _
    // Predicated region
    $region26: #{model_b_periodic_forward.11} parent=1 // pred_check
      _
    $region27: #{model_b_periodic_forward.11} parent=1 // pred_check_branch
      %29 = sbr.rel (0) target = $region29
    $region28: #{model_b_periodic_forward.11} parent=1 // pred_region
      _
    $region29: #{model_b_periodic_forward.11} parent=1 // pred_fallthru
      _
    // Predicated region
    $region30: #{model_b_periodic_forward.11} parent=1 // pred_check
      _
    $region31: #{model_b_periodic_forward.11} parent=1 // pred_check_branch
      %31 = sbr.rel (0) target = $region33
    $region32: #{model_b_periodic_forward.11} parent=1 // pred_region
      _
    $region33: #{model_b_periodic_forward.11} parent=1 // pred_fallthru
      _
    %v32 = vld [vmem:[%s1] sm:$0xff]
    %v33 = vld [vmem:[%s1 + $0x8] sm:$0xff]
    %v34 = vld [vmem:[%s1 + $0x10] sm:$0xff]
    %v35 = vld [vmem:[%s1 + $0x18] sm:$0xff]
    %v36 = vld [vmem:[%s1 + $0x20] sm:$0xff]
    %v37 = vld [vmem:[%s1 + $0x28] sm:$0xff]
    %v38 = vld [vmem:[%s1 + $0x30] sm:$0xff]
    %v39 = vld [vmem:[%s1 + $0x38] sm:$0xff]
    %v40 = vld [vmem:[%s1 + $0x40] sm:$0xff]
    %v41 = vld [vmem:[%s1 + $0x48] sm:$0xff]
    %v42 = vld [vmem:[%s1 + $0x50] sm:$0xff]
    %v43 = vld [vmem:[%s1 + $0x58] sm:$0xff]
    %v44 = vld [vmem:[%s1 + $0x60] sm:$0xff]
    %v45 = vld [vmem:[%s1 + $0x68] sm:$0xff]
    %v46 = vld [vmem:[%s1 + $0x70] sm:$0xff]
    %v47 = vld [vmem:[%s1 + $0x78] sm:$0xff]
    %v48 = vld [vmem:[%s1 + $0x80] sm:$0xff]
    %v49 = vld [vmem:[%s1 + $0x88] sm:$0xff]
    %v50 = vld [vmem:[%s1 + $0x90] sm:$0xff]
    %v51 = vld [vmem:[%s1 + $0x98] sm:$0xff]
    %v52 = vld [vmem:[%s1 + $0xa0] sm:$0xff]
    %v53 = vld [vmem:[%s1 + $0xa8] sm:$0xff]
    %v54 = vld [vmem:[%s1 + $0xb0] sm:$0xff]
    %v55 = vld [vmem:[%s1 + $0xb8] sm:$0xff]
    %v56 = vld [vmem:[%s1 + $0xc0] sm:$0xff]
    %v57 = vld [vmem:[%s1 + $0xc8] sm:$0xff]
    %v58 = vld [vmem:[%s1 + $0xd0] sm:$0xff]
    %v59 = vld [vmem:[%s1 + $0xd8] sm:$0xff]
    %v60 = vld [vmem:[%s1 + $0xe0] sm:$0xff]
    %v61 = vld [vmem:[%s1 + $0xe8] sm:$0xff]
    %v62 = vld [vmem:[%s1 + $0xf0] sm:$0x3]
    %v63 = vld [vmem:[%s1 + $0xf8] sm:$0x3]
    %v64 = vld [vmem:[%s1 + $0x100] sm:$0x3]
    %v65 = vld [vmem:[%s1 + $0x108] sm:$0x3]
    %v66 = vld [vmem:[%s1 + $0x110] sm:$0x3]
    %v67 = vld [vmem:[%s0] sm:$0xff]
    %v68 = vld [vmem:[%s0 + $0x8] sm:$0xff]
    %v69 = vld [vmem:[%s0 + $0x10] sm:$0xff]
    %v70 = vld [vmem:[%s0 + $0x18] sm:$0xff]
    %v71 = vld [vmem:[%s0 + $0x20] sm:$0xff]
    %v72 = vld [vmem:[%s0 + $0x28] sm:$0xff]
    %v73 = vld [vmem:[%s0 + $0x30] sm:$0xff]
    %v74 = vld [vmem:[%s0 + $0x38] sm:$0xff]
    %v75 = vld [vmem:[%s0 + $0x40] sm:$0xff]
    %v76 = vld [vmem:[%s0 + $0x48] sm:$0xff]
    %v77 = vld [vmem:[%s0 + $0x50] sm:$0xff]
    %v78 = vld [vmem:[%s0 + $0x58] sm:$0xff]
    %v79 = vld [vmem:[%s0 + $0x60] sm:$0xff]
    %v80 = vld [vmem:[%s0 + $0x68] sm:$0xff]
    %v81 = vld [vmem:[%s0 + $0x70] sm:$0xff]
    %v82 = vld [vmem:[%s0 + $0x78] sm:$0xff]
    %v83 = vld [vmem:[%s0 + $0x80] sm:$0xff]
    %v84 = vld [vmem:[%s0 + $0x88] sm:$0xff]
    %v85 = vld [vmem:[%s0 + $0x90] sm:$0xff]
    %v86 = vld [vmem:[%s0 + $0x98] sm:$0xff]
    %v87 = vld [vmem:[%s0 + $0xa0] sm:$0xff]
    %v88 = vld [vmem:[%s0 + $0xa8] sm:$0xff]
    %v89 = vld [vmem:[%s0 + $0xb0] sm:$0xff]
    %v90 = vld [vmem:[%s0 + $0xb8] sm:$0xff]
    %v91 = vld [vmem:[%s0 + $0xc0] sm:$0xff]
    %v92 = vld [vmem:[%s0 + $0xc8] sm:$0xff]
    %v93 = vld [vmem:[%s0 + $0xd0] sm:$0xff]
    %v94 = vld [vmem:[%s0 + $0xd8] sm:$0xff]
    %v95 = vld [vmem:[%s0 + $0xe0] sm:$0xff]
    %v96 = vld [vmem:[%s0 + $0xe8] sm:$0xff]
    %v97 = vld [vmem:[%s0 + $0xf0] sm:$0xff]
    %v98 = vld [vmem:[%s0 + $0xf8] sm:$0xff]
    %v99 = vld [vmem:[%s0 + $0x100] sm:$0xff]
    %v100 = vld [vmem:[%s0 + $0x108] sm:$0xff]
    %v101 = vld [vmem:[%s0 + $0x110] sm:$0xff]
    %v102 = vld [vmem:[%s0 + $0x118] sm:$0xff]
    %v103 = vld [vmem:[%s0 + $0x120] sm:$0xff]
    %v104 = vld [vmem:[%s0 + $0x128] sm:$0xff]
    %v105 = vld [vmem:[%s0 + $0x130] sm:$0xff]
    %v106 = vld [vmem:[%s0 + $0x138] sm:$0xff]
    %v107 = vld [vmem:[%s0 + $0x140] sm:$0xff]
    %v108 = vld [vmem:[%s0 + $0x148] sm:$0xff]
    %v109 = vld [vmem:[%s0 + $0x150] sm:$0xff]
    %v110 = vld [vmem:[%s0 + $0x158] sm:$0xff]
    %v111 = vld [vmem:[%s0 + $0x160] sm:$0xff]
    %v112 = vld [vmem:[%s0 + $0x168] sm:$0xff]
    %v113 = vld [vmem:[%s0 + $0x170] sm:$0xff]
    %v114 = vld [vmem:[%s0 + $0x178] sm:$0xff]
    %v115 = vld [vmem:[%s0 + $0x180] sm:$0xff]
    %v116 = vld [vmem:[%s0 + $0x188] sm:$0xff]
    %v117 = vld [vmem:[%s0 + $0x190] sm:$0xff]
    %v118 = vld [vmem:[%s0 + $0x198] sm:$0xff]
    %v119 = vld [vmem:[%s0 + $0x1a0] sm:$0xff]
    %v120 = vld [vmem:[%s0 + $0x1a8] sm:$0xff]
    %v121 = vld [vmem:[%s0 + $0x1b0] sm:$0xff]
    %v122 = vld [vmem:[%s0 + $0x1b8] sm:$0xff]
    %v123 = vld [vmem:[%s0 + $0x1c0] sm:$0xff]
    %v124 = vld [vmem:[%s0 + $0x1c8] sm:$0xff]
    %v125 = vld [vmem:[%s0 + $0x1d0] sm:$0xff]
    %v126 = vld [vmem:[%s0 + $0x1d8] sm:$0xff]
    %v127 = vld [vmem:[%s0 + $0x1e0] sm:$0xff]
    %v128 = vld [vmem:[%s0 + $0x1e8] sm:$0xff]
    %v129 = vld [vmem:[%s0 + $0x1f0] sm:$0xff]
    %v130 = vld [vmem:[%s0 + $0x1f8] sm:$0xff]
    %v131 = vld [vmem:[%s0 + $0x200] sm:$0xff]
    %v132 = vld [vmem:[%s0 + $0x208] sm:$0xff]
    %v133 = vld [vmem:[%s0 + $0x210] sm:$0xff]
    %v134 = vld [vmem:[%s0 + $0x218] sm:$0xff]
    %v135 = vld [vmem:[%s0 + $0x220] sm:$0xff]
    %v136 = vld [vmem:[%s0 + $0x228] sm:$0xff]
    %v137 = vld [vmem:[%s0 + $0x230] sm:$0xff]
    %v138 = vld [vmem:[%s0 + $0x238] sm:$0xff]
    %v139 = vld [vmem:[%s2] sm:$0xff]
    %v140 = vld [vmem:[%s2 + $0x8] sm:$0xff]
    %v141 = vld [vmem:[%s2 + $0x10] sm:$0xff]
    %v142 = vld [vmem:[%s2 + $0x18] sm:$0xff]
    %v143 = vld [vmem:[%s2 + $0x20] sm:$0xff]
    %v144 = vld [vmem:[%s2 + $0x28] sm:$0xff]
    %v145 = vld [vmem:[%s2 + $0x30] sm:$0x3]
    %147 = vset.pattern.permute.xlu0 0
    %148 = vperm.xlu0 %147, %v139
    %v149 = vpop.permute.xlu0 %148
    %152 = vset.pattern.permute.xlu0 0
    %153 = vperm.xlu0 %152, %v140
    %v154 = vpop.permute.xlu0 %153
    %157 = vset.pattern.permute.xlu0 0
    %158 = vperm.xlu0 %157, %v141
    %v159 = vpop.permute.xlu0 %158
    %162 = vset.pattern.permute.xlu0 0
    %163 = vperm.xlu0 %162, %v142
    %v164 = vpop.permute.xlu0 %163
    %167 = vset.pattern.permute.xlu0 0
    %168 = vperm.xlu0 %167, %v143
    %v169 = vpop.permute.xlu0 %168
    %172 = vset.pattern.permute.xlu0 0
    %173 = vperm.xlu0 %172, %v144
    %v174 = vpop.permute.xlu0 %173
    %177 = vset.pattern.permute.xlu0 0
    %178 = vperm.xlu0 %177, %v145
    %v179 = vpop.permute.xlu0 %178
    %vm181 = vcmask 523264
    %v183 = vsel %vm181, %v36, 0
    %v186 = vsel %vm181, %v41, 0
    %v189 = vsel %vm181, %v46, 0
    %v192 = vsel %vm181, %v51, 0
    %v195 = vsel %vm181, %v56, 0
    %v198 = vsel %vm181, %v61, 0
    %v201 = vsel %vm181, %v66, 0
    %203 = vmatprep.subr.mxu0 0.0
    %204 = vmatpush1.msra.mxu0 %v82
    %205 = vmatprep.subr.mxu0 0.0
    %206 = vmatpush1.msra.mxu0 %v81
    %207 = vmatprep.subr.mxu0 0.0
    %208 = vmatpush1.msra.mxu0 %v80
    %209 = vmatprep.subr.mxu0 0.0
    %210 = vmatpush1.msra.mxu0 %v79
    %211 = vmatprep.subr.mxu0 0.0
    %212 = vmatpush1.msra.mxu0 %v78
    %213 = vmatprep.subr.mxu0 0.0
    %214 = vmatpush1.msra.mxu0 %v77
    %215 = vmatprep.subr.mxu0 0.0
    %216 = vmatpush1.msra.mxu0 %v76
    %217 = vmatprep.subr.mxu0 0.0
    %218 = vmatpush1.msra.mxu0 %v75
    %219 = vmatprep.subr.mxu0 0.0
    %220 = vmatpush1.msra.mxu0 %v74
    %221 = vmatprep.subr.mxu0 0.0
    %222 = vmatpush1.msra.mxu0 %v73
    %223 = vmatprep.subr.mxu0 0.0
    %224 = vmatpush1.msra.mxu0 %v72
    %225 = vmatprep.subr.mxu0 0.0
    %226 = vmatpush1.msra.mxu0 %v71
    %227 = vmatprep.subr.mxu0 0.0
    %228 = vmatpush1.msra.mxu0 %v70
    %229 = vmatprep.subr.mxu0 0.0
    %230 = vmatpush1.msra.mxu0 %v69
    %231 = vmatprep.subr.mxu0 0.0
    %232 = vmatpush1.msra.mxu0 %v68
    %233 = vmatprep.subr.mxu0 0.0
    %234 = vmatpush1.msra.mxu0 %v67
    %235 = vmatprep.subr.mxu0 0.0
    %236 = vmatpush2.msra.mxu0 %v98
    %237 = vmatprep.subr.mxu0 0.0
    %238 = vmatpush2.msra.mxu0 %v97
    %239 = vmatprep.subr.mxu0 0.0
    %240 = vmatpush2.msra.mxu0 %v96
    %241 = vmatprep.subr.mxu0 0.0
    %242 = vmatpush2.msra.mxu0 %v95
    %243 = vmatprep.subr.mxu0 0.0
    %244 = vmatpush2.msra.mxu0 %v94
    %245 = vmatprep.subr.mxu0 0.0
    %246 = vmatpush2.msra.mxu0 %v93
    %247 = vmatprep.subr.mxu0 0.0
    %248 = vmatpush2.msra.mxu0 %v92
    %249 = vmatprep.subr.mxu0 0.0
    %250 = vmatpush2.msra.mxu0 %v91
    %251 = vmatprep.subr.mxu0 0.0
    %252 = vmatpush2.msra.mxu0 %v90
    %253 = vmatprep.subr.mxu0 0.0
    %254 = vmatpush2.msra.mxu0 %v89
    %255 = vmatprep.subr.mxu0 0.0
    %256 = vmatpush2.msra.mxu0 %v88
    %257 = vmatprep.subr.mxu0 0.0
    %258 = vmatpush2.msra.mxu0 %v87
    %259 = vmatprep.subr.mxu0 0.0
    %260 = vmatpush2.msra.mxu0 %v86
    %261 = vmatprep.subr.mxu0 0.0
    %262 = vmatpush2.msra.mxu0 %v85
    %263 = vmatprep.subr.mxu0 0.0
    %264 = vmatpush2.msra.mxu0 %v84
    %265 = vmatprep.subr.mxu0 0.0
    %266 = vmatpush2.msra.mxu0 %v83
    %267 = vmatprep.mubr.f32.mxu0 %v33
    %268 = vmatmul.mubr.f32.gmra.mxu0 %v32
    %v269 = vpop.f32.mrf.mxu0
    %v270 = vadd.f32 %v149, %v269
    %v271 = vpop.f32.mrf.mxu0
    %272 = vmatprep.mubr.f32.mxu0 %v38
    %273 = vmatmul.mubr.f32.gmra.mxu0 %v37
    %v274 = vpop.f32.mrf.mxu0
    %v275 = vadd.f32 %v154, %v274
    %v276 = vpop.f32.mrf.mxu0
    %277 = vmatprep.mubr.f32.mxu0 %v43
    %278 = vmatmul.mubr.f32.gmra.mxu0 %v42
    %v279 = vpop.f32.mrf.mxu0
    %v280 = vadd.f32 %v159, %v279
    %v281 = vpop.f32.mrf.mxu0
    %282 = vmatprep.mubr.f32.mxu0 %v48
    %283 = vmatmul.mubr.f32.gmra.mxu0 %v47
    %v284 = vpop.f32.mrf.mxu0
    %v285 = vadd.f32 %v164, %v284
    %v286 = vpop.f32.mrf.mxu0
    %287 = vmatprep.mubr.f32.mxu0 %v53
    %288 = vmatmul.mubr.f32.gmra.mxu0 %v52
    %v289 = vpop.f32.mrf.mxu0
    %v290 = vadd.f32 %v169, %v289
    %v291 = vpop.f32.mrf.mxu0
    %292 = vmatprep.mubr.f32.mxu0 %v58
    %293 = vmatmul.mubr.f32.gmra.mxu0 %v57
    %v294 = vpop.f32.mrf.mxu0
    %v295 = vadd.f32 %v174, %v294
    %v296 = vpop.f32.mrf.mxu0
    %297 = vmatprep.mubr.f32.mxu0 %v63
    %298 = vmatmul.mubr.f32.gmra.mxu0 %v62
    %v299 = vpop.f32.mrf.mxu0
    %v300 = vadd.f32 %v179, %v299
    %v301 = vpop.f32.mrf.mxu0
    %302 = vdwg.mxu0
    %303 = vmatprep.subr.mxu0 0.0
    %304 = vmatpush1.msra.mxu0 %v114
    %305 = vmatprep.subr.mxu0 0.0
    %306 = vmatpush1.msra.mxu0 %v113
    %307 = vmatprep.subr.mxu0 0.0
    %308 = vmatpush1.msra.mxu0 %v112
    %309 = vmatprep.subr.mxu0 0.0
    %310 = vmatpush1.msra.mxu0 %v111
    %311 = vmatprep.subr.mxu0 0.0
    %312 = vmatpush1.msra.mxu0 %v110
    %313 = vmatprep.subr.mxu0 0.0
    %314 = vmatpush1.msra.mxu0 %v109
    %315 = vmatprep.subr.mxu0 0.0
    %316 = vmatpush1.msra.mxu0 %v108
    %317 = vmatprep.subr.mxu0 0.0
    %318 = vmatpush1.msra.mxu0 %v107
    %319 = vmatprep.subr.mxu0 0.0
    %320 = vmatpush1.msra.mxu0 %v106
    %321 = vmatprep.subr.mxu0 0.0
    %322 = vmatpush1.msra.mxu0 %v105
    %323 = vmatprep.subr.mxu0 0.0
    %324 = vmatpush1.msra.mxu0 %v104
    %325 = vmatprep.subr.mxu0 0.0
    %326 = vmatpush1.msra.mxu0 %v103
    %327 = vmatprep.subr.mxu0 0.0
    %328 = vmatpush1.msra.mxu0 %v102
    %329 = vmatprep.subr.mxu0 0.0
    %330 = vmatpush1.msra.mxu0 %v101
    %331 = vmatprep.subr.mxu0 0.0
    %332 = vmatpush1.msra.mxu0 %v100
    %333 = vmatprep.subr.mxu0 0.0
    %334 = vmatpush1.msra.mxu0 %v99
    %335 = vmatprep.subr.mxu0 0.0
    %336 = vmatpush2.msra.mxu0 %v130
    %337 = vmatprep.subr.mxu0 0.0
    %338 = vmatpush2.msra.mxu0 %v129
    %339 = vmatprep.subr.mxu0 0.0
    %340 = vmatpush2.msra.mxu0 %v128
    %341 = vmatprep.subr.mxu0 0.0
    %342 = vmatpush2.msra.mxu0 %v127
    %343 = vmatprep.subr.mxu0 0.0
    %344 = vmatpush2.msra.mxu0 %v126
    %345 = vmatprep.subr.mxu0 0.0
    %346 = vmatpush2.msra.mxu0 %v125
    %347 = vmatprep.subr.mxu0 0.0
    %348 = vmatpush2.msra.mxu0 %v124
    %349 = vmatprep.subr.mxu0 0.0
    %350 = vmatpush2.msra.mxu0 %v123
    %351 = vmatprep.subr.mxu0 0.0
    %352 = vmatpush2.msra.mxu0 %v122
    %353 = vmatprep.subr.mxu0 0.0
    %354 = vmatpush2.msra.mxu0 %v121
    %355 = vmatprep.subr.mxu0 0.0
    %356 = vmatpush2.msra.mxu0 %v120
    %357 = vmatprep.subr.mxu0 0.0
    %358 = vmatpush2.msra.mxu0 %v119
    %359 = vmatprep.subr.mxu0 0.0
    %360 = vmatpush2.msra.mxu0 %v118
    %361 = vmatprep.subr.mxu0 0.0
    %362 = vmatpush2.msra.mxu0 %v117
    %363 = vmatprep.subr.mxu0 0.0
    %364 = vmatpush2.msra.mxu0 %v116
    %365 = vmatprep.subr.mxu0 0.0
    %366 = vmatpush2.msra.mxu0 %v115
    %367 = vmatprep.mubr.f32.mxu0 %v35
    %368 = vmatmul.mubr.f32.gmra.mxu0 %v34
    %v369 = vpop.f32.mrf.mxu0
    %v370 = vadd.f32 %v270, %v369
    %v371 = vpop.f32.mrf.mxu0
    %372 = vmatprep.mubr.f32.mxu0 %v40
    %373 = vmatmul.mubr.f32.gmra.mxu0 %v39
    %v374 = vpop.f32.mrf.mxu0
    %v375 = vadd.f32 %v275, %v374
    %v376 = vpop.f32.mrf.mxu0
    %377 = vmatprep.mubr.f32.mxu0 %v45
    %378 = vmatmul.mubr.f32.gmra.mxu0 %v44
    %v379 = vpop.f32.mrf.mxu0
    %v380 = vadd.f32 %v280, %v379
    %v381 = vpop.f32.mrf.mxu0
    %382 = vmatprep.mubr.f32.mxu0 %v50
    %383 = vmatmul.mubr.f32.gmra.mxu0 %v49
    %v384 = vpop.f32.mrf.mxu0
    %v385 = vadd.f32 %v285, %v384
    %v386 = vpop.f32.mrf.mxu0
    %387 = vmatprep.mubr.f32.mxu0 %v55
    %388 = vmatmul.mubr.f32.gmra.mxu0 %v54
    %v389 = vpop.f32.mrf.mxu0
    %v390 = vadd.f32 %v290, %v389
    %v391 = vpop.f32.mrf.mxu0
    %392 = vmatprep.mubr.f32.mxu0 %v60
    %393 = vmatmul.mubr.f32.gmra.mxu0 %v59
    %v394 = vpop.f32.mrf.mxu0
    %v395 = vadd.f32 %v295, %v394
    %v396 = vpop.f32.mrf.mxu0
    %397 = vmatprep.mubr.f32.mxu0 %v65
    %398 = vmatmul.mubr.f32.gmra.mxu0 %v64
    %v399 = vpop.f32.mrf.mxu0
    %v400 = vadd.f32 %v300, %v399
    %v401 = vpop.f32.mrf.mxu0
    %402 = vdwg.mxu0
    %403 = vmatprep.subr.mxu0 0.0
    %404 = vmatpush1.msra.mxu0 0.0
    %405 = vmatprep.subr.mxu0 0.0
    %406 = vmatpush1.msra.mxu0 0.0
    %407 = vmatprep.subr.mxu0 0.0
    %408 = vmatpush1.msra.mxu0 0.0
    %409 = vmatprep.subr.mxu0 0.0
    %410 = vmatpush1.msra.mxu0 0.0
    %411 = vmatprep.subr.mxu0 0.0
    %412 = vmatpush1.msra.mxu0 0.0
    %413 = vmatprep.subr.mxu0 0.0
    %414 = vmatpush1.msra.mxu0 0.0
    %415 = vmatprep.subr.mxu0 0.0
    %416 = vmatpush1.msra.mxu0 0.0
    %417 = vmatprep.subr.mxu0 0.0
    %418 = vmatpush1.msra.mxu0 0.0
    %419 = vmatprep.subr.mxu0 0.0
    %420 = vmatpush1.msra.mxu0 %v138
    %421 = vmatprep.subr.mxu0 0.0
    %422 = vmatpush1.msra.mxu0 %v137
    %423 = vmatprep.subr.mxu0 0.0
    %424 = vmatpush1.msra.mxu0 %v136
    %425 = vmatprep.subr.mxu0 0.0
    %426 = vmatpush1.msra.mxu0 %v135
    %427 = vmatprep.subr.mxu0 0.0
    %428 = vmatpush1.msra.mxu0 %v134
    %429 = vmatprep.subr.mxu0 0.0
    %430 = vmatpush1.msra.mxu0 %v133
    %431 = vmatprep.subr.mxu0 0.0
    %432 = vmatpush1.msra.mxu0 %v132
    %433 = vmatprep.subr.mxu0 0.0
    %434 = vmatpush1.msra.mxu0 %v131
    %435 = vmatprep.subr.mxu0 0.0
    %436 = vmatpush2.msra.mxu0 0.0
    %437 = vmatprep.subr.mxu0 0.0
    %438 = vmatpush2.msra.mxu0 0.0
    %439 = vmatprep.subr.mxu0 0.0
    %440 = vmatpush2.msra.mxu0 0.0
    %441 = vmatprep.subr.mxu0 0.0
    %442 = vmatpush2.msra.mxu0 0.0
    %443 = vmatprep.subr.mxu0 0.0
    %444 = vmatpush2.msra.mxu0 0.0
    %445 = vmatprep.subr.mxu0 0.0
    %446 = vmatpush2.msra.mxu0 0.0
    %447 = vmatprep.subr.mxu0 0.0
    %448 = vmatpush2.msra.mxu0 0.0
    %449 = vmatprep.subr.mxu0 0.0
    %450 = vmatpush2.msra.mxu0 0.0
    %451 = vmatprep.subr.mxu0 0.0
    %452 = vmatpush2.msra.mxu0 0.0
    %453 = vmatprep.subr.mxu0 0.0
    %454 = vmatpush2.msra.mxu0 0.0
    %455 = vmatprep.subr.mxu0 0.0
    %456 = vmatpush2.msra.mxu0 0.0
    %457 = vmatprep.subr.mxu0 0.0
    %458 = vmatpush2.msra.mxu0 0.0
    %459 = vmatprep.subr.mxu0 0.0
    %460 = vmatpush2.msra.mxu0 0.0
    %461 = vmatprep.subr.mxu0 0.0
    %462 = vmatpush2.msra.mxu0 0.0
    %463 = vmatprep.subr.mxu0 0.0
    %464 = vmatpush2.msra.mxu0 0.0
    %465 = vmatprep.subr.mxu0 0.0
    %466 = vmatpush2.msra.mxu0 0.0
    %467 = vmatprep.mubr.f32.mxu0 0.0
    %468 = vmatmul.mubr.f32.gmra.mxu0 %v183
    %v469 = vpop.f32.mrf.mxu0
    %v470 = vadd.f32 %v370, %v469
    %v471 = vpop.f32.mrf.mxu0
    %472 = vmatprep.mubr.f32.mxu0 0.0
    %473 = vmatmul.mubr.f32.gmra.mxu0 %v186
    %v474 = vpop.f32.mrf.mxu0
    %v475 = vadd.f32 %v375, %v474
    %v476 = vpop.f32.mrf.mxu0
    %477 = vmatprep.mubr.f32.mxu0 0.0
    %478 = vmatmul.mubr.f32.gmra.mxu0 %v189
    %v479 = vpop.f32.mrf.mxu0
    %v480 = vadd.f32 %v380, %v479
    %v481 = vpop.f32.mrf.mxu0
    %482 = vmatprep.mubr.f32.mxu0 0.0
    %483 = vmatmul.mubr.f32.gmra.mxu0 %v192
    %v484 = vpop.f32.mrf.mxu0
    %v485 = vadd.f32 %v385, %v484
    %v486 = vpop.f32.mrf.mxu0
    %487 = vmatprep.mubr.f32.mxu0 0.0
    %488 = vmatmul.mubr.f32.gmra.mxu0 %v195
    %v489 = vpop.f32.mrf.mxu0
    %v490 = vadd.f32 %v390, %v489
    %v491 = vpop.f32.mrf.mxu0
    %492 = vmatprep.mubr.f32.mxu0 0.0
    %493 = vmatmul.mubr.f32.gmra.mxu0 %v198
    %v494 = vpop.f32.mrf.mxu0
    %v495 = vadd.f32 %v395, %v494
    %v496 = vpop.f32.mrf.mxu0
    %497 = vmatprep.mubr.f32.mxu0 0.0
    %498 = vmatmul.mubr.f32.gmra.mxu0 %v201
    %v499 = vpop.f32.mrf.mxu0
    %v500 = vadd.f32 %v400, %v499
    %v501 = vpop.f32.mrf.mxu0
    %502 = vdwg.mxu0
    %vm503 = vcmask 261120
    %v504 = vsel %vm503, %v470, 0.0
    %505 = vadd.xlane.f32.xlu0 %v504
    %v506 = vpop.xlane.xlu0 %505
    %v507 = vsel %vm503, %v475, 0.0
    %508 = vadd.xlane.f32.xlu0 %v507
    %v509 = vpop.xlane.xlu0 %508
    %v510 = vsel %vm503, %v480, 0.0
    %511 = vadd.xlane.f32.xlu0 %v510
    %v512 = vpop.xlane.xlu0 %511
    %v513 = vsel %vm503, %v485, 0.0
    %514 = vadd.xlane.f32.xlu0 %v513
    %v515 = vpop.xlane.xlu0 %514
    %v516 = vsel %vm503, %v490, 0.0
    %517 = vadd.xlane.f32.xlu0 %v516
    %v518 = vpop.xlane.xlu0 %517
    %v519 = vsel %vm503, %v495, 0.0
    %520 = vadd.xlane.f32.xlu0 %v519
    %v521 = vpop.xlane.xlu0 %520
    %vm522 = vcmask 254976
    %v523 = vsel %vm522, %v500, 0.0
    %524 = vadd.xlane.f32.xlu0 %v523
    %v525 = vpop.xlane.xlu0 %524
    %v526 = vmul.f32 %v506, 0.03125
    %v527 = vmul.f32 %v509, 0.03125
    %v528 = vmul.f32 %v512, 0.03125
    %v529 = vmul.f32 %v515, 0.03125
    %v530 = vmul.f32 %v518, 0.03125
    %v531 = vmul.f32 %v521, 0.03125
    %v532 = vmul.f32 %v525, 0.03125
    %v533 = vmul.f32 %v470, %v470
    %v534 = vmul.f32 %v475, %v475
    %v535 = vmul.f32 %v480, %v480
    %v536 = vmul.f32 %v485, %v485
    %v537 = vmul.f32 %v490, %v490
    %v538 = vmul.f32 %v495, %v495
    %v539 = vmul.f32 %v500, %v500
    %v540 = vsel %vm503, %v533, 0.0
    %541 = vadd.xlane.f32.xlu0 %v540
    %v542 = vpop.xlane.xlu0 %541
    %v543 = vsel %vm503, %v534, 0.0
    %544 = vadd.xlane.f32.xlu0 %v543
    %v545 = vpop.xlane.xlu0 %544
    %v546 = vsel %vm503, %v535, 0.0
    %547 = vadd.xlane.f32.xlu0 %v546
    %v548 = vpop.xlane.xlu0 %547
    %v549 = vsel %vm503, %v536, 0.0
    %550 = vadd.xlane.f32.xlu0 %v549
    %v551 = vpop.xlane.xlu0 %550
    %v552 = vsel %vm503, %v537, 0.0
    %553 = vadd.xlane.f32.xlu0 %v552
    %v554 = vpop.xlane.xlu0 %553
    %v555 = vsel %vm503, %v538, 0.0
    %556 = vadd.xlane.f32.xlu0 %v555
    %v557 = vpop.xlane.xlu0 %556
    %v558 = vsel %vm522, %v539, 0.0
    %559 = vadd.xlane.f32.xlu0 %v558
    %v560 = vpop.xlane.xlu0 %559
    %v561 = vmul.f32 %v542, 0.03125
    %v562 = vmul.f32 %v545, 0.03125
    %v563 = vmul.f32 %v548, 0.03125
    %v564 = vmul.f32 %v551, 0.03125
    %v565 = vmul.f32 %v554, 0.03125
    %v566 = vmul.f32 %v557, 0.03125
    %v567 = vmul.f32 %v560, 0.03125
    %v568 = vmul.f32 %v526, %v526
    %v569 = vmul.f32 %v527, %v527
    %v570 = vmul.f32 %v528, %v528
    %v571 = vmul.f32 %v529, %v529
    %v572 = vmul.f32 %v530, %v530
    %v573 = vmul.f32 %v531, %v531
    %v574 = vmul.f32 %v532, %v532
    %v575 = vsub.f32 %v561, %v568
    %v576 = vsub.f32 %v562, %v569
    %v577 = vsub.f32 %v563, %v570
    %v578 = vsub.f32 %v564, %v571
    %v579 = vsub.f32 %v565, %v572
    %v580 = vsub.f32 %v566, %v573
    %v581 = vsub.f32 %v567, %v574
    %v582 = vmax.f32 %v575, 0.0
    %v583 = vmax.f32 %v576, 0.0
    %v584 = vmax.f32 %v577, 0.0
    %v585 = vmax.f32 %v578, 0.0
    %v586 = vmax.f32 %v579, 0.0
    %v587 = vmax.f32 %v580, 0.0
    %v588 = vmax.f32 %v581, 0.0
    %v589 = vld [vmem:[%s3] sm:$0xff]
    %v590 = vld [vmem:[%s3 + $0x8] sm:$0xff]
    %v591 = vld [vmem:[%s3 + $0x10] sm:$0xff]
    %v592 = vld [vmem:[%s3 + $0x18] sm:$0xff]
    %v593 = vld [vmem:[%s3 + $0x20] sm:$0xff]
    %v594 = vld [vmem:[%s3 + $0x28] sm:$0xff]
    %v595 = vld [vmem:[%s3 + $0x30] sm:$0x3]
    %v596 = vadd.f32 %v582, 1e-05
    %v597 = vadd.f32 %v583, 1e-05
    %v598 = vadd.f32 %v584, 1e-05
    %v599 = vadd.f32 %v585, 1e-05
    %v600 = vadd.f32 %v586, 1e-05
    %v601 = vadd.f32 %v587, 1e-05
    %v602 = vadd.f32 %v588, 1e-05
    %v603 = vrsqrt.pop %v596
    %v604 = vrsqrt.pop %v597
    %v605 = vrsqrt.pop %v598
    %v606 = vrsqrt.pop %v599
    %v607 = vrsqrt.pop %v600
    %v608 = vrsqrt.pop %v601
    %v609 = vrsqrt.pop %v602
    %v610 = vmul.f32 %v589, %v603
    %v611 = vmul.f32 %v590, %v604
    %v612 = vmul.f32 %v591, %v605
    %v613 = vmul.f32 %v592, %v606
    %v614 = vmul.f32 %v593, %v607
    %v615 = vmul.f32 %v594, %v608
    %v616 = vmul.f32 %v595, %v609
    %v617 = vld [vmem:[%s4] sm:$0xff]
    %v618 = vld [vmem:[%s4 + $0x8] sm:$0xff]
    %v619 = vld [vmem:[%s4 + $0x10] sm:$0xff]
    %v620 = vld [vmem:[%s4 + $0x18] sm:$0xff]
    %v621 = vld [vmem:[%s4 + $0x20] sm:$0xff]
    %v622 = vld [vmem:[%s4 + $0x28] sm:$0xff]
    %v623 = vld [vmem:[%s4 + $0x30] sm:$0x3]
    %v624 = vmul.f32 %v526, %v610
    %v625 = vmul.f32 %v527, %v611
    %v626 = vmul.f32 %v528, %v612
    %v627 = vmul.f32 %v529, %v613
    %v628 = vmul.f32 %v530, %v614
    %v629 = vmul.f32 %v531, %v615
    %v630 = vmul.f32 %v532, %v616
    %v631 = vsub.f32 %v617, %v624
    %v632 = vsub.f32 %v618, %v625
    %v633 = vsub.f32 %v619, %v626
    %v634 = vsub.f32 %v620, %v627
    %v635 = vsub.f32 %v621, %v628
    %v636 = vsub.f32 %v622, %v629
    %v637 = vsub.f32 %v623, %v630
    %639 = vset.pattern.permute.xlu0 0
    %640 = vperm.xlu0 %639, %v610
    %v641 = vpop.permute.xlu0 %640
    %644 = vset.pattern.permute.xlu0 0
    %645 = vperm.xlu0 %644, %v611
    %v646 = vpop.permute.xlu0 %645
    %649 = vset.pattern.permute.xlu0 0
    %650 = vperm.xlu0 %649, %v612
    %v651 = vpop.permute.xlu0 %650
    %654 = vset.pattern.permute.xlu0 0
    %655 = vperm.xlu0 %654, %v613
    %v656 = vpop.permute.xlu0 %655
    %659 = vset.pattern.permute.xlu0 0
    %660 = vperm.xlu0 %659, %v614
    %v661 = vpop.permute.xlu0 %660
    %664 = vset.pattern.permute.xlu0 0
    %665 = vperm.xlu0 %664, %v615
    %v666 = vpop.permute.xlu0 %665
    %669 = vset.pattern.permute.xlu0 0
    %670 = vperm.xlu0 %669, %v616
    %v671 = vpop.permute.xlu0 %670
    %v673 = vmul.f32 %v470, %v641
    %v674 = vmul.f32 %v475, %v646
    %v675 = vmul.f32 %v480, %v651
    %v676 = vmul.f32 %v485, %v656
    %v677 = vmul.f32 %v490, %v661
    %v678 = vmul.f32 %v495, %v666
    %v679 = vmul.f32 %v500, %v671
    %681 = vset.pattern.permute.xlu0 0
    %682 = vperm.xlu0 %681, %v631
    %v683 = vpop.permute.xlu0 %682
    %686 = vset.pattern.permute.xlu0 0
    %687 = vperm.xlu0 %686, %v632
    %v688 = vpop.permute.xlu0 %687
    %691 = vset.pattern.permute.xlu0 0
    %692 = vperm.xlu0 %691, %v633
    %v693 = vpop.permute.xlu0 %692
    %696 = vset.pattern.permute.xlu0 0
    %697 = vperm.xlu0 %696, %v634
    %v698 = vpop.permute.xlu0 %697
    %701 = vset.pattern.permute.xlu0 0
    %702 = vperm.xlu0 %701, %v635
    %v703 = vpop.permute.xlu0 %702
    %706 = vset.pattern.permute.xlu0 0
    %707 = vperm.xlu0 %706, %v636
    %v708 = vpop.permute.xlu0 %707
    %711 = vset.pattern.permute.xlu0 0
    %712 = vperm.xlu0 %711, %v637
    %v713 = vpop.permute.xlu0 %712
    %v715 = vadd.f32 %v673, %v683
    %v716 = vadd.f32 %v674, %v688
    %v717 = vadd.f32 %v675, %v693
    %v718 = vadd.f32 %v676, %v698
    %v719 = vadd.f32 %v677, %v703
    %v720 = vadd.f32 %v678, %v708
    %v721 = vadd.f32 %v679, %v713
    %vm722 = vcmp.ge.f32.partialorder %v715, 0.0
    %vm723 = vcmp.ge.f32.partialorder %v716, 0.0
    %vm724 = vcmp.ge.f32.partialorder %v717, 0.0
    %vm725 = vcmp.ge.f32.partialorder %v718, 0.0
    %vm726 = vcmp.ge.f32.partialorder %v719, 0.0
    %vm727 = vcmp.ge.f32.partialorder %v720, 0.0
    %vm728 = vcmp.ge.f32.partialorder %v721, 0.0
    %v729 = vmul.f32 %v715, 0.2
    %v730 = vmul.f32 %v716, 0.2
    %v731 = vmul.f32 %v717, 0.2
    %v732 = vmul.f32 %v718, 0.2
    %v733 = vmul.f32 %v719, 0.2
    %v734 = vmul.f32 %v720, 0.2
    %v735 = vmul.f32 %v721, 0.2
    %v736 = vsel %vm722, %v715, %v729
    %v737 = vsel %vm723, %v716, %v730
    %v738 = vsel %vm724, %v717, %v731
    %v739 = vsel %vm725, %v718, %v732
    %v740 = vsel %vm726, %v719, %v733
    %v741 = vsel %vm727, %v720, %v734
    %v742 = vsel %vm728, %v721, %v735
    %v743 = vld [vmem:[%s5] sm:$0xff]
    %v744 = vld [vmem:[%s5 + $0x8] sm:$0xff]
    %v745 = vld [vmem:[%s5 + $0x10] sm:$0xff]
    %v746 = vld [vmem:[%s5 + $0x18] sm:$0xff]
    %v747 = vld [vmem:[%s5 + $0x20] sm:$0xff]
    %v748 = vld [vmem:[%s5 + $0x28] sm:$0xff]
    %v749 = vld [vmem:[%s5 + $0x30] sm:$0x3]
    %v750 = vmul.f32 %v736, %v743
    %v751 = vmul.f32 %v737, %v744
    %v752 = vmul.f32 %v738, %v745
    %v753 = vmul.f32 %v739, %v746
    %v754 = vmul.f32 %v740, %v747
    %v755 = vmul.f32 %v741, %v748
    %v756 = vmul.f32 %v742, %v749
    %v757 = vsel %vm503, %v750, 0.0
    %v758 = vsel %vm503, %v751, 0.0
    %v759 = vadd.f32 %v757, %v758
    %v760 = vsel %vm503, %v752, 0.0
    %v761 = vadd.f32 %v759, %v760
    %v762 = vsel %vm503, %v753, 0.0
    %v763 = vadd.f32 %v761, %v762
    %v764 = vsel %vm503, %v754, 0.0
    %v765 = vadd.f32 %v763, %v764
    %v766 = vsel %vm503, %v755, 0.0
    %v767 = vadd.f32 %v765, %v766
    %v768 = vsel %vm522, %v756, 0.0
    %v769 = vadd.f32 %v767, %v768
    %v770 = vrot.slane %v769, 4
    %v771 = vadd.f32 %v769, %v770
    %v772 = vrot.slane %v771, 2
    %v773 = vadd.f32 %v771, %v772
    %v774 = vrot.slane %v773, 1
    %v775 = vadd.f32 %v773, %v774
    %v776 = vld [vmem:[%s6] sm:$0xff]
    %v777 = vld [vmem:[%s6 + $0x8] sm:$0xff]
    %v778 = vld [vmem:[%s6 + $0x10] sm:$0xff]
    %v779 = vld [vmem:[%s6 + $0x18] sm:$0xff]
    %v780 = vld [vmem:[#allocation2] sm:$0x1]
    %782 = vset.pattern.permute.xlu0 0
    %783 = vperm.xlu0 %782, %v780
    %v784 = vpop.permute.xlu0 %783
    %v786 = vlaneseq
    %v787 = vshrl.u32 %v786, 7
    %v788 = vsub.s32 0, %v787
    %v789 = vrot.slane %v784, %v788
    %v791 = vsel %vm503, %v775, 0
    %793 = vmatprep.subr.mxu0 0.0
    %794 = vmatpush1.msra.mxu0 0.0
    %795 = vmatprep.subr.mxu0 0.0
    %796 = vmatpush1.msra.mxu0 0.0
    %797 = vmatprep.subr.mxu0 0.0
    %798 = vmatpush1.msra.mxu0 0.0
    %799 = vmatprep.subr.mxu0 0.0
    %800 = vmatpush1.msra.mxu0 0.0
    %801 = vmatprep.subr.mxu0 0.0
    %802 = vmatpush1.msra.mxu0 0.0
    %803 = vmatprep.subr.mxu0 0.0
    %804 = vmatpush1.msra.mxu0 0.0
    %805 = vmatprep.subr.mxu0 0.0
    %806 = vmatpush1.msra.mxu0 0.0
    %807 = vmatprep.subr.mxu0 0.0
    %808 = vmatpush1.msra.mxu0 0.0
    %809 = vmatprep.subr.mxu0 0.0
    %810 = vmatpush1.msra.mxu0 0.0
    %811 = vmatprep.subr.mxu0 0.0
    %812 = vmatpush1.msra.mxu0 0.0
    %813 = vmatprep.subr.mxu0 0.0
    %814 = vmatpush1.msra.mxu0 0.0
    %815 = vmatprep.subr.mxu0 0.0
    %816 = vmatpush1.msra.mxu0 0.0
    %817 = vmatprep.subr.mxu0 0.0
    %818 = vmatpush1.msra.mxu0 %v779
    %819 = vmatprep.subr.mxu0 0.0
    %820 = vmatpush1.msra.mxu0 %v778
    %821 = vmatprep.subr.mxu0 0.0
    %822 = vmatpush1.msra.mxu0 %v777
    %823 = vmatprep.subr.mxu0 0.0
    %824 = vmatpush1.msra.mxu0 %v776
    %825 = vmatprep.subr.mxu0 0.0
    %826 = vmatpush2.msra.mxu0 0.0
    %827 = vmatprep.subr.mxu0 0.0
    %828 = vmatpush2.msra.mxu0 0.0
    %829 = vmatprep.subr.mxu0 0.0
    %830 = vmatpush2.msra.mxu0 0.0
    %831 = vmatprep.subr.mxu0 0.0
    %832 = vmatpush2.msra.mxu0 0.0
    %833 = vmatprep.subr.mxu0 0.0
    %834 = vmatpush2.msra.mxu0 0.0
    %835 = vmatprep.subr.mxu0 0.0
    %836 = vmatpush2.msra.mxu0 0.0
    %837 = vmatprep.subr.mxu0 0.0
    %838 = vmatpush2.msra.mxu0 0.0
    %839 = vmatprep.subr.mxu0 0.0
    %840 = vmatpush2.msra.mxu0 0.0
    %841 = vmatprep.subr.mxu0 0.0
    %842 = vmatpush2.msra.mxu0 0.0
    %843 = vmatprep.subr.mxu0 0.0
    %844 = vmatpush2.msra.mxu0 0.0
    %845 = vmatprep.subr.mxu0 0.0
    %846 = vmatpush2.msra.mxu0 0.0
    %847 = vmatprep.subr.mxu0 0.0
    %848 = vmatpush2.msra.mxu0 0.0
    %849 = vmatprep.subr.mxu0 0.0
    %850 = vmatpush2.msra.mxu0 0.0
    %851 = vmatprep.subr.mxu0 0.0
    %852 = vmatpush2.msra.mxu0 0.0
    %853 = vmatprep.subr.mxu0 0.0
    %854 = vmatpush2.msra.mxu0 0.0
    %855 = vmatprep.subr.mxu0 0.0
    %856 = vmatpush2.msra.mxu0 0.0
    %857 = vmatprep.mubr.f32.mxu0 0.0
    %858 = vmatmul.mubr.f32.gmra.mxu0 %v791
    %v859 = vpop.f32.mrf.mxu0
    %v860 = vadd.f32 %v789, %v859
    %v861 = vpop.f32.mrf.mxu0
    %862 = vdwg.mxu0
    %vm863 = vcmask 8192
    %864 = vst.msk [vmem:[#allocation3] sm:$0x1] %vm863, %v860
    // Predicated region
    $region34: #{model_b_periodic_forward.11} parent=1 // pred_check
      _
    $region35: #{model_b_periodic_forward.11} parent=1 // pred_check_branch
      %866 = sbr.rel (0) target = $region37
    $region36: #{model_b_periodic_forward.11} parent=1 // pred_region
      %s868 = ssub.s32 16, 16
      %869 = vsyncadd [#allocation4], %s868
      %s871 = sshll.u32 [#allocation3], 4
      %s872 = int_to_ptr.vmem [resolvable:$true] %s871
      %874 = dma.vmem_to_hbm [thread:$0]  %s872, 16, %s8, [#allocation4]
    $region37: #{model_b_periodic_forward.11} parent=1 // pred_fallthru
      _
    // Predicated region
    $region38: #{model_b_periodic_forward.11} parent=1 // pred_check
      _
    $region39: #{model_b_periodic_forward.11} parent=1 // pred_check_branch
      %876 = sbr.rel (0) target = $region41
    $region40: #{model_b_periodic_forward.11} parent=1 // pred_region
      %877 = dma.done [#allocation4], 16
    $region41: #{model_b_periodic_forward.11} parent=1 // pred_fallthru
      _
    %878 = vsyncpa [#allocation4], 1

</llo_original>
